<compile_context>
chip_gen: v6e
topology: v6e:2x2x1
jax: 0.10.0
libtpu: 0.0.40
codegen_flags: <defaults>
</compile_context>

<pallas_src>
import jax
import jax.numpy as jnp
from jax.experimental import pallas as pl
from jax.experimental.pallas import tpu as pltpu

COUT_PAD = 128   # lane-dense output channel padding for conv2 / conv3


# --------------------------- Pallas kernels ---------------------------------

def _conv1_kernel(p_ref, w_ref, b_ref, o_ref):
    # Transposed (lane = spatial) conv1 layer.
    #   p_ref: (1, KKC, 4*Mp) bf16  pool-phase-major im2col patches (lane-dense)
    #   w_ref: (Cout, KKC)    bf16  conv weight with BN scale folded in
    #   b_ref: (Cout, 1)      f32   folded conv+BN bias
    #   o_ref: (1, Cout, Mp)  bf16  pooled conv->BN->ReLU output (NCHW-flat)
    mp = o_ref.shape[2]
    z = jnp.dot(w_ref[...], p_ref[0], preferred_element_type=jnp.float32)  # (Cout, 4*Mp)
    z = jnp.maximum(z + b_ref[...], 0.0)          # per-phase affine + ReLU BEFORE max
    out = jnp.maximum(jnp.maximum(z[:, 0 * mp:1 * mp], z[:, 1 * mp:2 * mp]),
                      jnp.maximum(z[:, 2 * mp:3 * mp], z[:, 3 * mp:4 * mp]))
    o_ref[0] = out.astype(o_ref.dtype)


def _conv_bn_relu_pool_kernel(p_ref, w_ref, b_ref, o_ref):
    # Conv2/conv3: merged-phase matmul, Cout padded to 128 lanes.
    #   p_ref: (1, 4, Mp, KKC) bf16   (Mp is a multiple of the bf16 sublane tile)
    #   w_ref: (KKC, 128)      bf16   BN-scale-folded weight, zero-padded columns
    #   b_ref: (1, 128)        f32    folded bias, zero-padded
    #   o_ref: (1, Mp, 128)    bf16
    mp = o_ref.shape[1]
    kkc = p_ref.shape[3]
    p = p_ref[0].reshape(4 * mp, kkc)                       # layout-free sublane merge
    z = jnp.dot(p, w_ref[...], preferred_element_type=jnp.float32)   # (4*Mp, 128)
    z = jnp.maximum(z + b_ref[...], 0.0)          # per-phase affine + ReLU BEFORE max
    out = jnp.maximum(jnp.maximum(z[0 * mp:1 * mp], z[1 * mp:2 * mp]),
                      jnp.maximum(z[2 * mp:3 * mp], z[3 * mp:4 * mp]))
    o_ref[0] = out.astype(o_ref.dtype)


def _classifier_kernel(x_ref, w1_ref, b1_ref, w2_ref, b2_ref, o_ref):
    # x: (N, F) bf16; w1: (F, 128) bf16; b1: (1, 128) f32
    # w2: (128, 128) bf16 (zero-padded); b2: (1, 128) f32; o: (N, 128) f32
    h = jnp.dot(x_ref[...], w1_ref[...], preferred_element_type=jnp.float32) + b1_ref[...]
    h = jnp.maximum(h, 0.0)
    # TODO(synk): Dropout(0.5) is the identity under inference semantics.
    o_ref[...] = (jnp.dot(h.astype(jnp.bfloat16), w2_ref[...],
                          preferred_element_type=jnp.float32) + b2_ref[...]
                  ).astype(o_ref.dtype)


# --------------------------- wrappers ----------------------------------------

def conv1_bn_relu_pool(x_nchw, w2d, bias, *, k=3, stride=2, pad=1):
    """First fused Conv -> BN -> ReLU -> MaxPool2(2), lane axis = spatial.

    x_nchw: (N, Cin, H, W).  w2d: (Cout, K*K*Cin), feature order f=(dy*K+dx)*Cin+ci.
    Returns NHWC (N, Ho//2, Wo//2, Cout)."""
    N, C, H, W = x_nchw.shape
    Cout = w2d.shape[0]
    Ho = (H + 2 * pad - k) // stride + 1
    Wo = (W + 2 * pad - k) // stride + 1
    Hq, Wq = Ho // 2, Wo // 2
    Mp = Hq * Wq
    s2 = 2 * stride

    # Direct pool-phase-major im2col from NCHW: no transposes, only strided slices,
    # stacks of adjacent axes and a contiguous reshape.
    xp = jnp.pad(x_nchw, ((0, 0), (0, 0), (pad, pad), (pad, pad)))
    taps = []
    for dy in range(k):
        for dx in range(k):
            phases = []
            for py in range(2):
                for px in range(2):
                    y0, x0 = dy + stride * py, dx + stride * px
                    phases.append(jax.lax.slice(
                        xp, (0, 0, y0, x0),
                        (N, C, y0 + s2 * (Hq - 1) + 1, x0 + s2 * (Wq - 1) + 1),
                        (1, 1, s2, s2)))                    # (N, C, Hq, Wq)
            taps.append(jnp.stack(phases, axis=2))          # (N, C, 4, Hq, Wq)
    patches = jnp.stack(taps, axis=1)                       # (N, K*K, C, 4, Hq, Wq)
    patches = patches.reshape(N, k * k * C, 4 * Mp).astype(jnp.bfloat16)

    out = pl.pallas_call(
        _conv1_kernel,
        out_shape=jax.ShapeDtypeStruct((N, Cout, Mp), jnp.bfloat16),
        grid=(N,),
        in_specs=[
            pl.BlockSpec((1, k * k * C, 4 * Mp), lambda n: (n, 0, 0)),
            pl.BlockSpec((Cout, k * k * C), lambda n: (0, 0)),
            pl.BlockSpec((Cout, 1), lambda n: (0, 0)),
        ],
        out_specs=pl.BlockSpec((1, Cout, Mp), lambda n: (n, 0, 0)),
        compiler_params=pltpu.CompilerParams(dimension_semantics=("parallel",)),
    )(patches, w2d.astype(jnp.bfloat16), bias)
    # Tiny NCHW-flat -> NHWC handoff for the next layer's im2col (N*Cout*Mp elems).
    return out.reshape(N, Cout, Hq, Wq).transpose(0, 2, 3, 1)


def conv_bn_relu_pool(x_nhwc, w2d, bias, *, k, stride, pad):
    """Fused Conv -> BN -> ReLU -> MaxPool2(2) for conv2/conv3.

    x_nhwc: (N, H, W, Cin).  w2d: (K*K*Cin, 128) zero-padded columns.
    Returns NHWC (N, Ho//2, Wo//2, 128) — caller slices live channels if needed."""
    N, H, W, C = x_nhwc.shape
    KKC, CP = w2d.shape
    Ho = (H + 2 * pad - k) // stride + 1
    Wo = (W + 2 * pad - k) // stride + 1
    Hq, Wq = Ho // 2, Wo // 2
    Mp = Hq * Wq
    s2 = 2 * stride

    xp = jnp.pad(x_nhwc, ((0, 0), (pad, pad), (pad, pad), (0, 0)))
    phases = []
    for py in range(2):
        for px in range(2):
            taps = []
            for dy in range(k):
                for dx in range(k):
                    y0, x0 = dy + stride * py, dx + stride * px
                    taps.append(jax.lax.slice(
                        xp, (0, y0, x0, 0),
                        (N, y0 + s2 * (Hq - 1) + 1, x0 + s2 * (Wq - 1) + 1, C),
                        (1, s2, s2, 1)))                    # (N, Hq, Wq, C)
            phases.append(jnp.concatenate(taps, axis=-1))   # (N, Hq, Wq, KKC)
    patches = jnp.stack(phases, axis=1).reshape(N, 4, Mp, KKC).astype(jnp.bfloat16)

    out = pl.pallas_call(
        _conv_bn_relu_pool_kernel,
        out_shape=jax.ShapeDtypeStruct((N, Mp, CP), jnp.bfloat16),
        grid=(N,),
        in_specs=[
            pl.BlockSpec((1, 4, Mp, KKC), lambda n: (n, 0, 0, 0)),
            pl.BlockSpec((KKC, CP), lambda n: (0, 0)),
            pl.BlockSpec((1, CP), lambda n: (0, 0)),
        ],
        out_specs=pl.BlockSpec((1, Mp, CP), lambda n: (n, 0, 0)),
        compiler_params=pltpu.CompilerParams(dimension_semantics=("parallel",)),
    )(patches, w2d, bias)
    return out.reshape(N, Hq, Wq, CP)


def classifier(x_flat, w1p, b1p, w2p, b2p, out_dim):
    """Fused Linear -> ReLU -> [Dropout=identity] -> Linear, single batched matmul."""
    N = x_flat.shape[0]
    out = pl.pallas_call(
        _classifier_kernel,
        out_shape=jax.ShapeDtypeStruct((N, w2p.shape[1]), jnp.float32),
    )(x_flat.astype(jnp.bfloat16), w1p, b1p, w2p, b2p)
    return out[:, :out_dim]


# --------------------------- parameters --------------------------------------

def _conv_bn_params(key, cin, cout):
    k1, k2, k3, k4 = jax.random.split(key, 4)
    fan_in = 3 * 3 * cin
    return dict(
        w=jax.random.normal(k1, (cout, cin, 3, 3), jnp.float32) / jnp.sqrt(fan_in),
        b=0.01 * jax.random.normal(k2, (cout,), jnp.float32),
        gamma=1.0 + 0.1 * jax.random.normal(k3, (cout,), jnp.float32),
        beta=0.1 * jax.random.normal(k4, (cout,), jnp.float32),
        mean=jnp.zeros((cout,), jnp.float32),   # BN running stats at init values
        var=jnp.ones((cout,), jnp.float32),
    )


def init_params(key):
    ks = jax.random.split(key, 7)
    return dict(
        conv1=_conv_bn_params(ks[0], 3, 16),
        conv2=_conv_bn_params(ks[1], 16, 32),
        conv3=_conv_bn_params(ks[2], 32, 64),
        fc1_w=0.05 * jax.random.normal(ks[3], (64, 64 * 4 * 4), jnp.float32),
        fc1_b=0.05 * jax.random.normal(ks[4], (64,), jnp.float32),
        fc2_w=0.05 * jax.random.normal(ks[5], (2, 64), jnp.float32),
        fc2_b=0.05 * jax.random.normal(ks[6], (2,), jnp.float32),
    )


def _bn_scale_bias(p, eps=1e-5):
    scale = p["gamma"] / jnp.sqrt(p["var"] + eps)
    bias = (p["b"] - p["mean"]) * scale + p["beta"]
    return scale, bias


def _conv1_weights(p):
    # (Cout, Cin, K, K) -> (Cout, K, K, Cin) -> (Cout, KKC); fold BN scale into rows.
    scale, bias = _bn_scale_bias(p)
    cout = p["w"].shape[0]
    w = jnp.transpose(p["w"], (0, 2, 3, 1)).reshape(cout, -1) * scale[:, None]
    return w.astype(jnp.bfloat16), bias.reshape(cout, 1).astype(jnp.float32)


def _conv_weights(p, cp=COUT_PAD):
    # (Cout, Cin, K, K) -> (K, K, Cin, Cout) -> (KKC, Cout); fold BN scale into cols,
    # zero-pad output channels to 128 lanes (padded channels produce exact zeros).
    scale, bias = _bn_scale_bias(p)
    cout = p["w"].shape[0]
    w = jnp.transpose(p["w"], (2, 3, 1, 0)).reshape(-1, cout) * scale[None, :]
    w = jnp.pad(w, ((0, 0), (0, cp - cout)))
    b = jnp.pad(bias, (0, cp - cout)).reshape(1, cp)
    return w.astype(jnp.bfloat16), b.astype(jnp.float32)


def _fc1_weight_padded(fc1_w, *, c_live=64, cp=COUT_PAD, hw=16, hd_pad=128):
    # PyTorch Flatten() of NCHW gives feature j = c*16 + m (m = y*4+x).  Our flat
    # activation index is i = m*128 + c (channel-padded NHWC), so permute + zero-pad
    # FC1's input axis once instead of reshaping/slicing activations every forward.
    hd = fc1_w.shape[0]
    w = fc1_w.reshape(hd, c_live, hw)               # (hd, c, m)
    w = jnp.transpose(w, (2, 1, 0))                 # (m, c, hd)
    w = jnp.pad(w, ((0, 0), (0, cp - c_live), (0, hd_pad - hd)))
    return w.reshape(hw * cp, hd_pad).astype(jnp.bfloat16)


# --------------------------- forward ------------------------------------------

def cnn_forward(x_nchw, params):
    w, b = _conv1_weights(params["conv1"])
    x = conv1_bn_relu_pool(x_nchw, w, b, k=3, stride=2, pad=1)   # (N, 32, 32, 16)

    w, b = _conv_weights(params["conv2"])
    x = conv_bn_relu_pool(x, w, b, k=3, stride=2, pad=1)         # (N, 8, 8, 128)
    x = x[..., :32]                                              # live channels only

    w, b = _conv_weights(params["conv3"])
    x = conv_bn_relu_pool(x, w, b, k=3, stride=1, pad=1)         # (N, 4, 4, 128) (64 live)

    N, Hf, Wf, CP = x.shape
    if (Hf, Wf) != (4, 4):
        # General AdaptiveAvgPool2d((4,4)) — exact when Hf, Wf are multiples of 4.
        # TODO(synk): uneven-bin adaptive pooling (non-divisible sizes) not implemented.
        x = x.reshape(N, 4, Hf // 4, 4, Wf // 4, CP).mean(axis=(2, 4)).astype(x.dtype)
    # else: feature map already 4x4 -> AdaptiveAvgPool2d((4,4)) is the identity.

    x_flat = x.reshape(N, 16 * CP)                               # free reshape
    hd, out_dim = params["fc1_w"].shape[0], params["fc2_w"].shape[0]
    hd_pad = 128
    w1p = _fc1_weight_padded(params["fc1_w"], cp=CP, hd_pad=hd_pad)
    b1p = jnp.pad(params["fc1_b"], (0, hd_pad - hd)).reshape(1, hd_pad).astype(jnp.float32)
    w2p = (jnp.zeros((hd_pad, 128), jnp.float32)
           .at[:hd, :out_dim].set(params["fc2_w"].T).astype(jnp.bfloat16))
    b2p = jnp.zeros((1, 128), jnp.float32).at[0, :out_dim].set(params["fc2_b"])
    return classifier(x_flat, w1p, b1p, w2p, b2p, out_dim=out_dim)


if __name__ == "__main__":
    key = jax.random.PRNGKey(0)
    k_params, k_input = jax.random.split(key)
    params = init_params(k_params)
    # 128x128 input so the feature map entering AdaptiveAvgPool2d((4,4)) is 4x4.
    x = jax.random.normal(k_input, (2, 3, 128, 128), jnp.float32)

    out = jax.jit(cnn_forward)(x, params)
    out = jax.block_until_ready(out)
    assert out.shape == (2, 2) and out.dtype == jnp.float32
    print("KERNEL_OK")
</pallas_src>

<mosaic_0001>
module attributes {stable_mosaic.version = 11 : i64} {
  func.func @_conv1_kernel(%arg0: i32, %arg1: memref<1x27x4096xbf16, #tpu.memory_space<vmem>>, %arg2: memref<16x27xbf16, #tpu.memory_space<vmem>>, %arg3: memref<16x1xf32, #tpu.memory_space<vmem>>, %arg4: memref<1x16x1024xbf16, #tpu.memory_space<vmem>>) attributes {dimension_semantics = [#tpu.dimension_semantics<parallel>], iteration_bounds = array<i64: 2>, scalar_prefetch = 0 : i64, scratch_operands = 0 : i64, tpu.core_type = #tpu.core_type<tc>, window_params = [{transform_indices = @transform_0, window_bounds = array<i64: 1, 27, 4096>}, {pipeline_mode = #tpu.pipeline_mode<synchronous>, transform_indices = @transform_1, window_bounds = array<i64: 16, 27>}, {pipeline_mode = #tpu.pipeline_mode<synchronous>, transform_indices = @transform_2, window_bounds = array<i64: 16, 1>}, {transform_indices = @transform_3, window_bounds = array<i64: 1, 16, 1024>}]} {
    %c0 = arith.constant 0 : index
    %c0_0 = arith.constant 0 : index
    %0 = vector.load %arg2[%c0, %c0_0] : memref<16x27xbf16, #tpu.memory_space<vmem>>, vector<16x27xbf16>
    %c0_1 = arith.constant 0 : index
    %c0_2 = arith.constant 0 : index
    %c0_3 = arith.constant 0 : index
    %1 = vector.load %arg1[%c0_1, %c0_2, %c0_3] : memref<1x27x4096xbf16, #tpu.memory_space<vmem>>, vector<1x27x4096xbf16>
    %2 = vector.shape_cast %1 : vector<1x27x4096xbf16> to vector<27x4096xbf16>
    %cst = arith.constant dense<0.000000e+00> : vector<16x4096xf32>
    %3 = tpu.matmul %0, %2, %cst {dimension_numbers = #tpu.dot_dimension_numbers<[1], [0], [0], [1], [0, 0, 1, 1], [], []>} : vector<16x27xbf16>, vector<27x4096xbf16>, vector<16x4096xf32> -> vector<16x4096xf32>
    %c0_4 = arith.constant 0 : index
    %c0_5 = arith.constant 0 : index
    %4 = vector.load %arg3[%c0_4, %c0_5] : memref<16x1xf32, #tpu.memory_space<vmem>>, vector<16x1xf32>
    %5 = vector.broadcast %4 : vector<16x1xf32> to vector<16x4096xf32>
    %6 = arith.addf %3, %5 : vector<16x4096xf32>
    %cst_6 = arith.constant 0.000000e+00 : f32
    %7 = vector.broadcast %cst_6 : f32 to vector<16x4096xf32>
    %8 = arith.maximumf %6, %7 : vector<16x4096xf32>
    %9 = vector.extract_strided_slice %8 {offsets = [0, 0], sizes = [16, 1024], strides = [1, 1]} : vector<16x4096xf32> to vector<16x1024xf32>
    %10 = vector.extract_strided_slice %8 {offsets = [0, 1024], sizes = [16, 1024], strides = [1, 1]} : vector<16x4096xf32> to vector<16x1024xf32>
    %11 = arith.maximumf %9, %10 : vector<16x1024xf32>
    %12 = vector.extract_strided_slice %8 {offsets = [0, 2048], sizes = [16, 1024], strides = [1, 1]} : vector<16x4096xf32> to vector<16x1024xf32>
    %13 = vector.extract_strided_slice %8 {offsets = [0, 3072], sizes = [16, 1024], strides = [1, 1]} : vector<16x4096xf32> to vector<16x1024xf32>
    %14 = arith.maximumf %12, %13 : vector<16x1024xf32>
    %15 = arith.maximumf %11, %14 : vector<16x1024xf32>
    %16 = arith.truncf %15 : vector<16x1024xf32> to vector<16x1024xbf16>
    %c0_7 = arith.constant 0 : index
    %c0_8 = arith.constant 0 : index
    %c0_9 = arith.constant 0 : index
    %17 = vector.load %arg4[%c0_7, %c0_8, %c0_9] : memref<1x16x1024xbf16, #tpu.memory_space<vmem>>, vector<1x16x1024xbf16>
    %18 = vector.shape_cast %17 : vector<1x16x1024xbf16> to vector<16x1024xbf16>
    %19 = vector.shape_cast %16 : vector<16x1024xbf16> to vector<1x16x1024xbf16>
    tpu.vector_store %arg4[%c0_7, %c0_8, %c0_9], %19 {strides = array<i32>} : memref<1x16x1024xbf16, #tpu.memory_space<vmem>>, vector<1x16x1024xbf16>,
    return
  }
  func.func @transform_0(%arg0: i32) -> (i32, i32, i32) {
    %c0_i32 = arith.constant 0 : i32
    %c0_i32_0 = arith.constant 0 : i32
    %c0_i32_1 = arith.constant 0 : i32
    return %arg0, %c0_i32, %c0_i32_0 : i32, i32, i32
  }
  func.func @transform_1(%arg0: i32) -> (i32, i32) {
    %c0_i32 = arith.constant 0 : i32
    %c0_i32_0 = arith.constant 0 : i32
    %c0_i32_1 = arith.constant 0 : i32
    return %c0_i32, %c0_i32_0 : i32, i32
  }
  func.func @transform_2(%arg0: i32) -> (i32, i32) {
    %c0_i32 = arith.constant 0 : i32
    %c0_i32_0 = arith.constant 0 : i32
    %c0_i32_1 = arith.constant 0 : i32
    return %c0_i32, %c0_i32_0 : i32, i32
  }
  func.func @transform_3(%arg0: i32) -> (i32, i32, i32) {
    %c0_i32 = arith.constant 0 : i32
    %c0_i32_0 = arith.constant 0 : i32
    %c0_i32_1 = arith.constant 0 : i32
    return %arg0, %c0_i32, %c0_i32_0 : i32, i32, i32
  }
}

module attributes {stable_mosaic.version = 11 : i64} {
  func.func @_conv_bn_relu_pool_kernel(%arg0: i32, %arg1: memref<1x4x64x144xbf16, #tpu.memory_space<vmem>>, %arg2: memref<144x128xbf16, #tpu.memory_space<vmem>>, %arg3: memref<1x128xf32, #tpu.memory_space<vmem>>, %arg4: memref<1x64x128xbf16, #tpu.memory_space<vmem>>) attributes {dimension_semantics = [#tpu.dimension_semantics<parallel>], iteration_bounds = array<i64: 2>, scalar_prefetch = 0 : i64, scratch_operands = 0 : i64, tpu.core_type = #tpu.core_type<tc>, window_params = [{transform_indices = @transform_0, window_bounds = array<i64: 1, 4, 64, 144>}, {pipeline_mode = #tpu.pipeline_mode<synchronous>, transform_indices = @transform_1, window_bounds = array<i64: 144, 128>}, {pipeline_mode = #tpu.pipeline_mode<synchronous>, transform_indices = @transform_2, window_bounds = array<i64: 1, 128>}, {transform_indices = @transform_3, window_bounds = array<i64: 1, 64, 128>}]} {
    %c0 = arith.constant 0 : index
    %c0_0 = arith.constant 0 : index
    %c0_1 = arith.constant 0 : index
    %c0_2 = arith.constant 0 : index
    %0 = vector.load %arg1[%c0, %c0_0, %c0_1, %c0_2] : memref<1x4x64x144xbf16, #tpu.memory_space<vmem>>, vector<1x4x64x144xbf16>
    %1 = vector.shape_cast %0 : vector<1x4x64x144xbf16> to vector<4x64x144xbf16>
    %2 = vector.shape_cast %1 : vector<4x64x144xbf16> to vector<256x144xbf16>
    %c0_3 = arith.constant 0 : index
    %c0_4 = arith.constant 0 : index
    %3 = vector.load %arg2[%c0_3, %c0_4] : memref<144x128xbf16, #tpu.memory_space<vmem>>, vector<144x128xbf16>
    %cst = arith.constant dense<0.000000e+00> : vector<256x128xf32>
    %4 = tpu.matmul %2, %3, %cst {dimension_numbers = #tpu.dot_dimension_numbers<[1], [0], [0], [1], [0, 0, 1, 1], [], []>} : vector<256x144xbf16>, vector<144x128xbf16>, vector<256x128xf32> -> vector<256x128xf32>
    %c0_5 = arith.constant 0 : index
    %c0_6 = arith.constant 0 : index
    %5 = vector.load %arg3[%c0_5, %c0_6] : memref<1x128xf32, #tpu.memory_space<vmem>>, vector<1x128xf32>
    %6 = vector.broadcast %5 : vector<1x128xf32> to vector<256x128xf32>
    %7 = arith.addf %4, %6 : vector<256x128xf32>
    %cst_7 = arith.constant 0.000000e+00 : f32
    %8 = vector.broadcast %cst_7 : f32 to vector<256x128xf32>
    %9 = arith.maximumf %7, %8 : vector<256x128xf32>
    %10 = vector.extract_strided_slice %9 {offsets = [0, 0], sizes = [64, 128], strides = [1, 1]} : vector<256x128xf32> to vector<64x128xf32>
    %11 = vector.extract_strided_slice %9 {offsets = [64, 0], sizes = [64, 128], strides = [1, 1]} : vector<256x128xf32> to vector<64x128xf32>
    %12 = arith.maximumf %10, %11 : vector<64x128xf32>
    %13 = vector.extract_strided_slice %9 {offsets = [128, 0], sizes = [64, 128], strides = [1, 1]} : vector<256x128xf32> to vector<64x128xf32>
    %14 = vector.extract_strided_slice %9 {offsets = [192, 0], sizes = [64, 128], strides = [1, 1]} : vector<256x128xf32> to vector<64x128xf32>
    %15 = arith.maximumf %13, %14 : vector<64x128xf32>
    %16 = arith.maximumf %12, %15 : vector<64x128xf32>
    %17 = arith.truncf %16 : vector<64x128xf32> to vector<64x128xbf16>
    %c0_8 = arith.constant 0 : index
    %c0_9 = arith.constant 0 : index
    %c0_10 = arith.constant 0 : index
    %18 = vector.load %arg4[%c0_8, %c0_9, %c0_10] : memref<1x64x128xbf16, #tpu.memory_space<vmem>>, vector<1x64x128xbf16>
    %19 = vector.shape_cast %18 : vector<1x64x128xbf16> to vector<64x128xbf16>
    %20 = vector.shape_cast %17 : vector<64x128xbf16> to vector<1x64x128xbf16>
    tpu.vector_store %arg4[%c0_8, %c0_9, %c0_10], %20 {strides = array<i32>} : memref<1x64x128xbf16, #tpu.memory_space<vmem>>, vector<1x64x128xbf16>,
    return
  }
  func.func @transform_0(%arg0: i32) -> (i32, i32, i32, i32) {
    %c0_i32 = arith.constant 0 : i32
    %c0_i32_0 = arith.constant 0 : i32
    %c0_i32_1 = arith.constant 0 : i32
    %c0_i32_2 = arith.constant 0 : i32
    return %arg0, %c0_i32, %c0_i32_0, %c0_i32_1 : i32, i32, i32, i32
  }
  func.func @transform_1(%arg0: i32) -> (i32, i32) {
    %c0_i32 = arith.constant 0 : i32
    %c0_i32_0 = arith.constant 0 : i32
    %c0_i32_1 = arith.constant 0 : i32
    return %c0_i32, %c0_i32_0 : i32, i32
  }
  func.func @transform_2(%arg0: i32) -> (i32, i32) {
    %c0_i32 = arith.constant 0 : i32
    %c0_i32_0 = arith.constant 0 : i32
    %c0_i32_1 = arith.constant 0 : i32
    return %c0_i32, %c0_i32_0 : i32, i32
  }
  func.func @transform_3(%arg0: i32) -> (i32, i32, i32) {
    %c0_i32 = arith.constant 0 : i32
    %c0_i32_0 = arith.constant 0 : i32
    %c0_i32_1 = arith.constant 0 : i32
    return %arg0, %c0_i32, %c0_i32_0 : i32, i32, i32
  }
}

module attributes {stable_mosaic.version = 11 : i64} {
  func.func @_conv_bn_relu_pool_kernel(%arg0: i32, %arg1: memref<1x4x16x288xbf16, #tpu.memory_space<vmem>>, %arg2: memref<288x128xbf16, #tpu.memory_space<vmem>>, %arg3: memref<1x128xf32, #tpu.memory_space<vmem>>, %arg4: memref<1x16x128xbf16, #tpu.memory_space<vmem>>) attributes {dimension_semantics = [#tpu.dimension_semantics<parallel>], iteration_bounds = array<i64: 2>, scalar_prefetch = 0 : i64, scratch_operands = 0 : i64, tpu.core_type = #tpu.core_type<tc>, window_params = [{transform_indices = @transform_0, window_bounds = array<i64: 1, 4, 16, 288>}, {pipeline_mode = #tpu.pipeline_mode<synchronous>, transform_indices = @transform_1, window_bounds = array<i64: 288, 128>}, {pipeline_mode = #tpu.pipeline_mode<synchronous>, transform_indices = @transform_2, window_bounds = array<i64: 1, 128>}, {transform_indices = @transform_3, window_bounds = array<i64: 1, 16, 128>}]} {
    %c0 = arith.constant 0 : index
    %c0_0 = arith.constant 0 : index
    %c0_1 = arith.constant 0 : index
    %c0_2 = arith.constant 0 : index
    %0 = vector.load %arg1[%c0, %c0_0, %c0_1, %c0_2] : memref<1x4x16x288xbf16, #tpu.memory_space<vmem>>, vector<1x4x16x288xbf16>
    %1 = vector.shape_cast %0 : vector<1x4x16x288xbf16> to vector<4x16x288xbf16>
    %2 = vector.shape_cast %1 : vector<4x16x288xbf16> to vector<64x288xbf16>
    %c0_3 = arith.constant 0 : index
    %c0_4 = arith.constant 0 : index
    %3 = vector.load %arg2[%c0_3, %c0_4] : memref<288x128xbf16, #tpu.memory_space<vmem>>, vector<288x128xbf16>
    %cst = arith.constant dense<0.000000e+00> : vector<64x128xf32>
    %4 = tpu.matmul %2, %3, %cst {dimension_numbers = #tpu.dot_dimension_numbers<[1], [0], [0], [1], [0, 0, 1, 1], [], []>} : vector<64x288xbf16>, vector<288x128xbf16>, vector<64x128xf32> -> vector<64x128xf32>
    %c0_5 = arith.constant 0 : index
    %c0_6 = arith.constant 0 : index
    %5 = vector.load %arg3[%c0_5, %c0_6] : memref<1x128xf32, #tpu.memory_space<vmem>>, vector<1x128xf32>
    %6 = vector.broadcast %5 : vector<1x128xf32> to vector<64x128xf32>
    %7 = arith.addf %4, %6 : vector<64x128xf32>
    %cst_7 = arith.constant 0.000000e+00 : f32
    %8 = vector.broadcast %cst_7 : f32 to vector<64x128xf32>
    %9 = arith.maximumf %7, %8 : vector<64x128xf32>
    %10 = vector.extract_strided_slice %9 {offsets = [0, 0], sizes = [16, 128], strides = [1, 1]} : vector<64x128xf32> to vector<16x128xf32>
    %11 = vector.extract_strided_slice %9 {offsets = [16, 0], sizes = [16, 128], strides = [1, 1]} : vector<64x128xf32> to vector<16x128xf32>
    %12 = arith.maximumf %10, %11 : vector<16x128xf32>
    %13 = vector.extract_strided_slice %9 {offsets = [32, 0], sizes = [16, 128], strides = [1, 1]} : vector<64x128xf32> to vector<16x128xf32>
    %14 = vector.extract_strided_slice %9 {offsets = [48, 0], sizes = [16, 128], strides = [1, 1]} : vector<64x128xf32> to vector<16x128xf32>
    %15 = arith.maximumf %13, %14 : vector<16x128xf32>
    %16 = arith.maximumf %12, %15 : vector<16x128xf32>
    %17 = arith.truncf %16 : vector<16x128xf32> to vector<16x128xbf16>
    %c0_8 = arith.constant 0 : index
    %c0_9 = arith.constant 0 : index
    %c0_10 = arith.constant 0 : index
    %18 = vector.load %arg4[%c0_8, %c0_9, %c0_10] : memref<1x16x128xbf16, #tpu.memory_space<vmem>>, vector<1x16x128xbf16>
    %19 = vector.shape_cast %18 : vector<1x16x128xbf16> to vector<16x128xbf16>
    %20 = vector.shape_cast %17 : vector<16x128xbf16> to vector<1x16x128xbf16>
    tpu.vector_store %arg4[%c0_8, %c0_9, %c0_10], %20 {strides = array<i32>} : memref<1x16x128xbf16, #tpu.memory_space<vmem>>, vector<1x16x128xbf16>,
    return
  }
  func.func @transform_0(%arg0: i32) -> (i32, i32, i32, i32) {
    %c0_i32 = arith.constant 0 : i32
    %c0_i32_0 = arith.constant 0 : i32
    %c0_i32_1 = arith.constant 0 : i32
    %c0_i32_2 = arith.constant 0 : i32
    return %arg0, %c0_i32, %c0_i32_0, %c0_i32_1 : i32, i32, i32, i32
  }
  func.func @transform_1(%arg0: i32) -> (i32, i32) {
    %c0_i32 = arith.constant 0 : i32
    %c0_i32_0 = arith.constant 0 : i32
    %c0_i32_1 = arith.constant 0 : i32
    return %c0_i32, %c0_i32_0 : i32, i32
  }
  func.func @transform_2(%arg0: i32) -> (i32, i32) {
    %c0_i32 = arith.constant 0 : i32
    %c0_i32_0 = arith.constant 0 : i32
    %c0_i32_1 = arith.constant 0 : i32
    return %c0_i32, %c0_i32_0 : i32, i32
  }
  func.func @transform_3(%arg0: i32) -> (i32, i32, i32) {
    %c0_i32 = arith.constant 0 : i32
    %c0_i32_0 = arith.constant 0 : i32
    %c0_i32_1 = arith.constant 0 : i32
    return %arg0, %c0_i32, %c0_i32_0 : i32, i32, i32
  }
}

module attributes {stable_mosaic.version = 11 : i64} {
  func.func @_classifier_kernel(%arg0: memref<2x2048xbf16, #tpu.memory_space<vmem>>, %arg1: memref<2048x128xbf16, #tpu.memory_space<vmem>>, %arg2: memref<1x128xf32, #tpu.memory_space<vmem>>, %arg3: memref<128x128xbf16, #tpu.memory_space<vmem>>, %arg4: memref<1x128xf32, #tpu.memory_space<vmem>>, %arg5: memref<2x128xf32, #tpu.memory_space<vmem>>) attributes {dimension_semantics = [], scalar_prefetch = 0 : i64, scratch_operands = 0 : i64, tpu.core_type = #tpu.core_type<tc>} {
    %c0 = arith.constant 0 : index
    %c0_0 = arith.constant 0 : index
    %0 = vector.load %arg0[%c0, %c0_0] : memref<2x2048xbf16, #tpu.memory_space<vmem>>, vector<2x2048xbf16>
    %c0_1 = arith.constant 0 : index
    %c0_2 = arith.constant 0 : index
    %1 = vector.load %arg1[%c0_1, %c0_2] : memref<2048x128xbf16, #tpu.memory_space<vmem>>, vector<2048x128xbf16>
    %cst = arith.constant dense<0.000000e+00> : vector<2x128xf32>
    %2 = tpu.matmul %0, %1, %cst {dimension_numbers = #tpu.dot_dimension_numbers<[1], [0], [0], [1], [0, 0, 1, 1], [], []>} : vector<2x2048xbf16>, vector<2048x128xbf16>, vector<2x128xf32> -> vector<2x128xf32>
    %c0_3 = arith.constant 0 : index
    %c0_4 = arith.constant 0 : index
    %3 = vector.load %arg2[%c0_3, %c0_4] : memref<1x128xf32, #tpu.memory_space<vmem>>, vector<1x128xf32>
    %4 = vector.broadcast %3 : vector<1x128xf32> to vector<2x128xf32>
    %5 = arith.addf %2, %4 : vector<2x128xf32>
    %cst_5 = arith.constant 0.000000e+00 : f32
    %6 = vector.broadcast %cst_5 : f32 to vector<2x128xf32>
    %7 = arith.maximumf %5, %6 : vector<2x128xf32>
    %8 = arith.truncf %7 : vector<2x128xf32> to vector<2x128xbf16>
    %c0_6 = arith.constant 0 : index
    %c0_7 = arith.constant 0 : index
    %9 = vector.load %arg3[%c0_6, %c0_7] : memref<128x128xbf16, #tpu.memory_space<vmem>>, vector<128x128xbf16>
    %cst_8 = arith.constant dense<0.000000e+00> : vector<2x128xf32>
    %10 = tpu.matmul %8, %9, %cst_8 {dimension_numbers = #tpu.dot_dimension_numbers<[1], [0], [0], [1], [0, 0, 1, 1], [], []>} : vector<2x128xbf16>, vector<128x128xbf16>, vector<2x128xf32> -> vector<2x128xf32>
    %c0_9 = arith.constant 0 : index
    %c0_10 = arith.constant 0 : index
    %11 = vector.load %arg4[%c0_9, %c0_10] : memref<1x128xf32, #tpu.memory_space<vmem>>, vector<1x128xf32>
    %12 = vector.broadcast %11 : vector<1x128xf32> to vector<2x128xf32>
    %13 = arith.addf %10, %12 : vector<2x128xf32>
    %c0_11 = arith.constant 0 : index
    %c0_12 = arith.constant 0 : index
    %14 = vector.load %arg5[%c0_11, %c0_12] : memref<2x128xf32, #tpu.memory_space<vmem>>, vector<2x128xf32>
    tpu.vector_store %arg5[%c0_11, %c0_12], %13 {strides = array<i32>} : memref<2x128xf32, #tpu.memory_space<vmem>>, vector<2x128xf32>,
    return
  }
}

</mosaic_0001>

<llo_original>
// kernel: cnn_forward.4
$region0: #{cnn_forward.4}
  #allocation0 [shape = 'u32[]', space=smem, size = 0x4, offset = 0x4, fixed_abs, tag = 'smem constant byte address 0x4 - core index']
  #allocation1 [shape = 'u32[144,128]{1,0:T(1,128)}', space=vmem, size = 0x12000, scoped, tag = 'internal scratch']
  %s0 = inlined_call_operand.vmem [shape: bf16[2,27,4096], index: 0, kind: input, shape index: {}]
  %s1 = inlined_call_operand.vmem [shape: bf16[16,27], index: 1, kind: input, shape index: {}]
  %s2 = inlined_call_operand.vmem [shape: f32[16,1], index: 2, kind: input, shape index: {}]
  %s3 = inlined_call_operand.vmem [shape: bf16[2,16,1024], index: 3, kind: output, shape index: {}]
  %s4 = sld [smem:[#allocation0]]
  $region45: #{cnn_forward.4} parent=0
    _
  %s6 = ssub.s32 1, %s4
  %s7 = scalar_select 0, %s6, %s4
  loop: start=0, step=1, limit=4
  $region2: #{cnn_forward.4} parent=0 // loop_pre_header
    _
  $region3: #{cnn_forward.4} parent=0 // loop_header
    %s9 = sphi 0, %s13
    %p10 = scmp.ge.s32.totalorder %s9, 4
    %s19 = sphi 0, %s21
    %s22 = sphi 0, %s19
    %s23 = sphi 0, %s22
    %s39 = sphi 0, %s23
    %s43 = sphi 0, %s43
    %s45 = sphi 0, %s43
    %s46 = sphi 0, %s45
    %s60 = sphi 0, %s46
    %s64 = sphi 0, %s64
    %s66 = sphi 0, %s64
    %s67 = sphi 0, %s66
    %s81 = sphi 0, %s67
    %s87 = sphi 0, %s89
    %s90 = sphi 0, %s87
    %s91 = sphi 0, %s90
    %s107 = sphi 0, %s91
  $region4: #{cnn_forward.4} parent=0 // loop_header_branch
    %12 = sbr.rel (%p10) target = $region8
  $region5: #{cnn_forward.4} parent=0 // loop_body
    %s14 = ssub.s32 %s9, 1
    %s15 = ssub.s32 %s9, 2
    %s16 = sadd.s32 %s9, 1
    %s17 = ssub.s32 %s9, %s16
    %p18 = scmp.eq.s32.totalorder %s17, 0
    %s20 = sadd.s32 %s19, 1
    %s21 = scalar_select %p18, %s19, %s20
    %p24 = pneg %p18
    %p25 = scmp.eq.s32.totalorder %s9, 1
    %p26 = por %p24, %p25
    %p27 = scmp.ne.s32.totalorder %s19, %s22
    %p28 = scmp.eq.s32.totalorder %s9, 0
    %p29 = por %p27, %p28
    %p30 = scmp.ne.s32.totalorder %s19, %s22
    %p31 = scmp.eq.s32.totalorder %s14, 1
    %p32 = por %p30, %p31
    %p33 = scmp.ne.s32.totalorder %s22, %s23
    %p34 = scmp.eq.s32.totalorder %s14, 0
    %p35 = por %p33, %p34
    %p36 = scmp.ne.s32.totalorder %s22, %s23
    %p37 = scmp.eq.s32.totalorder %s15, 1
    %p38 = por %p36, %p37
    %p40 = scmp.ne.s32.totalorder %s23, %s39
    %p41 = scmp.eq.s32.totalorder %s15, 0
    %p42 = por %p40, %p41
    %s44 = sadd.s32 %s43, 1
    %p47 = scmp.eq.s32.totalorder %s9, 1
    %p48 = scmp.ne.s32.totalorder %s43, %s45
    %p49 = scmp.eq.s32.totalorder %s9, 0
    %p50 = por %p48, %p49
    %p51 = scmp.ne.s32.totalorder %s43, %s45
    %p52 = scmp.eq.s32.totalorder %s14, 1
    %p53 = por %p51, %p52
    %p54 = scmp.ne.s32.totalorder %s45, %s46
    %p55 = scmp.eq.s32.totalorder %s14, 0
    %p56 = por %p54, %p55
    %p57 = scmp.ne.s32.totalorder %s45, %s46
    %p58 = scmp.eq.s32.totalorder %s15, 1
    %p59 = por %p57, %p58
    %p61 = scmp.ne.s32.totalorder %s46, %s60
    %p62 = scmp.eq.s32.totalorder %s15, 0
    %p63 = por %p61, %p62
    %s65 = sadd.s32 %s64, 1
    %p68 = scmp.eq.s32.totalorder %s9, 1
    %p69 = scmp.ne.s32.totalorder %s64, %s66
    %p70 = scmp.eq.s32.totalorder %s9, 0
    %p71 = por %p69, %p70
    %p72 = scmp.ne.s32.totalorder %s64, %s66
    %p73 = scmp.eq.s32.totalorder %s14, 1
    %p74 = por %p72, %p73
    %p75 = scmp.ne.s32.totalorder %s66, %s67
    %p76 = scmp.eq.s32.totalorder %s14, 0
    %p77 = por %p75, %p76
    %p78 = scmp.ne.s32.totalorder %s66, %s67
    %p79 = scmp.eq.s32.totalorder %s15, 1
    %p80 = por %p78, %p79
    %p82 = scmp.ne.s32.totalorder %s67, %s81
    %p83 = scmp.eq.s32.totalorder %s15, 0
    %p84 = por %p82, %p83
    %s85 = ssub.s32 %s9, %s16
    %p86 = scmp.eq.s32.totalorder %s85, 0
    %s88 = sadd.s32 %s87, 1
    %s89 = scalar_select %p86, %s87, %s88
    %p92 = pneg %p86
    %p93 = scmp.eq.s32.totalorder %s9, 1
    %p94 = por %p92, %p93
    %p95 = scmp.ne.s32.totalorder %s87, %s90
    %p96 = scmp.eq.s32.totalorder %s9, 0
    %p97 = por %p95, %p96
    %p98 = scmp.ne.s32.totalorder %s87, %s90
    %p99 = scmp.eq.s32.totalorder %s14, 1
    %p100 = por %p98, %p99
    %p101 = scmp.ne.s32.totalorder %s90, %s91
    %p102 = scmp.eq.s32.totalorder %s14, 0
    %p103 = por %p101, %p102
    %p104 = scmp.ne.s32.totalorder %s90, %s91
    %p105 = scmp.eq.s32.totalorder %s15, 1
    %p106 = por %p104, %p105
    %p108 = scmp.ne.s32.totalorder %s91, %s107
    %p109 = scmp.eq.s32.totalorder %s15, 0
    %p110 = por %p108, %p109
    %p111 = scmp.le.s32.totalorder 1, %s9
    %p112 = scmp.lt.s32.totalorder %s9, 3
    %p113 = pnand %p111, %p112
    %p114 = pneg %p113
    // Predicated region
    $region9: #{cnn_forward.4} parent=5 // pred_check
      _
    $region10: #{cnn_forward.4} parent=5 // pred_check_branch
      %116 = sbr.rel (%p113) target = $region12
    $region11: #{cnn_forward.4} parent=5 // pred_region
      %s117 = ssub.s32 %s9, 1
      // Predicated region
      $region13: #{cnn_forward.4} parent=11 // pred_check
        %p118 = pneg %p56
      $region14: #{cnn_forward.4} parent=11 // pred_check_branch
        %120 = sbr.rel (%p118) target = $region16
      $region15: #{cnn_forward.4} parent=11 // pred_region
        _
      $region16: #{cnn_forward.4} parent=11 // pred_fallthru
        _
      // Predicated region
      $region17: #{cnn_forward.4} parent=11 // pred_check
        %p121 = pneg %p77
      $region18: #{cnn_forward.4} parent=11 // pred_check_branch
        %123 = sbr.rel (%p121) target = $region20
      $region19: #{cnn_forward.4} parent=11 // pred_region
        _
      $region20: #{cnn_forward.4} parent=11 // pred_fallthru
        _
    $region12: #{cnn_forward.4} parent=5 // pred_fallthru
      _
    %p124 = scmp.lt.s32.totalorder %s9, 2
    // Predicated region
    $region21: #{cnn_forward.4} parent=5 // pred_check
      %p125 = pneg %p124
    $region22: #{cnn_forward.4} parent=5 // pred_check_branch
      %127 = sbr.rel (%p125) target = $region24
    $region23: #{cnn_forward.4} parent=5 // pred_region
      // Predicated region
      $region25: #{cnn_forward.4} parent=23 // pred_check
        %p128 = pneg %p29
      $region26: #{cnn_forward.4} parent=23 // pred_check_branch
        %130 = sbr.rel (%p128) target = $region28
      $region27: #{cnn_forward.4} parent=23 // pred_region
        %p131 = scmp.lt.s32.totalorder %s9, 1
        %s132 = scalar_select %p131, %s9, 1
        %s133 = smul.addr %s132, 128
        %s134 = smul.addr %s133, 4
        %s135 = scalar_lea.vmem %s0, %s134
      $region28: #{cnn_forward.4} parent=23 // pred_fallthru
        _
    $region24: #{cnn_forward.4} parent=5 // pred_fallthru
      _
    %p136 = scmp.le.s32.totalorder 1, %s9
    %p137 = scmp.lt.s32.totalorder %s9, 3
    %p138 = pnand %p136, %p137
    %p139 = pneg %p138
    // Predicated region
    $region29: #{cnn_forward.4} parent=5 // pred_check
      _
    $region30: #{cnn_forward.4} parent=5 // pred_check_branch
      %141 = sbr.rel (%p138) target = $region32
    $region31: #{cnn_forward.4} parent=5 // pred_region
      %s142 = ssub.s32 %s9, 1
      %p143 = scmp.lt.s32.totalorder %s14, 1
      %s144 = scalar_select %p143, %s14, 1
      %s145 = smul.addr %s144, 128
      %s146 = smul.addr %s145, 4
      %s147 = scalar_lea.vmem %s0, %s146
      %p148 = pneg %p35
      %p149 = pneg %p32
      %p150 = pneg %p56
      %p151 = pneg %p53
      %p152 = pneg %p77
      %p153 = pneg %p74
      %p154 = pneg %p103
      %p155 = pneg %p100
      %p156 = scmp.lt.s32.totalorder %s14, 1
      %s157 = scalar_select %p156, %s14, 1
      %s158 = smul.addr %s157, 16
      %s159 = smul.addr %s158, 4
      %s160 = scalar_lea.vmem %s3, %s159
      %p161 = scmp.lt.s32.totalorder %s14, 1
      %s162 = scalar_select %p161, %s14, 1
      %s163 = smul.addr %s162, 128
      %s164 = smul.addr %s163, 4
      %s165 = scalar_lea.vmem %s0, %s164
      %p166 = scmp.lt.s32.totalorder %s14, 1
      %s167 = scalar_select %p166, %s14, 1
      %s168 = smul.addr %s167, 16
      %s169 = smul.addr %s168, 4
      %s170 = scalar_lea.vmem %s3, %s169
      %v172 = vld [vmem:[%s1] sm:$0xf]
      %v173 = vld [vmem:[%s1 + $0x4] sm:$0xf]
      %v174 = vld [vmem:[%s165] sm:$0xff]
      %v175 = vld [vmem:[%s165 + $0x8] sm:$0xff]
      %v176 = vld [vmem:[%s165 + $0x10] sm:$0xff]
      %v177 = vld [vmem:[%s165 + $0x18] sm:$0xff]
      %v178 = vld [vmem:[%s165 + $0x20] sm:$0xff]
      %v179 = vld [vmem:[%s165 + $0x28] sm:$0xff]
      %v180 = vld [vmem:[%s165 + $0x30] sm:$0xff]
      %v181 = vld [vmem:[%s165 + $0x38] sm:$0xff]
      %v182 = vld [vmem:[%s165 + $0x40] sm:$0xff]
      %v183 = vld [vmem:[%s165 + $0x48] sm:$0xff]
      %v184 = vld [vmem:[%s165 + $0x50] sm:$0xff]
      %v185 = vld [vmem:[%s165 + $0x58] sm:$0xff]
      %v186 = vld [vmem:[%s165 + $0x60] sm:$0xff]
      %v187 = vld [vmem:[%s165 + $0x68] sm:$0xff]
      %v188 = vld [vmem:[%s165 + $0x70] sm:$0xff]
      %v189 = vld [vmem:[%s165 + $0x78] sm:$0xff]
      %v190 = vld [vmem:[%s165 + $0x80] sm:$0xff]
      %v191 = vld [vmem:[%s165 + $0x88] sm:$0xff]
      %v192 = vld [vmem:[%s165 + $0x90] sm:$0xff]
      %v193 = vld [vmem:[%s165 + $0x98] sm:$0xff]
      %v194 = vld [vmem:[%s165 + $0xa0] sm:$0xff]
      %v195 = vld [vmem:[%s165 + $0xa8] sm:$0xff]
      %v196 = vld [vmem:[%s165 + $0xb0] sm:$0xff]
      %v197 = vld [vmem:[%s165 + $0xb8] sm:$0xff]
      %v198 = vld [vmem:[%s165 + $0xc0] sm:$0xff]
      %v199 = vld [vmem:[%s165 + $0xc8] sm:$0xff]
      %v200 = vld [vmem:[%s165 + $0xd0] sm:$0xff]
      %v201 = vld [vmem:[%s165 + $0xd8] sm:$0xff]
      %v202 = vld [vmem:[%s165 + $0xe0] sm:$0xff]
      %v203 = vld [vmem:[%s165 + $0xe8] sm:$0xff]
      %v204 = vld [vmem:[%s165 + $0xf0] sm:$0xff]
      %v205 = vld [vmem:[%s165 + $0xf8] sm:$0xff]
      %v206 = vld [vmem:[%s165 + $0x100] sm:$0xff]
      %v207 = vld [vmem:[%s165 + $0x108] sm:$0xff]
      %v208 = vld [vmem:[%s165 + $0x110] sm:$0xff]
      %v209 = vld [vmem:[%s165 + $0x118] sm:$0xff]
      %v210 = vld [vmem:[%s165 + $0x120] sm:$0xff]
      %v211 = vld [vmem:[%s165 + $0x128] sm:$0xff]
      %v212 = vld [vmem:[%s165 + $0x130] sm:$0xff]
      %v213 = vld [vmem:[%s165 + $0x138] sm:$0xff]
      %v214 = vld [vmem:[%s165 + $0x140] sm:$0xff]
      %v215 = vld [vmem:[%s165 + $0x148] sm:$0xff]
      %v216 = vld [vmem:[%s165 + $0x150] sm:$0xff]
      %v217 = vld [vmem:[%s165 + $0x158] sm:$0xff]
      %v218 = vld [vmem:[%s165 + $0x160] sm:$0xff]
      %v219 = vld [vmem:[%s165 + $0x168] sm:$0xff]
      %v220 = vld [vmem:[%s165 + $0x170] sm:$0xff]
      %v221 = vld [vmem:[%s165 + $0x178] sm:$0xff]
      %v222 = vld [vmem:[%s165 + $0x180] sm:$0x33]
      %v223 = vld [vmem:[%s165 + $0x188] sm:$0x33]
      %v224 = vld [vmem:[%s165 + $0x190] sm:$0x33]
      %v225 = vld [vmem:[%s165 + $0x198] sm:$0x33]
      %v226 = vld [vmem:[%s165 + $0x1a0] sm:$0x33]
      %v227 = vld [vmem:[%s165 + $0x1a8] sm:$0x33]
      %v228 = vld [vmem:[%s165 + $0x1b0] sm:$0x33]
      %v229 = vld [vmem:[%s165 + $0x1b8] sm:$0x33]
      %v230 = vld [vmem:[%s165 + $0x1c0] sm:$0x33]
      %v231 = vld [vmem:[%s165 + $0x1c8] sm:$0x33]
      %v232 = vld [vmem:[%s165 + $0x1d0] sm:$0x33]
      %v233 = vld [vmem:[%s165 + $0x1d8] sm:$0x33]
      %v234 = vld [vmem:[%s165 + $0x1e0] sm:$0x33]
      %v235 = vld [vmem:[%s165 + $0x1e8] sm:$0x33]
      %v236 = vld [vmem:[%s165 + $0x1f0] sm:$0x33]
      %v237 = vld [vmem:[%s165 + $0x1f8] sm:$0x33]
      %v238 = vld [vmem:[%s2] sm:$0xff]
      %v239 = vld [vmem:[%s2 + $0x8] sm:$0xff]
      %241 = vset.pattern.permute.xlu0 0
      %242 = vperm.xlu0 %241, %v238
      %v243 = vpop.permute.xlu0 %242
      %246 = vset.pattern.permute.xlu0 0
      %247 = vperm.xlu0 %246, %v239
      %v248 = vpop.permute.xlu0 %247
      %v252 = vunpack.c.l.b16 %v172
      %v253 = vunpack.c.l.b16 %v173
      %v254 = vpack.c.b16 %v253, %v252
      %v319 = vunpack.c.l.b16 %v174
      %v320 = vunpack.c.h.b16 %v174
      %v321 = vunpack.c.l.b16 %v175
      %v322 = vunpack.c.h.b16 %v175
      %v323 = vunpack.c.l.b16 %v176
      %v324 = vunpack.c.h.b16 %v176
      %v325 = vunpack.c.l.b16 %v177
      %v326 = vunpack.c.h.b16 %v177
      %v327 = vunpack.c.l.b16 %v178
      %v328 = vunpack.c.h.b16 %v178
      %v329 = vunpack.c.l.b16 %v179
      %v330 = vunpack.c.h.b16 %v179
      %v331 = vunpack.c.l.b16 %v180
      %v332 = vunpack.c.h.b16 %v180
      %v333 = vunpack.c.l.b16 %v181
      %v334 = vunpack.c.h.b16 %v181
      %v335 = vunpack.c.l.b16 %v182
      %v336 = vunpack.c.h.b16 %v182
      %v337 = vunpack.c.l.b16 %v183
      %v338 = vunpack.c.h.b16 %v183
      %v339 = vunpack.c.l.b16 %v184
      %v340 = vunpack.c.h.b16 %v184
      %v341 = vunpack.c.l.b16 %v185
      %v342 = vunpack.c.h.b16 %v185
      %v343 = vunpack.c.l.b16 %v186
      %v344 = vunpack.c.h.b16 %v186
      %v345 = vunpack.c.l.b16 %v187
      %v346 = vunpack.c.h.b16 %v187
      %v347 = vunpack.c.l.b16 %v188
      %v348 = vunpack.c.h.b16 %v188
      %v349 = vunpack.c.l.b16 %v189
      %v350 = vunpack.c.h.b16 %v189
      %v351 = vunpack.c.l.b16 %v190
      %v352 = vunpack.c.h.b16 %v190
      %v353 = vunpack.c.l.b16 %v191
      %v354 = vunpack.c.h.b16 %v191
      %v355 = vunpack.c.l.b16 %v192
      %v356 = vunpack.c.h.b16 %v192
      %v357 = vunpack.c.l.b16 %v193
      %v358 = vunpack.c.h.b16 %v193
      %v359 = vunpack.c.l.b16 %v194
      %v360 = vunpack.c.h.b16 %v194
      %v361 = vunpack.c.l.b16 %v195
      %v362 = vunpack.c.h.b16 %v195
      %v363 = vunpack.c.l.b16 %v196
      %v364 = vunpack.c.h.b16 %v196
      %v365 = vunpack.c.l.b16 %v197
      %v366 = vunpack.c.h.b16 %v197
      %v367 = vunpack.c.l.b16 %v198
      %v368 = vunpack.c.h.b16 %v198
      %v369 = vunpack.c.l.b16 %v199
      %v370 = vunpack.c.h.b16 %v199
      %v371 = vunpack.c.l.b16 %v200
      %v372 = vunpack.c.h.b16 %v200
      %v373 = vunpack.c.l.b16 %v201
      %v374 = vunpack.c.h.b16 %v201
      %v375 = vunpack.c.l.b16 %v202
      %v376 = vunpack.c.h.b16 %v202
      %v377 = vunpack.c.l.b16 %v203
      %v378 = vunpack.c.h.b16 %v203
      %v379 = vunpack.c.l.b16 %v204
      %v380 = vunpack.c.h.b16 %v204
      %v381 = vunpack.c.l.b16 %v205
      %v382 = vunpack.c.h.b16 %v205
      %v383 = vunpack.c.l.b16 %v206
      %v384 = vunpack.c.h.b16 %v206
      %v385 = vunpack.c.l.b16 %v207
      %v386 = vunpack.c.h.b16 %v207
      %v387 = vunpack.c.l.b16 %v208
      %v388 = vunpack.c.h.b16 %v208
      %v389 = vunpack.c.l.b16 %v209
      %v390 = vunpack.c.h.b16 %v209
      %v391 = vunpack.c.l.b16 %v210
      %v392 = vunpack.c.h.b16 %v210
      %v393 = vunpack.c.l.b16 %v211
      %v394 = vunpack.c.h.b16 %v211
      %v395 = vunpack.c.l.b16 %v212
      %v396 = vunpack.c.h.b16 %v212
      %v397 = vunpack.c.l.b16 %v213
      %v398 = vunpack.c.h.b16 %v213
      %v399 = vunpack.c.l.b16 %v214
      %v400 = vunpack.c.h.b16 %v214
      %v401 = vunpack.c.l.b16 %v215
      %v402 = vunpack.c.h.b16 %v215
      %v403 = vunpack.c.l.b16 %v216
      %v404 = vunpack.c.h.b16 %v216
      %v405 = vunpack.c.l.b16 %v217
      %v406 = vunpack.c.h.b16 %v217
      %v407 = vunpack.c.l.b16 %v218
      %v408 = vunpack.c.h.b16 %v218
      %v409 = vunpack.c.l.b16 %v219
      %v410 = vunpack.c.h.b16 %v219
      %v411 = vunpack.c.l.b16 %v220
      %v412 = vunpack.c.h.b16 %v220
      %v413 = vunpack.c.l.b16 %v221
      %v414 = vunpack.c.h.b16 %v221
      %v415 = vunpack.c.l.b16 %v222
      %v416 = vunpack.c.h.b16 %v222
      %v417 = vunpack.c.l.b16 %v223
      %v418 = vunpack.c.h.b16 %v223
      %v419 = vunpack.c.l.b16 %v224
      %v420 = vunpack.c.h.b16 %v224
      %v421 = vunpack.c.l.b16 %v225
      %v422 = vunpack.c.h.b16 %v225
      %v423 = vunpack.c.l.b16 %v226
      %v424 = vunpack.c.h.b16 %v226
      %v425 = vunpack.c.l.b16 %v227
      %v426 = vunpack.c.h.b16 %v227
      %v427 = vunpack.c.l.b16 %v228
      %v428 = vunpack.c.h.b16 %v228
      %v429 = vunpack.c.l.b16 %v229
      %v430 = vunpack.c.h.b16 %v229
      %v431 = vunpack.c.l.b16 %v230
      %v432 = vunpack.c.h.b16 %v230
      %v433 = vunpack.c.l.b16 %v231
      %v434 = vunpack.c.h.b16 %v231
      %v435 = vunpack.c.l.b16 %v232
      %v436 = vunpack.c.h.b16 %v232
      %v437 = vunpack.c.l.b16 %v233
      %v438 = vunpack.c.h.b16 %v233
      %v439 = vunpack.c.l.b16 %v234
      %v440 = vunpack.c.h.b16 %v234
      %v441 = vunpack.c.l.b16 %v235
      %v442 = vunpack.c.h.b16 %v235
      %v443 = vunpack.c.l.b16 %v236
      %v444 = vunpack.c.h.b16 %v236
      %v445 = vunpack.c.l.b16 %v237
      %v446 = vunpack.c.h.b16 %v237
      %v447 = vpack.c.b16 %v351, %v319
      %v448 = vpack.c.b16 %v352, %v320
      %v449 = vpack.c.b16 %v353, %v321
      %v450 = vpack.c.b16 %v354, %v322
      %v451 = vpack.c.b16 %v355, %v323
      %v452 = vpack.c.b16 %v356, %v324
      %v453 = vpack.c.b16 %v357, %v325
      %v454 = vpack.c.b16 %v358, %v326
      %v455 = vpack.c.b16 %v359, %v327
      %v456 = vpack.c.b16 %v360, %v328
      %v457 = vpack.c.b16 %v361, %v329
      %v458 = vpack.c.b16 %v362, %v330
      %v459 = vpack.c.b16 %v363, %v331
      %v460 = vpack.c.b16 %v364, %v332
      %v461 = vpack.c.b16 %v365, %v333
      %v462 = vpack.c.b16 %v366, %v334
      %v463 = vpack.c.b16 %v367, %v335
      %v464 = vpack.c.b16 %v368, %v336
      %v465 = vpack.c.b16 %v369, %v337
      %v466 = vpack.c.b16 %v370, %v338
      %v467 = vpack.c.b16 %v371, %v339
      %v468 = vpack.c.b16 %v372, %v340
      %v469 = vpack.c.b16 %v373, %v341
      %v470 = vpack.c.b16 %v374, %v342
      %v471 = vpack.c.b16 %v375, %v343
      %v472 = vpack.c.b16 %v376, %v344
      %v473 = vpack.c.b16 %v377, %v345
      %v474 = vpack.c.b16 %v378, %v346
      %v475 = vpack.c.b16 %v379, %v347
      %v476 = vpack.c.b16 %v380, %v348
      %v477 = vpack.c.b16 %v381, %v349
      %v478 = vpack.c.b16 %v382, %v350
      %v479 = vpack.c.b16 %v415, %v383
      %v480 = vpack.c.b16 %v416, %v384
      %v481 = vpack.c.b16 %v417, %v385
      %v482 = vpack.c.b16 %v418, %v386
      %v483 = vpack.c.b16 %v419, %v387
      %v484 = vpack.c.b16 %v420, %v388
      %v485 = vpack.c.b16 %v421, %v389
      %v486 = vpack.c.b16 %v422, %v390
      %v487 = vpack.c.b16 %v423, %v391
      %v488 = vpack.c.b16 %v424, %v392
      %v489 = vpack.c.b16 %v425, %v393
      %v490 = vpack.c.b16 %v426, %v394
      %v491 = vpack.c.b16 %v427, %v395
      %v492 = vpack.c.b16 %v428, %v396
      %v493 = vpack.c.b16 %v429, %v397
      %v494 = vpack.c.b16 %v430, %v398
      %v495 = vpack.c.b16 %v431, %v399
      %v496 = vpack.c.b16 %v432, %v400
      %v497 = vpack.c.b16 %v433, %v401
      %v498 = vpack.c.b16 %v434, %v402
      %v499 = vpack.c.b16 %v435, %v403
      %v500 = vpack.c.b16 %v436, %v404
      %v501 = vpack.c.b16 %v437, %v405
      %v502 = vpack.c.b16 %v438, %v406
      %v503 = vpack.c.b16 %v439, %v407
      %v504 = vpack.c.b16 %v440, %v408
      %v505 = vpack.c.b16 %v441, %v409
      %v506 = vpack.c.b16 %v442, %v410
      %v507 = vpack.c.b16 %v443, %v411
      %v508 = vpack.c.b16 %v444, %v412
      %v509 = vpack.c.b16 %v445, %v413
      %v510 = vpack.c.b16 %v446, %v414
      %vm543 = vcmask 220160
      %v545 = vsel %vm543, %v254, 0
      %vm547 = vcmask 1044480
      %vm548 = vcmask 1045504
      %v549 = vsel %vm547, 4294967295, 65535
      %v550 = vsel %vm548, %v549, 0
      %v552 = vand.u32 %v479, %v550
      %v555 = vand.u32 %v480, %v550
      %v558 = vand.u32 %v481, %v550
      %v561 = vand.u32 %v482, %v550
      %v564 = vand.u32 %v483, %v550
      %v567 = vand.u32 %v484, %v550
      %v570 = vand.u32 %v485, %v550
      %v573 = vand.u32 %v486, %v550
      %v576 = vand.u32 %v487, %v550
      %v579 = vand.u32 %v488, %v550
      %v582 = vand.u32 %v489, %v550
      %v585 = vand.u32 %v490, %v550
      %v588 = vand.u32 %v491, %v550
      %v591 = vand.u32 %v492, %v550
      %v594 = vand.u32 %v493, %v550
      %v597 = vand.u32 %v494, %v550
      %v600 = vand.u32 %v495, %v550
      %v603 = vand.u32 %v496, %v550
      %v606 = vand.u32 %v497, %v550
      %v609 = vand.u32 %v498, %v550
      %v612 = vand.u32 %v499, %v550
      %v615 = vand.u32 %v500, %v550
      %v618 = vand.u32 %v501, %v550
      %v621 = vand.u32 %v502, %v550
      %v624 = vand.u32 %v503, %v550
      %v627 = vand.u32 %v504, %v550
      %v630 = vand.u32 %v505, %v550
      %v633 = vand.u32 %v506, %v550
      %v636 = vand.u32 %v507, %v550
      %v639 = vand.u32 %v508, %v550
      %v642 = vand.u32 %v509, %v550
      %v645 = vand.u32 %v510, %v550
      %647 = vmatprep.subr.bf16.mxu0 0
      %648 = vmatpush1.bf16.msra.mxu0 0
      %649 = vmatprep.subr.bf16.mxu0 0
      %650 = vmatpush1.bf16.msra.mxu0 0
      %651 = vmatprep.subr.bf16.mxu0 0
      %652 = vmatpush1.bf16.msra.mxu0 0
      %653 = vmatprep.subr.bf16.mxu0 0
      %654 = vmatpush1.bf16.msra.mxu0 0
      %655 = vmatprep.subr.bf16.mxu0 0
      %656 = vmatpush1.bf16.msra.mxu0 0
      %657 = vmatprep.subr.bf16.mxu0 0
      %658 = vmatpush1.bf16.msra.mxu0 0
      %659 = vmatprep.subr.bf16.mxu0 %v555
      %660 = vmatpush1.bf16.msra.mxu0 %v552
      %661 = vmatprep.subr.bf16.mxu0 %v448
      %662 = vmatpush1.bf16.msra.mxu0 %v447
      %663 = vmatprep.subr.bf16.mxu0 0
      %664 = vmatpush2.bf16.msra.mxu0 0
      %665 = vmatprep.subr.bf16.mxu0 0
      %666 = vmatpush2.bf16.msra.mxu0 0
      %667 = vmatprep.subr.bf16.mxu0 0
      %668 = vmatpush2.bf16.msra.mxu0 0
      %669 = vmatprep.subr.bf16.mxu0 0
      %670 = vmatpush2.bf16.msra.mxu0 0
      %671 = vmatprep.subr.bf16.mxu0 0
      %672 = vmatpush2.bf16.msra.mxu0 0
      %673 = vmatprep.subr.bf16.mxu0 0
      %674 = vmatpush2.bf16.msra.mxu0 0
      %675 = vmatprep.subr.bf16.mxu0 0
      %676 = vmatpush2.bf16.msra.mxu0 0
      %677 = vmatprep.subr.bf16.mxu0 0
      %678 = vmatpush2.bf16.msra.mxu0 0
      %679 = vmatprep.mubr.bf16.mxu0 0
      %680 = vmatmul.mubr.bf16.gmra.mxu0 %v545
      %v681 = vpop.f32.mrf.mxu0
      %v682 = vadd.f32 %v243, %v681
      %v683 = vpop.f32.mrf.mxu0
      %v684 = vadd.f32 %v243, %v683
      %v685 = vpop.f32.mrf.mxu0
      %v686 = vadd.f32 %v248, %v685
      %v687 = vpop.f32.mrf.mxu0
      %v688 = vadd.f32 %v248, %v687
      %689 = vdwg.mxu0
      %690 = vmatprep.subr.bf16.mxu0 0
      %691 = vmatpush1.bf16.msra.mxu0 0
      %692 = vmatprep.subr.bf16.mxu0 0
      %693 = vmatpush1.bf16.msra.mxu0 0
      %694 = vmatprep.subr.bf16.mxu0 0
      %695 = vmatpush1.bf16.msra.mxu0 0
      %696 = vmatprep.subr.bf16.mxu0 0
      %697 = vmatpush1.bf16.msra.mxu0 0
      %698 = vmatprep.subr.bf16.mxu0 0
      %699 = vmatpush1.bf16.msra.mxu0 0
      %700 = vmatprep.subr.bf16.mxu0 0
      %701 = vmatpush1.bf16.msra.mxu0 0
      %702 = vmatprep.subr.bf16.mxu0 %v561
      %703 = vmatpush1.bf16.msra.mxu0 %v558
      %704 = vmatprep.subr.bf16.mxu0 %v450
      %705 = vmatpush1.bf16.msra.mxu0 %v449
      %706 = vmatprep.subr.bf16.mxu0 0
      %707 = vmatpush2.bf16.msra.mxu0 0
      %708 = vmatprep.subr.bf16.mxu0 0
      %709 = vmatpush2.bf16.msra.mxu0 0
      %710 = vmatprep.subr.bf16.mxu0 0
      %711 = vmatpush2.bf16.msra.mxu0 0
      %712 = vmatprep.subr.bf16.mxu0 0
      %713 = vmatpush2.bf16.msra.mxu0 0
      %714 = vmatprep.subr.bf16.mxu0 0
      %715 = vmatpush2.bf16.msra.mxu0 0
      %716 = vmatprep.subr.bf16.mxu0 0
      %717 = vmatpush2.bf16.msra.mxu0 0
      %718 = vmatprep.subr.bf16.mxu0 0
      %719 = vmatpush2.bf16.msra.mxu0 0
      %720 = vmatprep.subr.bf16.mxu0 0
      %721 = vmatpush2.bf16.msra.mxu0 0
      %722 = vmatprep.mubr.bf16.mxu0 0
      %723 = vmatmul.mubr.bf16.gmra.mxu0 %v545
      %v724 = vpop.f32.mrf.mxu0
      %v725 = vadd.f32 %v243, %v724
      %v726 = vpop.f32.mrf.mxu0
      %v727 = vadd.f32 %v243, %v726
      %v728 = vpop.f32.mrf.mxu0
      %v729 = vadd.f32 %v248, %v728
      %v730 = vpop.f32.mrf.mxu0
      %v731 = vadd.f32 %v248, %v730
      %732 = vdwg.mxu0
      %733 = vmatprep.subr.bf16.mxu0 0
      %734 = vmatpush1.bf16.msra.mxu0 0
      %735 = vmatprep.subr.bf16.mxu0 0
      %736 = vmatpush1.bf16.msra.mxu0 0
      %737 = vmatprep.subr.bf16.mxu0 0
      %738 = vmatpush1.bf16.msra.mxu0 0
      %739 = vmatprep.subr.bf16.mxu0 0
      %740 = vmatpush1.bf16.msra.mxu0 0
      %741 = vmatprep.subr.bf16.mxu0 0
      %742 = vmatpush1.bf16.msra.mxu0 0
      %743 = vmatprep.subr.bf16.mxu0 0
      %744 = vmatpush1.bf16.msra.mxu0 0
      %745 = vmatprep.subr.bf16.mxu0 %v567
      %746 = vmatpush1.bf16.msra.mxu0 %v564
      %747 = vmatprep.subr.bf16.mxu0 %v452
      %748 = vmatpush1.bf16.msra.mxu0 %v451
      %749 = vmatprep.subr.bf16.mxu0 0
      %750 = vmatpush2.bf16.msra.mxu0 0
      %751 = vmatprep.subr.bf16.mxu0 0
      %752 = vmatpush2.bf16.msra.mxu0 0
      %753 = vmatprep.subr.bf16.mxu0 0
      %754 = vmatpush2.bf16.msra.mxu0 0
      %755 = vmatprep.subr.bf16.mxu0 0
      %756 = vmatpush2.bf16.msra.mxu0 0
      %757 = vmatprep.subr.bf16.mxu0 0
      %758 = vmatpush2.bf16.msra.mxu0 0
      %759 = vmatprep.subr.bf16.mxu0 0
      %760 = vmatpush2.bf16.msra.mxu0 0
      %761 = vmatprep.subr.bf16.mxu0 0
      %762 = vmatpush2.bf16.msra.mxu0 0
      %763 = vmatprep.subr.bf16.mxu0 0
      %764 = vmatpush2.bf16.msra.mxu0 0
      %765 = vmatprep.mubr.bf16.mxu0 0
      %766 = vmatmul.mubr.bf16.gmra.mxu0 %v545
      %v767 = vpop.f32.mrf.mxu0
      %v768 = vadd.f32 %v243, %v767
      %v769 = vpop.f32.mrf.mxu0
      %v770 = vadd.f32 %v243, %v769
      %v771 = vpop.f32.mrf.mxu0
      %v772 = vadd.f32 %v248, %v771
      %v773 = vpop.f32.mrf.mxu0
      %v774 = vadd.f32 %v248, %v773
      %775 = vdwg.mxu0
      %776 = vmatprep.subr.bf16.mxu0 0
      %777 = vmatpush1.bf16.msra.mxu0 0
      %778 = vmatprep.subr.bf16.mxu0 0
      %779 = vmatpush1.bf16.msra.mxu0 0
      %780 = vmatprep.subr.bf16.mxu0 0
      %781 = vmatpush1.bf16.msra.mxu0 0
      %782 = vmatprep.subr.bf16.mxu0 0
      %783 = vmatpush1.bf16.msra.mxu0 0
      %784 = vmatprep.subr.bf16.mxu0 0
      %785 = vmatpush1.bf16.msra.mxu0 0
      %786 = vmatprep.subr.bf16.mxu0 0
      %787 = vmatpush1.bf16.msra.mxu0 0
      %788 = vmatprep.subr.bf16.mxu0 %v573
      %789 = vmatpush1.bf16.msra.mxu0 %v570
      %790 = vmatprep.subr.bf16.mxu0 %v454
      %791 = vmatpush1.bf16.msra.mxu0 %v453
      %792 = vmatprep.subr.bf16.mxu0 0
      %793 = vmatpush2.bf16.msra.mxu0 0
      %794 = vmatprep.subr.bf16.mxu0 0
      %795 = vmatpush2.bf16.msra.mxu0 0
      %796 = vmatprep.subr.bf16.mxu0 0
      %797 = vmatpush2.bf16.msra.mxu0 0
      %798 = vmatprep.subr.bf16.mxu0 0
      %799 = vmatpush2.bf16.msra.mxu0 0
      %800 = vmatprep.subr.bf16.mxu0 0
      %801 = vmatpush2.bf16.msra.mxu0 0
      %802 = vmatprep.subr.bf16.mxu0 0
      %803 = vmatpush2.bf16.msra.mxu0 0
      %804 = vmatprep.subr.bf16.mxu0 0
      %805 = vmatpush2.bf16.msra.mxu0 0
      %806 = vmatprep.subr.bf16.mxu0 0
      %807 = vmatpush2.bf16.msra.mxu0 0
      %808 = vmatprep.mubr.bf16.mxu0 0
      %809 = vmatmul.mubr.bf16.gmra.mxu0 %v545
      %v810 = vpop.f32.mrf.mxu0
      %v811 = vadd.f32 %v243, %v810
      %v812 = vpop.f32.mrf.mxu0
      %v813 = vadd.f32 %v243, %v812
      %v814 = vpop.f32.mrf.mxu0
      %v815 = vadd.f32 %v248, %v814
      %v816 = vpop.f32.mrf.mxu0
      %v817 = vadd.f32 %v248, %v816
      %818 = vdwg.mxu0
      %819 = vmatprep.subr.bf16.mxu0 0
      %820 = vmatpush1.bf16.msra.mxu0 0
      %821 = vmatprep.subr.bf16.mxu0 0
      %822 = vmatpush1.bf16.msra.mxu0 0
      %823 = vmatprep.subr.bf16.mxu0 0
      %824 = vmatpush1.bf16.msra.mxu0 0
      %825 = vmatprep.subr.bf16.mxu0 0
      %826 = vmatpush1.bf16.msra.mxu0 0
      %827 = vmatprep.subr.bf16.mxu0 0
      %828 = vmatpush1.bf16.msra.mxu0 0
      %829 = vmatprep.subr.bf16.mxu0 0
      %830 = vmatpush1.bf16.msra.mxu0 0
      %831 = vmatprep.subr.bf16.mxu0 %v579
      %832 = vmatpush1.bf16.msra.mxu0 %v576
      %833 = vmatprep.subr.bf16.mxu0 %v456
      %834 = vmatpush1.bf16.msra.mxu0 %v455
      %835 = vmatprep.subr.bf16.mxu0 0
      %836 = vmatpush2.bf16.msra.mxu0 0
      %837 = vmatprep.subr.bf16.mxu0 0
      %838 = vmatpush2.bf16.msra.mxu0 0
      %839 = vmatprep.subr.bf16.mxu0 0
      %840 = vmatpush2.bf16.msra.mxu0 0
      %841 = vmatprep.subr.bf16.mxu0 0
      %842 = vmatpush2.bf16.msra.mxu0 0
      %843 = vmatprep.subr.bf16.mxu0 0
      %844 = vmatpush2.bf16.msra.mxu0 0
      %845 = vmatprep.subr.bf16.mxu0 0
      %846 = vmatpush2.bf16.msra.mxu0 0
      %847 = vmatprep.subr.bf16.mxu0 0
      %848 = vmatpush2.bf16.msra.mxu0 0
      %849 = vmatprep.subr.bf16.mxu0 0
      %850 = vmatpush2.bf16.msra.mxu0 0
      %851 = vmatprep.mubr.bf16.mxu0 0
      %852 = vmatmul.mubr.bf16.gmra.mxu0 %v545
      %v853 = vpop.f32.mrf.mxu0
      %v854 = vadd.f32 %v243, %v853
      %v855 = vpop.f32.mrf.mxu0
      %v856 = vadd.f32 %v243, %v855
      %v857 = vpop.f32.mrf.mxu0
      %v858 = vadd.f32 %v248, %v857
      %v859 = vpop.f32.mrf.mxu0
      %v860 = vadd.f32 %v248, %v859
      %861 = vdwg.mxu0
      %862 = vmatprep.subr.bf16.mxu0 0
      %863 = vmatpush1.bf16.msra.mxu0 0
      %864 = vmatprep.subr.bf16.mxu0 0
      %865 = vmatpush1.bf16.msra.mxu0 0
      %866 = vmatprep.subr.bf16.mxu0 0
      %867 = vmatpush1.bf16.msra.mxu0 0
      %868 = vmatprep.subr.bf16.mxu0 0
      %869 = vmatpush1.bf16.msra.mxu0 0
      %870 = vmatprep.subr.bf16.mxu0 0
      %871 = vmatpush1.bf16.msra.mxu0 0
      %872 = vmatprep.subr.bf16.mxu0 0
      %873 = vmatpush1.bf16.msra.mxu0 0
      %874 = vmatprep.subr.bf16.mxu0 %v585
      %875 = vmatpush1.bf16.msra.mxu0 %v582
      %876 = vmatprep.subr.bf16.mxu0 %v458
      %877 = vmatpush1.bf16.msra.mxu0 %v457
      %878 = vmatprep.subr.bf16.mxu0 0
      %879 = vmatpush2.bf16.msra.mxu0 0
      %880 = vmatprep.subr.bf16.mxu0 0
      %881 = vmatpush2.bf16.msra.mxu0 0
      %882 = vmatprep.subr.bf16.mxu0 0
      %883 = vmatpush2.bf16.msra.mxu0 0
      %884 = vmatprep.subr.bf16.mxu0 0
      %885 = vmatpush2.bf16.msra.mxu0 0
      %886 = vmatprep.subr.bf16.mxu0 0
      %887 = vmatpush2.bf16.msra.mxu0 0
      %888 = vmatprep.subr.bf16.mxu0 0
      %889 = vmatpush2.bf16.msra.mxu0 0
      %890 = vmatprep.subr.bf16.mxu0 0
      %891 = vmatpush2.bf16.msra.mxu0 0
      %892 = vmatprep.subr.bf16.mxu0 0
      %893 = vmatpush2.bf16.msra.mxu0 0
      %894 = vmatprep.mubr.bf16.mxu0 0
      %895 = vmatmul.mubr.bf16.gmra.mxu0 %v545
      %v896 = vpop.f32.mrf.mxu0
      %v897 = vadd.f32 %v243, %v896
      %v898 = vpop.f32.mrf.mxu0
      %v899 = vadd.f32 %v243, %v898
      %v900 = vpop.f32.mrf.mxu0
      %v901 = vadd.f32 %v248, %v900
      %v902 = vpop.f32.mrf.mxu0
      %v903 = vadd.f32 %v248, %v902
      %904 = vdwg.mxu0
      %905 = vmatprep.subr.bf16.mxu0 0
      %906 = vmatpush1.bf16.msra.mxu0 0
      %907 = vmatprep.subr.bf16.mxu0 0
      %908 = vmatpush1.bf16.msra.mxu0 0
      %909 = vmatprep.subr.bf16.mxu0 0
      %910 = vmatpush1.bf16.msra.mxu0 0
      %911 = vmatprep.subr.bf16.mxu0 0
      %912 = vmatpush1.bf16.msra.mxu0 0
      %913 = vmatprep.subr.bf16.mxu0 0
      %914 = vmatpush1.bf16.msra.mxu0 0
      %915 = vmatprep.subr.bf16.mxu0 0
      %916 = vmatpush1.bf16.msra.mxu0 0
      %917 = vmatprep.subr.bf16.mxu0 %v591
      %918 = vmatpush1.bf16.msra.mxu0 %v588
      %919 = vmatprep.subr.bf16.mxu0 %v460
      %920 = vmatpush1.bf16.msra.mxu0 %v459
      %921 = vmatprep.subr.bf16.mxu0 0
      %922 = vmatpush2.bf16.msra.mxu0 0
      %923 = vmatprep.subr.bf16.mxu0 0
      %924 = vmatpush2.bf16.msra.mxu0 0
      %925 = vmatprep.subr.bf16.mxu0 0
      %926 = vmatpush2.bf16.msra.mxu0 0
      %927 = vmatprep.subr.bf16.mxu0 0
      %928 = vmatpush2.bf16.msra.mxu0 0
      %929 = vmatprep.subr.bf16.mxu0 0
      %930 = vmatpush2.bf16.msra.mxu0 0
      %931 = vmatprep.subr.bf16.mxu0 0
      %932 = vmatpush2.bf16.msra.mxu0 0
      %933 = vmatprep.subr.bf16.mxu0 0
      %934 = vmatpush2.bf16.msra.mxu0 0
      %935 = vmatprep.subr.bf16.mxu0 0
      %936 = vmatpush2.bf16.msra.mxu0 0
      %937 = vmatprep.mubr.bf16.mxu0 0
      %938 = vmatmul.mubr.bf16.gmra.mxu0 %v545
      %v939 = vpop.f32.mrf.mxu0
      %v940 = vadd.f32 %v243, %v939
      %v941 = vpop.f32.mrf.mxu0
      %v942 = vadd.f32 %v243, %v941
      %v943 = vpop.f32.mrf.mxu0
      %v944 = vadd.f32 %v248, %v943
      %v945 = vpop.f32.mrf.mxu0
      %v946 = vadd.f32 %v248, %v945
      %947 = vdwg.mxu0
      %948 = vmatprep.subr.bf16.mxu0 0
      %949 = vmatpush1.bf16.msra.mxu0 0
      %950 = vmatprep.subr.bf16.mxu0 0
      %951 = vmatpush1.bf16.msra.mxu0 0
      %952 = vmatprep.subr.bf16.mxu0 0
      %953 = vmatpush1.bf16.msra.mxu0 0
      %954 = vmatprep.subr.bf16.mxu0 0
      %955 = vmatpush1.bf16.msra.mxu0 0
      %956 = vmatprep.subr.bf16.mxu0 0
      %957 = vmatpush1.bf16.msra.mxu0 0
      %958 = vmatprep.subr.bf16.mxu0 0
      %959 = vmatpush1.bf16.msra.mxu0 0
      %960 = vmatprep.subr.bf16.mxu0 %v597
      %961 = vmatpush1.bf16.msra.mxu0 %v594
      %962 = vmatprep.subr.bf16.mxu0 %v462
      %963 = vmatpush1.bf16.msra.mxu0 %v461
      %964 = vmatprep.subr.bf16.mxu0 0
      %965 = vmatpush2.bf16.msra.mxu0 0
      %966 = vmatprep.subr.bf16.mxu0 0
      %967 = vmatpush2.bf16.msra.mxu0 0
      %968 = vmatprep.subr.bf16.mxu0 0
      %969 = vmatpush2.bf16.msra.mxu0 0
      %970 = vmatprep.subr.bf16.mxu0 0
      %971 = vmatpush2.bf16.msra.mxu0 0
      %972 = vmatprep.subr.bf16.mxu0 0
      %973 = vmatpush2.bf16.msra.mxu0 0
      %974 = vmatprep.subr.bf16.mxu0 0
      %975 = vmatpush2.bf16.msra.mxu0 0
      %976 = vmatprep.subr.bf16.mxu0 0
      %977 = vmatpush2.bf16.msra.mxu0 0
      %978 = vmatprep.subr.bf16.mxu0 0
      %979 = vmatpush2.bf16.msra.mxu0 0
      %980 = vmatprep.mubr.bf16.mxu0 0
      %981 = vmatmul.mubr.bf16.gmra.mxu0 %v545
      %v982 = vpop.f32.mrf.mxu0
      %v983 = vadd.f32 %v243, %v982
      %v984 = vpop.f32.mrf.mxu0
      %v985 = vadd.f32 %v243, %v984
      %v986 = vpop.f32.mrf.mxu0
      %v987 = vadd.f32 %v248, %v986
      %v988 = vpop.f32.mrf.mxu0
      %v989 = vadd.f32 %v248, %v988
      %990 = vdwg.mxu0
      %991 = vmatprep.subr.bf16.mxu0 0
      %992 = vmatpush1.bf16.msra.mxu0 0
      %993 = vmatprep.subr.bf16.mxu0 0
      %994 = vmatpush1.bf16.msra.mxu0 0
      %995 = vmatprep.subr.bf16.mxu0 0
      %996 = vmatpush1.bf16.msra.mxu0 0
      %997 = vmatprep.subr.bf16.mxu0 0
      %998 = vmatpush1.bf16.msra.mxu0 0
      %999 = vmatprep.subr.bf16.mxu0 0
      %1000 = vmatpush1.bf16.msra.mxu0 0
      %1001 = vmatprep.subr.bf16.mxu0 0
      %1002 = vmatpush1.bf16.msra.mxu0 0
      %1003 = vmatprep.subr.bf16.mxu0 %v603
      %1004 = vmatpush1.bf16.msra.mxu0 %v600
      %1005 = vmatprep.subr.bf16.mxu0 %v464
      %1006 = vmatpush1.bf16.msra.mxu0 %v463
      %1007 = vmatprep.subr.bf16.mxu0 0
      %1008 = vmatpush2.bf16.msra.mxu0 0
      %1009 = vmatprep.subr.bf16.mxu0 0
      %1010 = vmatpush2.bf16.msra.mxu0 0
      %1011 = vmatprep.subr.bf16.mxu0 0
      %1012 = vmatpush2.bf16.msra.mxu0 0
      %1013 = vmatprep.subr.bf16.mxu0 0
      %1014 = vmatpush2.bf16.msra.mxu0 0
      %1015 = vmatprep.subr.bf16.mxu0 0
      %1016 = vmatpush2.bf16.msra.mxu0 0
      %1017 = vmatprep.subr.bf16.mxu0 0
      %1018 = vmatpush2.bf16.msra.mxu0 0
      %1019 = vmatprep.subr.bf16.mxu0 0
      %1020 = vmatpush2.bf16.msra.mxu0 0
      %1021 = vmatprep.subr.bf16.mxu0 0
      %1022 = vmatpush2.bf16.msra.mxu0 0
      %1023 = vmatprep.mubr.bf16.mxu0 0
      %1024 = vmatmul.mubr.bf16.gmra.mxu0 %v545
      %v1025 = vpop.f32.mrf.mxu0
      %v1026 = vadd.f32 %v243, %v1025
      %v1027 = vpop.f32.mrf.mxu0
      %v1028 = vadd.f32 %v243, %v1027
      %v1029 = vpop.f32.mrf.mxu0
      %v1030 = vadd.f32 %v248, %v1029
      %v1031 = vpop.f32.mrf.mxu0
      %v1032 = vadd.f32 %v248, %v1031
      %1033 = vdwg.mxu0
      %1034 = vmatprep.subr.bf16.mxu0 0
      %1035 = vmatpush1.bf16.msra.mxu0 0
      %1036 = vmatprep.subr.bf16.mxu0 0
      %1037 = vmatpush1.bf16.msra.mxu0 0
      %1038 = vmatprep.subr.bf16.mxu0 0
      %1039 = vmatpush1.bf16.msra.mxu0 0
      %1040 = vmatprep.subr.bf16.mxu0 0
      %1041 = vmatpush1.bf16.msra.mxu0 0
      %1042 = vmatprep.subr.bf16.mxu0 0
      %1043 = vmatpush1.bf16.msra.mxu0 0
      %1044 = vmatprep.subr.bf16.mxu0 0
      %1045 = vmatpush1.bf16.msra.mxu0 0
      %1046 = vmatprep.subr.bf16.mxu0 %v609
      %1047 = vmatpush1.bf16.msra.mxu0 %v606
      %1048 = vmatprep.subr.bf16.mxu0 %v466
      %1049 = vmatpush1.bf16.msra.mxu0 %v465
      %1050 = vmatprep.subr.bf16.mxu0 0
      %1051 = vmatpush2.bf16.msra.mxu0 0
      %1052 = vmatprep.subr.bf16.mxu0 0
      %1053 = vmatpush2.bf16.msra.mxu0 0
      %1054 = vmatprep.subr.bf16.mxu0 0
      %1055 = vmatpush2.bf16.msra.mxu0 0
      %1056 = vmatprep.subr.bf16.mxu0 0
      %1057 = vmatpush2.bf16.msra.mxu0 0
      %1058 = vmatprep.subr.bf16.mxu0 0
      %1059 = vmatpush2.bf16.msra.mxu0 0
      %1060 = vmatprep.subr.bf16.mxu0 0
      %1061 = vmatpush2.bf16.msra.mxu0 0
      %1062 = vmatprep.subr.bf16.mxu0 0
      %1063 = vmatpush2.bf16.msra.mxu0 0
      %1064 = vmatprep.subr.bf16.mxu0 0
      %1065 = vmatpush2.bf16.msra.mxu0 0
      %1066 = vmatprep.mubr.bf16.mxu0 0
      %1067 = vmatmul.mubr.bf16.gmra.mxu0 %v545
      %v1068 = vpop.f32.mrf.mxu0
      %v1069 = vadd.f32 %v243, %v1068
      %v1070 = vpop.f32.mrf.mxu0
      %v1071 = vadd.f32 %v243, %v1070
      %v1072 = vpop.f32.mrf.mxu0
      %v1073 = vadd.f32 %v248, %v1072
      %v1074 = vpop.f32.mrf.mxu0
      %v1075 = vadd.f32 %v248, %v1074
      %1076 = vdwg.mxu0
      %1077 = vmatprep.subr.bf16.mxu0 0
      %1078 = vmatpush1.bf16.msra.mxu0 0
      %1079 = vmatprep.subr.bf16.mxu0 0
      %1080 = vmatpush1.bf16.msra.mxu0 0
      %1081 = vmatprep.subr.bf16.mxu0 0
      %1082 = vmatpush1.bf16.msra.mxu0 0
      %1083 = vmatprep.subr.bf16.mxu0 0
      %1084 = vmatpush1.bf16.msra.mxu0 0
      %1085 = vmatprep.subr.bf16.mxu0 0
      %1086 = vmatpush1.bf16.msra.mxu0 0
      %1087 = vmatprep.subr.bf16.mxu0 0
      %1088 = vmatpush1.bf16.msra.mxu0 0
      %1089 = vmatprep.subr.bf16.mxu0 %v615
      %1090 = vmatpush1.bf16.msra.mxu0 %v612
      %1091 = vmatprep.subr.bf16.mxu0 %v468
      %1092 = vmatpush1.bf16.msra.mxu0 %v467
      %1093 = vmatprep.subr.bf16.mxu0 0
      %1094 = vmatpush2.bf16.msra.mxu0 0
      %1095 = vmatprep.subr.bf16.mxu0 0
      %1096 = vmatpush2.bf16.msra.mxu0 0
      %1097 = vmatprep.subr.bf16.mxu0 0
      %1098 = vmatpush2.bf16.msra.mxu0 0
      %1099 = vmatprep.subr.bf16.mxu0 0
      %1100 = vmatpush2.bf16.msra.mxu0 0
      %1101 = vmatprep.subr.bf16.mxu0 0
      %1102 = vmatpush2.bf16.msra.mxu0 0
      %1103 = vmatprep.subr.bf16.mxu0 0
      %1104 = vmatpush2.bf16.msra.mxu0 0
      %1105 = vmatprep.subr.bf16.mxu0 0
      %1106 = vmatpush2.bf16.msra.mxu0 0
      %1107 = vmatprep.subr.bf16.mxu0 0
      %1108 = vmatpush2.bf16.msra.mxu0 0
      %1109 = vmatprep.mubr.bf16.mxu0 0
      %1110 = vmatmul.mubr.bf16.gmra.mxu0 %v545
      %v1111 = vpop.f32.mrf.mxu0
      %v1112 = vadd.f32 %v243, %v1111
      %v1113 = vpop.f32.mrf.mxu0
      %v1114 = vadd.f32 %v243, %v1113
      %v1115 = vpop.f32.mrf.mxu0
      %v1116 = vadd.f32 %v248, %v1115
      %v1117 = vpop.f32.mrf.mxu0
      %v1118 = vadd.f32 %v248, %v1117
      %1119 = vdwg.mxu0
      %1120 = vmatprep.subr.bf16.mxu0 0
      %1121 = vmatpush1.bf16.msra.mxu0 0
      %1122 = vmatprep.subr.bf16.mxu0 0
      %1123 = vmatpush1.bf16.msra.mxu0 0
      %1124 = vmatprep.subr.bf16.mxu0 0
      %1125 = vmatpush1.bf16.msra.mxu0 0
      %1126 = vmatprep.subr.bf16.mxu0 0
      %1127 = vmatpush1.bf16.msra.mxu0 0
      %1128 = vmatprep.subr.bf16.mxu0 0
      %1129 = vmatpush1.bf16.msra.mxu0 0
      %1130 = vmatprep.subr.bf16.mxu0 0
      %1131 = vmatpush1.bf16.msra.mxu0 0
      %1132 = vmatprep.subr.bf16.mxu0 %v621
      %1133 = vmatpush1.bf16.msra.mxu0 %v618
      %1134 = vmatprep.subr.bf16.mxu0 %v470
      %1135 = vmatpush1.bf16.msra.mxu0 %v469
      %1136 = vmatprep.subr.bf16.mxu0 0
      %1137 = vmatpush2.bf16.msra.mxu0 0
      %1138 = vmatprep.subr.bf16.mxu0 0
      %1139 = vmatpush2.bf16.msra.mxu0 0
      %1140 = vmatprep.subr.bf16.mxu0 0
      %1141 = vmatpush2.bf16.msra.mxu0 0
      %1142 = vmatprep.subr.bf16.mxu0 0
      %1143 = vmatpush2.bf16.msra.mxu0 0
      %1144 = vmatprep.subr.bf16.mxu0 0
      %1145 = vmatpush2.bf16.msra.mxu0 0
      %1146 = vmatprep.subr.bf16.mxu0 0
      %1147 = vmatpush2.bf16.msra.mxu0 0
      %1148 = vmatprep.subr.bf16.mxu0 0
      %1149 = vmatpush2.bf16.msra.mxu0 0
      %1150 = vmatprep.subr.bf16.mxu0 0
      %1151 = vmatpush2.bf16.msra.mxu0 0
      %1152 = vmatprep.mubr.bf16.mxu0 0
      %1153 = vmatmul.mubr.bf16.gmra.mxu0 %v545
      %v1154 = vpop.f32.mrf.mxu0
      %v1155 = vadd.f32 %v243, %v1154
      %v1156 = vpop.f32.mrf.mxu0
      %v1157 = vadd.f32 %v243, %v1156
      %v1158 = vpop.f32.mrf.mxu0
      %v1159 = vadd.f32 %v248, %v1158
      %v1160 = vpop.f32.mrf.mxu0
      %v1161 = vadd.f32 %v248, %v1160
      %1162 = vdwg.mxu0
      %1163 = vmatprep.subr.bf16.mxu0 0
      %1164 = vmatpush1.bf16.msra.mxu0 0
      %1165 = vmatprep.subr.bf16.mxu0 0
      %1166 = vmatpush1.bf16.msra.mxu0 0
      %1167 = vmatprep.subr.bf16.mxu0 0
      %1168 = vmatpush1.bf16.msra.mxu0 0
      %1169 = vmatprep.subr.bf16.mxu0 0
      %1170 = vmatpush1.bf16.msra.mxu0 0
      %1171 = vmatprep.subr.bf16.mxu0 0
      %1172 = vmatpush1.bf16.msra.mxu0 0
      %1173 = vmatprep.subr.bf16.mxu0 0
      %1174 = vmatpush1.bf16.msra.mxu0 0
      %1175 = vmatprep.subr.bf16.mxu0 %v627
      %1176 = vmatpush1.bf16.msra.mxu0 %v624
      %1177 = vmatprep.subr.bf16.mxu0 %v472
      %1178 = vmatpush1.bf16.msra.mxu0 %v471
      %1179 = vmatprep.subr.bf16.mxu0 0
      %1180 = vmatpush2.bf16.msra.mxu0 0
      %1181 = vmatprep.subr.bf16.mxu0 0
      %1182 = vmatpush2.bf16.msra.mxu0 0
      %1183 = vmatprep.subr.bf16.mxu0 0
      %1184 = vmatpush2.bf16.msra.mxu0 0
      %1185 = vmatprep.subr.bf16.mxu0 0
      %1186 = vmatpush2.bf16.msra.mxu0 0
      %1187 = vmatprep.subr.bf16.mxu0 0
      %1188 = vmatpush2.bf16.msra.mxu0 0
      %1189 = vmatprep.subr.bf16.mxu0 0
      %1190 = vmatpush2.bf16.msra.mxu0 0
      %1191 = vmatprep.subr.bf16.mxu0 0
      %1192 = vmatpush2.bf16.msra.mxu0 0
      %1193 = vmatprep.subr.bf16.mxu0 0
      %1194 = vmatpush2.bf16.msra.mxu0 0
      %1195 = vmatprep.mubr.bf16.mxu0 0
      %1196 = vmatmul.mubr.bf16.gmra.mxu0 %v545
      %v1197 = vpop.f32.mrf.mxu0
      %v1198 = vadd.f32 %v243, %v1197
      %v1199 = vpop.f32.mrf.mxu0
      %v1200 = vadd.f32 %v243, %v1199
      %v1201 = vpop.f32.mrf.mxu0
      %v1202 = vadd.f32 %v248, %v1201
      %v1203 = vpop.f32.mrf.mxu0
      %v1204 = vadd.f32 %v248, %v1203
      %1205 = vdwg.mxu0
      %1206 = vmatprep.subr.bf16.mxu0 0
      %1207 = vmatpush1.bf16.msra.mxu0 0
      %1208 = vmatprep.subr.bf16.mxu0 0
      %1209 = vmatpush1.bf16.msra.mxu0 0
      %1210 = vmatprep.subr.bf16.mxu0 0
      %1211 = vmatpush1.bf16.msra.mxu0 0
      %1212 = vmatprep.subr.bf16.mxu0 0
      %1213 = vmatpush1.bf16.msra.mxu0 0
      %1214 = vmatprep.subr.bf16.mxu0 0
      %1215 = vmatpush1.bf16.msra.mxu0 0
      %1216 = vmatprep.subr.bf16.mxu0 0
      %1217 = vmatpush1.bf16.msra.mxu0 0
      %1218 = vmatprep.subr.bf16.mxu0 %v633
      %1219 = vmatpush1.bf16.msra.mxu0 %v630
      %1220 = vmatprep.subr.bf16.mxu0 %v474
      %1221 = vmatpush1.bf16.msra.mxu0 %v473
      %1222 = vmatprep.subr.bf16.mxu0 0
      %1223 = vmatpush2.bf16.msra.mxu0 0
      %1224 = vmatprep.subr.bf16.mxu0 0
      %1225 = vmatpush2.bf16.msra.mxu0 0
      %1226 = vmatprep.subr.bf16.mxu0 0
      %1227 = vmatpush2.bf16.msra.mxu0 0
      %1228 = vmatprep.subr.bf16.mxu0 0
      %1229 = vmatpush2.bf16.msra.mxu0 0
      %1230 = vmatprep.subr.bf16.mxu0 0
      %1231 = vmatpush2.bf16.msra.mxu0 0
      %1232 = vmatprep.subr.bf16.mxu0 0
      %1233 = vmatpush2.bf16.msra.mxu0 0
      %1234 = vmatprep.subr.bf16.mxu0 0
      %1235 = vmatpush2.bf16.msra.mxu0 0
      %1236 = vmatprep.subr.bf16.mxu0 0
      %1237 = vmatpush2.bf16.msra.mxu0 0
      %1238 = vmatprep.mubr.bf16.mxu0 0
      %1239 = vmatmul.mubr.bf16.gmra.mxu0 %v545
      %v1240 = vpop.f32.mrf.mxu0
      %v1241 = vadd.f32 %v243, %v1240
      %v1242 = vpop.f32.mrf.mxu0
      %v1243 = vadd.f32 %v243, %v1242
      %v1244 = vpop.f32.mrf.mxu0
      %v1245 = vadd.f32 %v248, %v1244
      %v1246 = vpop.f32.mrf.mxu0
      %v1247 = vadd.f32 %v248, %v1246
      %1248 = vdwg.mxu0
      %1249 = vmatprep.subr.bf16.mxu0 0
      %1250 = vmatpush1.bf16.msra.mxu0 0
      %1251 = vmatprep.subr.bf16.mxu0 0
      %1252 = vmatpush1.bf16.msra.mxu0 0
      %1253 = vmatprep.subr.bf16.mxu0 0
      %1254 = vmatpush1.bf16.msra.mxu0 0
      %1255 = vmatprep.subr.bf16.mxu0 0
      %1256 = vmatpush1.bf16.msra.mxu0 0
      %1257 = vmatprep.subr.bf16.mxu0 0
      %1258 = vmatpush1.bf16.msra.mxu0 0
      %1259 = vmatprep.subr.bf16.mxu0 0
      %1260 = vmatpush1.bf16.msra.mxu0 0
      %1261 = vmatprep.subr.bf16.mxu0 %v639
      %1262 = vmatpush1.bf16.msra.mxu0 %v636
      %1263 = vmatprep.subr.bf16.mxu0 %v476
      %1264 = vmatpush1.bf16.msra.mxu0 %v475
      %1265 = vmatprep.subr.bf16.mxu0 0
      %1266 = vmatpush2.bf16.msra.mxu0 0
      %1267 = vmatprep.subr.bf16.mxu0 0
      %1268 = vmatpush2.bf16.msra.mxu0 0
      %1269 = vmatprep.subr.bf16.mxu0 0
      %1270 = vmatpush2.bf16.msra.mxu0 0
      %1271 = vmatprep.subr.bf16.mxu0 0
      %1272 = vmatpush2.bf16.msra.mxu0 0
      %1273 = vmatprep.subr.bf16.mxu0 0
      %1274 = vmatpush2.bf16.msra.mxu0 0
      %1275 = vmatprep.subr.bf16.mxu0 0
      %1276 = vmatpush2.bf16.msra.mxu0 0
      %1277 = vmatprep.subr.bf16.mxu0 0
      %1278 = vmatpush2.bf16.msra.mxu0 0
      %1279 = vmatprep.subr.bf16.mxu0 0
      %1280 = vmatpush2.bf16.msra.mxu0 0
      %1281 = vmatprep.mubr.bf16.mxu0 0
      %1282 = vmatmul.mubr.bf16.gmra.mxu0 %v545
      %v1283 = vpop.f32.mrf.mxu0
      %v1284 = vadd.f32 %v243, %v1283
      %v1285 = vpop.f32.mrf.mxu0
      %v1286 = vadd.f32 %v243, %v1285
      %v1287 = vpop.f32.mrf.mxu0
      %v1288 = vadd.f32 %v248, %v1287
      %v1289 = vpop.f32.mrf.mxu0
      %v1290 = vadd.f32 %v248, %v1289
      %1291 = vdwg.mxu0
      %1292 = vmatprep.subr.bf16.mxu0 0
      %1293 = vmatpush1.bf16.msra.mxu0 0
      %1294 = vmatprep.subr.bf16.mxu0 0
      %1295 = vmatpush1.bf16.msra.mxu0 0
      %1296 = vmatprep.subr.bf16.mxu0 0
      %1297 = vmatpush1.bf16.msra.mxu0 0
      %1298 = vmatprep.subr.bf16.mxu0 0
      %1299 = vmatpush1.bf16.msra.mxu0 0
      %1300 = vmatprep.subr.bf16.mxu0 0
      %1301 = vmatpush1.bf16.msra.mxu0 0
      %1302 = vmatprep.subr.bf16.mxu0 0
      %1303 = vmatpush1.bf16.msra.mxu0 0
      %1304 = vmatprep.subr.bf16.mxu0 %v645
      %1305 = vmatpush1.bf16.msra.mxu0 %v642
      %1306 = vmatprep.subr.bf16.mxu0 %v478
      %1307 = vmatpush1.bf16.msra.mxu0 %v477
      %1308 = vmatprep.subr.bf16.mxu0 0
      %1309 = vmatpush2.bf16.msra.mxu0 0
      %1310 = vmatprep.subr.bf16.mxu0 0
      %1311 = vmatpush2.bf16.msra.mxu0 0
      %1312 = vmatprep.subr.bf16.mxu0 0
      %1313 = vmatpush2.bf16.msra.mxu0 0
      %1314 = vmatprep.subr.bf16.mxu0 0
      %1315 = vmatpush2.bf16.msra.mxu0 0
      %1316 = vmatprep.subr.bf16.mxu0 0
      %1317 = vmatpush2.bf16.msra.mxu0 0
      %1318 = vmatprep.subr.bf16.mxu0 0
      %1319 = vmatpush2.bf16.msra.mxu0 0
      %1320 = vmatprep.subr.bf16.mxu0 0
      %1321 = vmatpush2.bf16.msra.mxu0 0
      %1322 = vmatprep.subr.bf16.mxu0 0
      %1323 = vmatpush2.bf16.msra.mxu0 0
      %1324 = vmatprep.mubr.bf16.mxu0 0
      %1325 = vmatmul.mubr.bf16.gmra.mxu0 %v545
      %v1326 = vpop.f32.mrf.mxu0
      %v1327 = vadd.f32 %v243, %v1326
      %v1328 = vpop.f32.mrf.mxu0
      %v1329 = vadd.f32 %v243, %v1328
      %v1330 = vpop.f32.mrf.mxu0
      %v1331 = vadd.f32 %v248, %v1330
      %v1332 = vpop.f32.mrf.mxu0
      %v1333 = vadd.f32 %v248, %v1332
      %1334 = vdwg.mxu0
      %v1335 = vmax.f32 %v682, 0.0
      %v1336 = vmax.f32 %v684, 0.0
      %v1337 = vmax.f32 %v725, 0.0
      %v1338 = vmax.f32 %v727, 0.0
      %v1339 = vmax.f32 %v768, 0.0
      %v1340 = vmax.f32 %v770, 0.0
      %v1341 = vmax.f32 %v811, 0.0
      %v1342 = vmax.f32 %v813, 0.0
      %v1343 = vmax.f32 %v854, 0.0
      %v1344 = vmax.f32 %v856, 0.0
      %v1345 = vmax.f32 %v897, 0.0
      %v1346 = vmax.f32 %v899, 0.0
      %v1347 = vmax.f32 %v940, 0.0
      %v1348 = vmax.f32 %v942, 0.0
      %v1349 = vmax.f32 %v983, 0.0
      %v1350 = vmax.f32 %v985, 0.0
      %v1351 = vmax.f32 %v1026, 0.0
      %v1352 = vmax.f32 %v1028, 0.0
      %v1353 = vmax.f32 %v1069, 0.0
      %v1354 = vmax.f32 %v1071, 0.0
      %v1355 = vmax.f32 %v1112, 0.0
      %v1356 = vmax.f32 %v1114, 0.0
      %v1357 = vmax.f32 %v1155, 0.0
      %v1358 = vmax.f32 %v1157, 0.0
      %v1359 = vmax.f32 %v1198, 0.0
      %v1360 = vmax.f32 %v1200, 0.0
      %v1361 = vmax.f32 %v1241, 0.0
      %v1362 = vmax.f32 %v1243, 0.0
      %v1363 = vmax.f32 %v1284, 0.0
      %v1364 = vmax.f32 %v1286, 0.0
      %v1365 = vmax.f32 %v1327, 0.0
      %v1366 = vmax.f32 %v1329, 0.0
      %v1367 = vmax.f32 %v686, 0.0
      %v1368 = vmax.f32 %v688, 0.0
      %v1369 = vmax.f32 %v729, 0.0
      %v1370 = vmax.f32 %v731, 0.0
      %v1371 = vmax.f32 %v772, 0.0
      %v1372 = vmax.f32 %v774, 0.0
      %v1373 = vmax.f32 %v815, 0.0
      %v1374 = vmax.f32 %v817, 0.0
      %v1375 = vmax.f32 %v858, 0.0
      %v1376 = vmax.f32 %v860, 0.0
      %v1377 = vmax.f32 %v901, 0.0
      %v1378 = vmax.f32 %v903, 0.0
      %v1379 = vmax.f32 %v944, 0.0
      %v1380 = vmax.f32 %v946, 0.0
      %v1381 = vmax.f32 %v987, 0.0
      %v1382 = vmax.f32 %v989, 0.0
      %v1383 = vmax.f32 %v1030, 0.0
      %v1384 = vmax.f32 %v1032, 0.0
      %v1385 = vmax.f32 %v1073, 0.0
      %v1386 = vmax.f32 %v1075, 0.0
      %v1387 = vmax.f32 %v1116, 0.0
      %v1388 = vmax.f32 %v1118, 0.0
      %v1389 = vmax.f32 %v1159, 0.0
      %v1390 = vmax.f32 %v1161, 0.0
      %v1391 = vmax.f32 %v1202, 0.0
      %v1392 = vmax.f32 %v1204, 0.0
      %v1393 = vmax.f32 %v1245, 0.0
      %v1394 = vmax.f32 %v1247, 0.0
      %v1395 = vmax.f32 %v1288, 0.0
      %v1396 = vmax.f32 %v1290, 0.0
      %v1397 = vmax.f32 %v1331, 0.0
      %v1398 = vmax.f32 %v1333, 0.0
      %v1399 = vmax.f32 %v1335, %v1343
      %v1400 = vmax.f32 %v1336, %v1344
      %v1401 = vmax.f32 %v1337, %v1345
      %v1402 = vmax.f32 %v1338, %v1346
      %v1403 = vmax.f32 %v1339, %v1347
      %v1404 = vmax.f32 %v1340, %v1348
      %v1405 = vmax.f32 %v1341, %v1349
      %v1406 = vmax.f32 %v1342, %v1350
      %v1407 = vmax.f32 %v1367, %v1375
      %v1408 = vmax.f32 %v1368, %v1376
      %v1409 = vmax.f32 %v1369, %v1377
      %v1410 = vmax.f32 %v1370, %v1378
      %v1411 = vmax.f32 %v1371, %v1379
      %v1412 = vmax.f32 %v1372, %v1380
      %v1413 = vmax.f32 %v1373, %v1381
      %v1414 = vmax.f32 %v1374, %v1382
      %v1415 = vmax.f32 %v1351, %v1359
      %v1416 = vmax.f32 %v1352, %v1360
      %v1417 = vmax.f32 %v1353, %v1361
      %v1418 = vmax.f32 %v1354, %v1362
      %v1419 = vmax.f32 %v1355, %v1363
      %v1420 = vmax.f32 %v1356, %v1364
      %v1421 = vmax.f32 %v1357, %v1365
      %v1422 = vmax.f32 %v1358, %v1366
      %v1423 = vmax.f32 %v1383, %v1391
      %v1424 = vmax.f32 %v1384, %v1392
      %v1425 = vmax.f32 %v1385, %v1393
      %v1426 = vmax.f32 %v1386, %v1394
      %v1427 = vmax.f32 %v1387, %v1395
      %v1428 = vmax.f32 %v1388, %v1396
      %v1429 = vmax.f32 %v1389, %v1397
      %v1430 = vmax.f32 %v1390, %v1398
      %v1431 = vmax.f32 %v1399, %v1415
      %v1432 = vmax.f32 %v1400, %v1416
      %v1433 = vmax.f32 %v1401, %v1417
      %v1434 = vmax.f32 %v1402, %v1418
      %v1435 = vmax.f32 %v1403, %v1419
      %v1436 = vmax.f32 %v1404, %v1420
      %v1437 = vmax.f32 %v1405, %v1421
      %v1438 = vmax.f32 %v1406, %v1422
      %v1439 = vmax.f32 %v1407, %v1423
      %v1440 = vmax.f32 %v1408, %v1424
      %v1441 = vmax.f32 %v1409, %v1425
      %v1442 = vmax.f32 %v1410, %v1426
      %v1443 = vmax.f32 %v1411, %v1427
      %v1444 = vmax.f32 %v1412, %v1428
      %v1445 = vmax.f32 %v1413, %v1429
      %v1446 = vmax.f32 %v1414, %v1430
      %v1447 = vpack.c.bf16 %v1439, %v1431
      %v1448 = vpack.c.bf16 %v1440, %v1432
      %v1449 = vpack.c.bf16 %v1441, %v1433
      %v1450 = vpack.c.bf16 %v1442, %v1434
      %v1451 = vpack.c.bf16 %v1443, %v1435
      %v1452 = vpack.c.bf16 %v1444, %v1436
      %v1453 = vpack.c.bf16 %v1445, %v1437
      %v1454 = vpack.c.bf16 %v1446, %v1438
      %v1463 = vunpack.c.l.b16 %v1447
      %v1464 = vunpack.c.l.b16 %v1448
      %v1465 = vunpack.c.l.b16 %v1449
      %v1466 = vunpack.c.l.b16 %v1450
      %v1467 = vunpack.c.l.b16 %v1451
      %v1468 = vunpack.c.l.b16 %v1452
      %v1469 = vunpack.c.l.b16 %v1453
      %v1470 = vunpack.c.l.b16 %v1454
      %v1471 = vunpack.c.h.b16 %v1447
      %v1472 = vunpack.c.h.b16 %v1448
      %v1473 = vunpack.c.h.b16 %v1449
      %v1474 = vunpack.c.h.b16 %v1450
      %v1475 = vunpack.c.h.b16 %v1451
      %v1476 = vunpack.c.h.b16 %v1452
      %v1477 = vunpack.c.h.b16 %v1453
      %v1478 = vunpack.c.h.b16 %v1454
      %v1479 = vpack.c.b16 %v1464, %v1463
      %v1480 = vpack.c.b16 %v1466, %v1465
      %v1481 = vpack.c.b16 %v1468, %v1467
      %v1482 = vpack.c.b16 %v1470, %v1469
      %v1483 = vpack.c.b16 %v1472, %v1471
      %v1484 = vpack.c.b16 %v1474, %v1473
      %v1485 = vpack.c.b16 %v1476, %v1475
      %v1486 = vpack.c.b16 %v1478, %v1477
      %1495 = vst [vmem:[%s170] sm:$0xff] %v1479
      %1496 = vst [vmem:[%s170 + $0x8] sm:$0xff] %v1480
      %1497 = vst [vmem:[%s170 + $0x10] sm:$0xff] %v1481
      %1498 = vst [vmem:[%s170 + $0x18] sm:$0xff] %v1482
      %1499 = vst [vmem:[%s170 + $0x20] sm:$0xff] %v1483
      %1500 = vst [vmem:[%s170 + $0x28] sm:$0xff] %v1484
      %1501 = vst [vmem:[%s170 + $0x30] sm:$0xff] %v1485
      %1502 = vst [vmem:[%s170 + $0x38] sm:$0xff] %v1486
      %p1503 = scmp.lt.s32.totalorder %s14, 1
      %s1504 = scalar_select %p1503, %s14, 1
      %s1505 = smul.addr %s1504, 16
      %s1506 = smul.addr %s1505, 4
      %s1507 = scalar_lea.vmem %s3, %s1506
      // Predicated region
      $region33: #{cnn_forward.4} parent=31 // pred_check
        %p1508 = pneg %p100
      $region34: #{cnn_forward.4} parent=31 // pred_check_branch
        %1510 = sbr.rel (%p1508) target = $region36
      $region35: #{cnn_forward.4} parent=31 // pred_region
        _
      $region36: #{cnn_forward.4} parent=31 // pred_fallthru
        _
    $region32: #{cnn_forward.4} parent=5 // pred_fallthru
      _
    %p1511 = scmp.le.s32.totalorder 2, %s9
    // Predicated region
    $region37: #{cnn_forward.4} parent=5 // pred_check
      %p1512 = pneg %p1511
    $region38: #{cnn_forward.4} parent=5 // pred_check_branch
      %1514 = sbr.rel (%p1512) target = $region40
    $region39: #{cnn_forward.4} parent=5 // pred_region
      %s1515 = ssub.s32 %s9, 2
      // Predicated region
      $region41: #{cnn_forward.4} parent=39 // pred_check
        %p1516 = pneg %p106
      $region42: #{cnn_forward.4} parent=39 // pred_check_branch
        %1518 = sbr.rel (%p1516) target = $region44
      $region43: #{cnn_forward.4} parent=39 // pred_region
        %p1519 = scmp.lt.s32.totalorder %s15, 1
        %s1520 = scalar_select %p1519, %s15, 1
        %s1521 = smul.addr %s1520, 16
        %s1522 = smul.addr %s1521, 4
        %s1523 = scalar_lea.vmem %s3, %s1522
      $region44: #{cnn_forward.4} parent=39 // pred_fallthru
        _
    $region40: #{cnn_forward.4} parent=5 // pred_fallthru
      _
  $region6: #{cnn_forward.4} parent=0 // loop_footer
    %s13 = sadd.s32 1, %s9
  $region7: #{cnn_forward.4} parent=0 // loop_footer_branch
    %8 = sbr.rel target = $region3
  $region8: #{cnn_forward.4} parent=0 // loop_exit
    _

// kernel: cnn_forward.5
$region0: #{cnn_forward.5}
  #allocation0 [shape = 'u32[]', space=smem, size = 0x4, offset = 0x4, fixed_abs, tag = 'smem constant byte address 0x4 - core index']
  #allocation1 [shape = 'u32[144,128]{1,0:T(1,128)}', space=vmem, size = 0x12000, scoped, tag = 'internal scratch']
  %s0 = inlined_call_operand.vmem [shape: bf16[2,4,64,144], index: 0, kind: input, shape index: {}]
  %s1 = inlined_call_operand.vmem [shape: bf16[144,128], index: 1, kind: input, shape index: {}]
  %s2 = inlined_call_operand.vmem [shape: f32[1,128], index: 2, kind: input, shape index: {}]
  %s3 = inlined_call_operand.vmem [shape: bf16[2,64,128], index: 3, kind: output, shape index: {}]
  %s4 = sld [smem:[#allocation0]]
  $region45: #{cnn_forward.5} parent=0
    _
  %s6 = ssub.s32 1, %s4
  %s7 = scalar_select 0, %s6, %s4
  loop: start=0, step=1, limit=4
  $region2: #{cnn_forward.5} parent=0 // loop_pre_header
    _
  $region3: #{cnn_forward.5} parent=0 // loop_header
    %s9 = sphi 0, %s13
    %p10 = scmp.ge.s32.totalorder %s9, 4
    %s19 = sphi 0, %s21
    %s22 = sphi 0, %s19
    %s23 = sphi 0, %s22
    %s39 = sphi 0, %s23
    %s43 = sphi 0, %s43
    %s45 = sphi 0, %s43
    %s46 = sphi 0, %s45
    %s60 = sphi 0, %s46
    %s64 = sphi 0, %s64
    %s66 = sphi 0, %s64
    %s67 = sphi 0, %s66
    %s81 = sphi 0, %s67
    %s87 = sphi 0, %s89
    %s90 = sphi 0, %s87
    %s91 = sphi 0, %s90
    %s107 = sphi 0, %s91
  $region4: #{cnn_forward.5} parent=0 // loop_header_branch
    %12 = sbr.rel (%p10) target = $region8
  $region5: #{cnn_forward.5} parent=0 // loop_body
    %s14 = ssub.s32 %s9, 1
    %s15 = ssub.s32 %s9, 2
    %s16 = sadd.s32 %s9, 1
    %s17 = ssub.s32 %s9, %s16
    %p18 = scmp.eq.s32.totalorder %s17, 0
    %s20 = sadd.s32 %s19, 1
    %s21 = scalar_select %p18, %s19, %s20
    %p24 = pneg %p18
    %p25 = scmp.eq.s32.totalorder %s9, 1
    %p26 = por %p24, %p25
    %p27 = scmp.ne.s32.totalorder %s19, %s22
    %p28 = scmp.eq.s32.totalorder %s9, 0
    %p29 = por %p27, %p28
    %p30 = scmp.ne.s32.totalorder %s19, %s22
    %p31 = scmp.eq.s32.totalorder %s14, 1
    %p32 = por %p30, %p31
    %p33 = scmp.ne.s32.totalorder %s22, %s23
    %p34 = scmp.eq.s32.totalorder %s14, 0
    %p35 = por %p33, %p34
    %p36 = scmp.ne.s32.totalorder %s22, %s23
    %p37 = scmp.eq.s32.totalorder %s15, 1
    %p38 = por %p36, %p37
    %p40 = scmp.ne.s32.totalorder %s23, %s39
    %p41 = scmp.eq.s32.totalorder %s15, 0
    %p42 = por %p40, %p41
    %s44 = sadd.s32 %s43, 1
    %p47 = scmp.eq.s32.totalorder %s9, 1
    %p48 = scmp.ne.s32.totalorder %s43, %s45
    %p49 = scmp.eq.s32.totalorder %s9, 0
    %p50 = por %p48, %p49
    %p51 = scmp.ne.s32.totalorder %s43, %s45
    %p52 = scmp.eq.s32.totalorder %s14, 1
    %p53 = por %p51, %p52
    %p54 = scmp.ne.s32.totalorder %s45, %s46
    %p55 = scmp.eq.s32.totalorder %s14, 0
    %p56 = por %p54, %p55
    %p57 = scmp.ne.s32.totalorder %s45, %s46
    %p58 = scmp.eq.s32.totalorder %s15, 1
    %p59 = por %p57, %p58
    %p61 = scmp.ne.s32.totalorder %s46, %s60
    %p62 = scmp.eq.s32.totalorder %s15, 0
    %p63 = por %p61, %p62
    %s65 = sadd.s32 %s64, 1
    %p68 = scmp.eq.s32.totalorder %s9, 1
    %p69 = scmp.ne.s32.totalorder %s64, %s66
    %p70 = scmp.eq.s32.totalorder %s9, 0
    %p71 = por %p69, %p70
    %p72 = scmp.ne.s32.totalorder %s64, %s66
    %p73 = scmp.eq.s32.totalorder %s14, 1
    %p74 = por %p72, %p73
    %p75 = scmp.ne.s32.totalorder %s66, %s67
    %p76 = scmp.eq.s32.totalorder %s14, 0
    %p77 = por %p75, %p76
    %p78 = scmp.ne.s32.totalorder %s66, %s67
    %p79 = scmp.eq.s32.totalorder %s15, 1
    %p80 = por %p78, %p79
    %p82 = scmp.ne.s32.totalorder %s67, %s81
    %p83 = scmp.eq.s32.totalorder %s15, 0
    %p84 = por %p82, %p83
    %s85 = ssub.s32 %s9, %s16
    %p86 = scmp.eq.s32.totalorder %s85, 0
    %s88 = sadd.s32 %s87, 1
    %s89 = scalar_select %p86, %s87, %s88
    %p92 = pneg %p86
    %p93 = scmp.eq.s32.totalorder %s9, 1
    %p94 = por %p92, %p93
    %p95 = scmp.ne.s32.totalorder %s87, %s90
    %p96 = scmp.eq.s32.totalorder %s9, 0
    %p97 = por %p95, %p96
    %p98 = scmp.ne.s32.totalorder %s87, %s90
    %p99 = scmp.eq.s32.totalorder %s14, 1
    %p100 = por %p98, %p99
    %p101 = scmp.ne.s32.totalorder %s90, %s91
    %p102 = scmp.eq.s32.totalorder %s14, 0
    %p103 = por %p101, %p102
    %p104 = scmp.ne.s32.totalorder %s90, %s91
    %p105 = scmp.eq.s32.totalorder %s15, 1
    %p106 = por %p104, %p105
    %p108 = scmp.ne.s32.totalorder %s91, %s107
    %p109 = scmp.eq.s32.totalorder %s15, 0
    %p110 = por %p108, %p109
    %p111 = scmp.le.s32.totalorder 1, %s9
    %p112 = scmp.lt.s32.totalorder %s9, 3
    %p113 = pnand %p111, %p112
    %p114 = pneg %p113
    // Predicated region
    $region9: #{cnn_forward.5} parent=5 // pred_check
      _
    $region10: #{cnn_forward.5} parent=5 // pred_check_branch
      %116 = sbr.rel (%p113) target = $region12
    $region11: #{cnn_forward.5} parent=5 // pred_region
      %s117 = ssub.s32 %s9, 1
      // Predicated region
      $region13: #{cnn_forward.5} parent=11 // pred_check
        %p118 = pneg %p56
      $region14: #{cnn_forward.5} parent=11 // pred_check_branch
        %120 = sbr.rel (%p118) target = $region16
      $region15: #{cnn_forward.5} parent=11 // pred_region
        _
      $region16: #{cnn_forward.5} parent=11 // pred_fallthru
        _
      // Predicated region
      $region17: #{cnn_forward.5} parent=11 // pred_check
        %p121 = pneg %p77
      $region18: #{cnn_forward.5} parent=11 // pred_check_branch
        %123 = sbr.rel (%p121) target = $region20
      $region19: #{cnn_forward.5} parent=11 // pred_region
        _
      $region20: #{cnn_forward.5} parent=11 // pred_fallthru
        _
    $region12: #{cnn_forward.5} parent=5 // pred_fallthru
      _
    %p124 = scmp.lt.s32.totalorder %s9, 2
    // Predicated region
    $region21: #{cnn_forward.5} parent=5 // pred_check
      %p125 = pneg %p124
    $region22: #{cnn_forward.5} parent=5 // pred_check_branch
      %127 = sbr.rel (%p125) target = $region24
    $region23: #{cnn_forward.5} parent=5 // pred_region
      // Predicated region
      $region25: #{cnn_forward.5} parent=23 // pred_check
        %p128 = pneg %p29
      $region26: #{cnn_forward.5} parent=23 // pred_check_branch
        %130 = sbr.rel (%p128) target = $region28
      $region27: #{cnn_forward.5} parent=23 // pred_region
        %p131 = scmp.lt.s32.totalorder %s9, 1
        %s132 = scalar_select %p131, %s9, 1
        %s133 = smul.addr %s132, 64
        %s134 = smul.addr %s133, 4
        %s135 = scalar_lea.vmem %s0, %s134
      $region28: #{cnn_forward.5} parent=23 // pred_fallthru
        _
    $region24: #{cnn_forward.5} parent=5 // pred_fallthru
      _
    %p136 = scmp.le.s32.totalorder 1, %s9
    %p137 = scmp.lt.s32.totalorder %s9, 3
    %p138 = pnand %p136, %p137
    %p139 = pneg %p138
    // Predicated region
    $region29: #{cnn_forward.5} parent=5 // pred_check
      _
    $region30: #{cnn_forward.5} parent=5 // pred_check_branch
      %141 = sbr.rel (%p138) target = $region32
    $region31: #{cnn_forward.5} parent=5 // pred_region
      %s142 = ssub.s32 %s9, 1
      %p143 = scmp.lt.s32.totalorder %s14, 1
      %s144 = scalar_select %p143, %s14, 1
      %s145 = smul.addr %s144, 64
      %s146 = smul.addr %s145, 4
      %s147 = scalar_lea.vmem %s0, %s146
      %p148 = pneg %p35
      %p149 = pneg %p32
      %p150 = pneg %p56
      %p151 = pneg %p53
      %p152 = pneg %p77
      %p153 = pneg %p74
      %p154 = pneg %p103
      %p155 = pneg %p100
      %p156 = scmp.lt.s32.totalorder %s14, 1
      %s157 = scalar_select %p156, %s14, 1
      %s158 = smul.addr %s157, 8
      %s159 = smul.addr %s158, 4
      %s160 = scalar_lea.vmem %s3, %s159
      %p161 = scmp.lt.s32.totalorder %s14, 1
      %s162 = scalar_select %p161, %s14, 1
      %s163 = smul.addr %s162, 64
      %s164 = smul.addr %s163, 4
      %s165 = scalar_lea.vmem %s0, %s164
      %p166 = scmp.lt.s32.totalorder %s14, 1
      %s167 = scalar_select %p166, %s14, 1
      %s168 = smul.addr %s167, 8
      %s169 = smul.addr %s168, 4
      %s170 = scalar_lea.vmem %s3, %s169
      %v172 = vld [vmem:[%s165] sm:$0xff]
      %v173 = vld [vmem:[%s165 + $0x8] sm:$0xff]
      %v174 = vld [vmem:[%s165 + $0x10] sm:$0xff]
      %v175 = vld [vmem:[%s165 + $0x18] sm:$0xff]
      %v176 = vld [vmem:[%s165 + $0x20] sm:$0xff]
      %v177 = vld [vmem:[%s165 + $0x28] sm:$0xff]
      %v178 = vld [vmem:[%s165 + $0x30] sm:$0xff]
      %v179 = vld [vmem:[%s165 + $0x38] sm:$0xff]
      %v180 = vld [vmem:[%s165 + $0x40] sm:$0xff]
      %v181 = vld [vmem:[%s165 + $0x48] sm:$0xff]
      %v182 = vld [vmem:[%s165 + $0x50] sm:$0xff]
      %v183 = vld [vmem:[%s165 + $0x58] sm:$0xff]
      %v184 = vld [vmem:[%s165 + $0x60] sm:$0xff]
      %v185 = vld [vmem:[%s165 + $0x68] sm:$0xff]
      %v186 = vld [vmem:[%s165 + $0x70] sm:$0xff]
      %v187 = vld [vmem:[%s165 + $0x78] sm:$0xff]
      %v188 = vld [vmem:[%s165 + $0x80] sm:$0xff]
      %v189 = vld [vmem:[%s165 + $0x88] sm:$0xff]
      %v190 = vld [vmem:[%s165 + $0x90] sm:$0xff]
      %v191 = vld [vmem:[%s165 + $0x98] sm:$0xff]
      %v192 = vld [vmem:[%s165 + $0xa0] sm:$0xff]
      %v193 = vld [vmem:[%s165 + $0xa8] sm:$0xff]
      %v194 = vld [vmem:[%s165 + $0xb0] sm:$0xff]
      %v195 = vld [vmem:[%s165 + $0xb8] sm:$0xff]
      %v196 = vld [vmem:[%s165 + $0xc0] sm:$0xff]
      %v197 = vld [vmem:[%s165 + $0xc8] sm:$0xff]
      %v198 = vld [vmem:[%s165 + $0xd0] sm:$0xff]
      %v199 = vld [vmem:[%s165 + $0xd8] sm:$0xff]
      %v200 = vld [vmem:[%s165 + $0xe0] sm:$0xff]
      %v201 = vld [vmem:[%s165 + $0xe8] sm:$0xff]
      %v202 = vld [vmem:[%s165 + $0xf0] sm:$0xff]
      %v203 = vld [vmem:[%s165 + $0xf8] sm:$0xff]
      %v204 = vld [vmem:[%s1] sm:$0xf]
      %v205 = vld [vmem:[%s1 + $0x4] sm:$0xf]
      %v206 = vld [vmem:[%s1 + $0x8] sm:$0xf]
      %v207 = vld [vmem:[%s1 + $0xc] sm:$0xf]
      %v208 = vld [vmem:[%s1 + $0x10] sm:$0xf]
      %v209 = vld [vmem:[%s1 + $0x14] sm:$0xf]
      %v210 = vld [vmem:[%s1 + $0x18] sm:$0xf]
      %v211 = vld [vmem:[%s1 + $0x1c] sm:$0xf]
      %v212 = vld [vmem:[%s1 + $0x20] sm:$0xf]
      %v213 = vld [vmem:[%s1 + $0x24] sm:$0xf]
      %v214 = vld [vmem:[%s1 + $0x28] sm:$0xf]
      %v215 = vld [vmem:[%s1 + $0x2c] sm:$0xf]
      %v216 = vld [vmem:[%s1 + $0x30] sm:$0xf]
      %v217 = vld [vmem:[%s1 + $0x34] sm:$0xf]
      %v218 = vld [vmem:[%s1 + $0x38] sm:$0xf]
      %v219 = vld [vmem:[%s1 + $0x3c] sm:$0xf]
      %v220 = vld [vmem:[%s1 + $0x40] sm:$0xf]
      %v221 = vld [vmem:[%s1 + $0x44] sm:$0xf]
      %v222 = vld [vmem:[%s2] sm:$0x1]
      %v224 = vlaneseq
      %v225 = vshrl.u32 %v224, 7
      %v226 = vsub.s32 0, %v225
      %v227 = vrot.slane %v222, %v226
      %v261 = vunpack.c.l.b16 %v172
      %v262 = vunpack.c.h.b16 %v172
      %v263 = vunpack.c.l.b16 %v173
      %v264 = vunpack.c.h.b16 %v173
      %v265 = vunpack.c.l.b16 %v174
      %v266 = vunpack.c.h.b16 %v174
      %v267 = vunpack.c.l.b16 %v175
      %v268 = vunpack.c.h.b16 %v175
      %v269 = vunpack.c.l.b16 %v176
      %v270 = vunpack.c.h.b16 %v176
      %v271 = vunpack.c.l.b16 %v177
      %v272 = vunpack.c.h.b16 %v177
      %v273 = vunpack.c.l.b16 %v178
      %v274 = vunpack.c.h.b16 %v178
      %v275 = vunpack.c.l.b16 %v179
      %v276 = vunpack.c.h.b16 %v179
      %v277 = vunpack.c.l.b16 %v180
      %v278 = vunpack.c.h.b16 %v180
      %v279 = vunpack.c.l.b16 %v181
      %v280 = vunpack.c.h.b16 %v181
      %v281 = vunpack.c.l.b16 %v182
      %v282 = vunpack.c.h.b16 %v182
      %v283 = vunpack.c.l.b16 %v183
      %v284 = vunpack.c.h.b16 %v183
      %v285 = vunpack.c.l.b16 %v184
      %v286 = vunpack.c.h.b16 %v184
      %v287 = vunpack.c.l.b16 %v185
      %v288 = vunpack.c.h.b16 %v185
      %v289 = vunpack.c.l.b16 %v186
      %v290 = vunpack.c.h.b16 %v186
      %v291 = vunpack.c.l.b16 %v187
      %v292 = vunpack.c.h.b16 %v187
      %v293 = vunpack.c.l.b16 %v188
      %v294 = vunpack.c.h.b16 %v188
      %v295 = vunpack.c.l.b16 %v189
      %v296 = vunpack.c.h.b16 %v189
      %v297 = vunpack.c.l.b16 %v190
      %v298 = vunpack.c.h.b16 %v190
      %v299 = vunpack.c.l.b16 %v191
      %v300 = vunpack.c.h.b16 %v191
      %v301 = vunpack.c.l.b16 %v192
      %v302 = vunpack.c.h.b16 %v192
      %v303 = vunpack.c.l.b16 %v193
      %v304 = vunpack.c.h.b16 %v193
      %v305 = vunpack.c.l.b16 %v194
      %v306 = vunpack.c.h.b16 %v194
      %v307 = vunpack.c.l.b16 %v195
      %v308 = vunpack.c.h.b16 %v195
      %v309 = vunpack.c.l.b16 %v196
      %v310 = vunpack.c.h.b16 %v196
      %v311 = vunpack.c.l.b16 %v197
      %v312 = vunpack.c.h.b16 %v197
      %v313 = vunpack.c.l.b16 %v198
      %v314 = vunpack.c.h.b16 %v198
      %v315 = vunpack.c.l.b16 %v199
      %v316 = vunpack.c.h.b16 %v199
      %v317 = vunpack.c.l.b16 %v200
      %v318 = vunpack.c.h.b16 %v200
      %v319 = vunpack.c.l.b16 %v201
      %v320 = vunpack.c.h.b16 %v201
      %v321 = vunpack.c.l.b16 %v202
      %v322 = vunpack.c.h.b16 %v202
      %v323 = vunpack.c.l.b16 %v203
      %v324 = vunpack.c.h.b16 %v203
      %v325 = vpack.c.b16 %v263, %v261
      %v326 = vpack.c.b16 %v264, %v262
      %v327 = vpack.c.b16 %v267, %v265
      %v328 = vpack.c.b16 %v268, %v266
      %v329 = vpack.c.b16 %v271, %v269
      %v330 = vpack.c.b16 %v272, %v270
      %v331 = vpack.c.b16 %v275, %v273
      %v332 = vpack.c.b16 %v276, %v274
      %v333 = vpack.c.b16 %v279, %v277
      %v334 = vpack.c.b16 %v280, %v278
      %v335 = vpack.c.b16 %v283, %v281
      %v336 = vpack.c.b16 %v284, %v282
      %v337 = vpack.c.b16 %v287, %v285
      %v338 = vpack.c.b16 %v288, %v286
      %v339 = vpack.c.b16 %v291, %v289
      %v340 = vpack.c.b16 %v292, %v290
      %v341 = vpack.c.b16 %v295, %v293
      %v342 = vpack.c.b16 %v296, %v294
      %v343 = vpack.c.b16 %v299, %v297
      %v344 = vpack.c.b16 %v300, %v298
      %v345 = vpack.c.b16 %v303, %v301
      %v346 = vpack.c.b16 %v304, %v302
      %v347 = vpack.c.b16 %v307, %v305
      %v348 = vpack.c.b16 %v308, %v306
      %v349 = vpack.c.b16 %v311, %v309
      %v350 = vpack.c.b16 %v312, %v310
      %v351 = vpack.c.b16 %v315, %v313
      %v352 = vpack.c.b16 %v316, %v314
      %v353 = vpack.c.b16 %v319, %v317
      %v354 = vpack.c.b16 %v320, %v318
      %v355 = vpack.c.b16 %v323, %v321
      %v356 = vpack.c.b16 %v324, %v322
      %v391 = vunpack.c.l.b16 %v204
      %v392 = vunpack.c.l.b16 %v205
      %v393 = vunpack.c.l.b16 %v206
      %v394 = vunpack.c.l.b16 %v207
      %v395 = vunpack.c.l.b16 %v208
      %v396 = vunpack.c.l.b16 %v209
      %v397 = vunpack.c.l.b16 %v210
      %v398 = vunpack.c.l.b16 %v211
      %v399 = vunpack.c.l.b16 %v212
      %v400 = vunpack.c.l.b16 %v213
      %v401 = vunpack.c.l.b16 %v214
      %v402 = vunpack.c.l.b16 %v215
      %v403 = vunpack.c.l.b16 %v216
      %v404 = vunpack.c.l.b16 %v217
      %v405 = vunpack.c.l.b16 %v218
      %v406 = vunpack.c.l.b16 %v219
      %v407 = vunpack.c.l.b16 %v220
      %v408 = vunpack.c.l.b16 %v221
      %v409 = vpack.c.b16 %v392, %v391
      %v410 = vpack.c.b16 %v394, %v393
      %v411 = vpack.c.b16 %v396, %v395
      %v412 = vpack.c.b16 %v398, %v397
      %v413 = vpack.c.b16 %v400, %v399
      %v414 = vpack.c.b16 %v402, %v401
      %v415 = vpack.c.b16 %v404, %v403
      %v416 = vpack.c.b16 %v406, %v405
      %v417 = vpack.c.b16 %v408, %v407
      %vm427 = vcmask 130048
      %v429 = vsel %vm427, %v326, 0
      %v432 = vsel %vm427, %v328, 0
      %v435 = vsel %vm427, %v330, 0
      %v438 = vsel %vm427, %v332, 0
      %v441 = vsel %vm427, %v334, 0
      %v444 = vsel %vm427, %v336, 0
      %v447 = vsel %vm427, %v338, 0
      %v450 = vsel %vm427, %v340, 0
      %v453 = vsel %vm427, %v342, 0
      %v456 = vsel %vm427, %v344, 0
      %v459 = vsel %vm427, %v346, 0
      %v462 = vsel %vm427, %v348, 0
      %v465 = vsel %vm427, %v350, 0
      %v468 = vsel %vm427, %v352, 0
      %v471 = vsel %vm427, %v354, 0
      %v474 = vsel %vm427, %v356, 0
      %476 = vmatprep.subr.bf16.mxu0 0
      %477 = vmatpush1.bf16.msra.mxu0 %v416
      %478 = vmatprep.subr.bf16.mxu0 0
      %479 = vmatpush1.bf16.msra.mxu0 %v415
      %480 = vmatprep.subr.bf16.mxu0 0
      %481 = vmatpush1.bf16.msra.mxu0 %v414
      %482 = vmatprep.subr.bf16.mxu0 0
      %483 = vmatpush1.bf16.msra.mxu0 %v413
      %484 = vmatprep.subr.bf16.mxu0 0
      %485 = vmatpush1.bf16.msra.mxu0 %v412
      %486 = vmatprep.subr.bf16.mxu0 0
      %487 = vmatpush1.bf16.msra.mxu0 %v411
      %488 = vmatprep.subr.bf16.mxu0 0
      %489 = vmatpush1.bf16.msra.mxu0 %v410
      %490 = vmatprep.subr.bf16.mxu0 0
      %491 = vmatpush1.bf16.msra.mxu0 %v409
      %492 = vmatprep.subr.bf16.mxu0 0
      %493 = vmatpush2.bf16.msra.mxu0 0
      %494 = vmatprep.subr.bf16.mxu0 0
      %495 = vmatpush2.bf16.msra.mxu0 0
      %496 = vmatprep.subr.bf16.mxu0 0
      %497 = vmatpush2.bf16.msra.mxu0 0
      %498 = vmatprep.subr.bf16.mxu0 0
      %499 = vmatpush2.bf16.msra.mxu0 0
      %500 = vmatprep.subr.bf16.mxu0 0
      %501 = vmatpush2.bf16.msra.mxu0 0
      %502 = vmatprep.subr.bf16.mxu0 0
      %503 = vmatpush2.bf16.msra.mxu0 0
      %504 = vmatprep.subr.bf16.mxu0 0
      %505 = vmatpush2.bf16.msra.mxu0 0
      %506 = vmatprep.subr.bf16.mxu0 0
      %507 = vmatpush2.bf16.msra.mxu0 %v417
      %508 = vmatprep.mubr.bf16.mxu0 %v429
      %509 = vmatmul.mubr.bf16.gmra.mxu0 %v325
      %v510 = vpop.f32.mrf.mxu0
      %v511 = vadd.f32 %v227, %v510
      %v512 = vpop.f32.mrf.mxu0
      %v513 = vpop.f32.mrf.mxu0
      %v514 = vadd.f32 %v227, %v513
      %v515 = vpop.f32.mrf.mxu0
      %516 = vmatprep.mubr.bf16.mxu0 %v432
      %517 = vmatmul.mubr.bf16.gmra.mxu0 %v327
      %v518 = vpop.f32.mrf.mxu0
      %v519 = vadd.f32 %v227, %v518
      %v520 = vpop.f32.mrf.mxu0
      %v521 = vpop.f32.mrf.mxu0
      %v522 = vadd.f32 %v227, %v521
      %v523 = vpop.f32.mrf.mxu0
      %524 = vmatprep.mubr.bf16.mxu0 %v435
      %525 = vmatmul.mubr.bf16.gmra.mxu0 %v329
      %v526 = vpop.f32.mrf.mxu0
      %v527 = vadd.f32 %v227, %v526
      %v528 = vpop.f32.mrf.mxu0
      %v529 = vpop.f32.mrf.mxu0
      %v530 = vadd.f32 %v227, %v529
      %v531 = vpop.f32.mrf.mxu0
      %532 = vmatprep.mubr.bf16.mxu0 %v438
      %533 = vmatmul.mubr.bf16.gmra.mxu0 %v331
      %v534 = vpop.f32.mrf.mxu0
      %v535 = vadd.f32 %v227, %v534
      %v536 = vpop.f32.mrf.mxu0
      %v537 = vpop.f32.mrf.mxu0
      %v538 = vadd.f32 %v227, %v537
      %v539 = vpop.f32.mrf.mxu0
      %540 = vmatprep.mubr.bf16.mxu0 %v441
      %541 = vmatmul.mubr.bf16.gmra.mxu0 %v333
      %v542 = vpop.f32.mrf.mxu0
      %v543 = vadd.f32 %v227, %v542
      %v544 = vpop.f32.mrf.mxu0
      %v545 = vpop.f32.mrf.mxu0
      %v546 = vadd.f32 %v227, %v545
      %v547 = vpop.f32.mrf.mxu0
      %548 = vmatprep.mubr.bf16.mxu0 %v444
      %549 = vmatmul.mubr.bf16.gmra.mxu0 %v335
      %v550 = vpop.f32.mrf.mxu0
      %v551 = vadd.f32 %v227, %v550
      %v552 = vpop.f32.mrf.mxu0
      %v553 = vpop.f32.mrf.mxu0
      %v554 = vadd.f32 %v227, %v553
      %v555 = vpop.f32.mrf.mxu0
      %556 = vmatprep.mubr.bf16.mxu0 %v447
      %557 = vmatmul.mubr.bf16.gmra.mxu0 %v337
      %v558 = vpop.f32.mrf.mxu0
      %v559 = vadd.f32 %v227, %v558
      %v560 = vpop.f32.mrf.mxu0
      %v561 = vpop.f32.mrf.mxu0
      %v562 = vadd.f32 %v227, %v561
      %v563 = vpop.f32.mrf.mxu0
      %564 = vmatprep.mubr.bf16.mxu0 %v450
      %565 = vmatmul.mubr.bf16.gmra.mxu0 %v339
      %v566 = vpop.f32.mrf.mxu0
      %v567 = vadd.f32 %v227, %v566
      %v568 = vpop.f32.mrf.mxu0
      %v569 = vpop.f32.mrf.mxu0
      %v570 = vadd.f32 %v227, %v569
      %v571 = vpop.f32.mrf.mxu0
      %572 = vmatprep.mubr.bf16.mxu0 %v453
      %573 = vmatmul.mubr.bf16.gmra.mxu0 %v341
      %v574 = vpop.f32.mrf.mxu0
      %v575 = vadd.f32 %v227, %v574
      %v576 = vpop.f32.mrf.mxu0
      %v577 = vpop.f32.mrf.mxu0
      %v578 = vadd.f32 %v227, %v577
      %v579 = vpop.f32.mrf.mxu0
      %580 = vmatprep.mubr.bf16.mxu0 %v456
      %581 = vmatmul.mubr.bf16.gmra.mxu0 %v343
      %v582 = vpop.f32.mrf.mxu0
      %v583 = vadd.f32 %v227, %v582
      %v584 = vpop.f32.mrf.mxu0
      %v585 = vpop.f32.mrf.mxu0
      %v586 = vadd.f32 %v227, %v585
      %v587 = vpop.f32.mrf.mxu0
      %588 = vmatprep.mubr.bf16.mxu0 %v459
      %589 = vmatmul.mubr.bf16.gmra.mxu0 %v345
      %v590 = vpop.f32.mrf.mxu0
      %v591 = vadd.f32 %v227, %v590
      %v592 = vpop.f32.mrf.mxu0
      %v593 = vpop.f32.mrf.mxu0
      %v594 = vadd.f32 %v227, %v593
      %v595 = vpop.f32.mrf.mxu0
      %596 = vmatprep.mubr.bf16.mxu0 %v462
      %597 = vmatmul.mubr.bf16.gmra.mxu0 %v347
      %v598 = vpop.f32.mrf.mxu0
      %v599 = vadd.f32 %v227, %v598
      %v600 = vpop.f32.mrf.mxu0
      %v601 = vpop.f32.mrf.mxu0
      %v602 = vadd.f32 %v227, %v601
      %v603 = vpop.f32.mrf.mxu0
      %604 = vmatprep.mubr.bf16.mxu0 %v465
      %605 = vmatmul.mubr.bf16.gmra.mxu0 %v349
      %v606 = vpop.f32.mrf.mxu0
      %v607 = vadd.f32 %v227, %v606
      %v608 = vpop.f32.mrf.mxu0
      %v609 = vpop.f32.mrf.mxu0
      %v610 = vadd.f32 %v227, %v609
      %v611 = vpop.f32.mrf.mxu0
      %612 = vmatprep.mubr.bf16.mxu0 %v468
      %613 = vmatmul.mubr.bf16.gmra.mxu0 %v351
      %v614 = vpop.f32.mrf.mxu0
      %v615 = vadd.f32 %v227, %v614
      %v616 = vpop.f32.mrf.mxu0
      %v617 = vpop.f32.mrf.mxu0
      %v618 = vadd.f32 %v227, %v617
      %v619 = vpop.f32.mrf.mxu0
      %620 = vmatprep.mubr.bf16.mxu0 %v471
      %621 = vmatmul.mubr.bf16.gmra.mxu0 %v353
      %v622 = vpop.f32.mrf.mxu0
      %v623 = vadd.f32 %v227, %v622
      %v624 = vpop.f32.mrf.mxu0
      %v625 = vpop.f32.mrf.mxu0
      %v626 = vadd.f32 %v227, %v625
      %v627 = vpop.f32.mrf.mxu0
      %628 = vmatprep.mubr.bf16.mxu0 %v474
      %629 = vmatmul.mubr.bf16.gmra.mxu0 %v355
      %v630 = vpop.f32.mrf.mxu0
      %v631 = vadd.f32 %v227, %v630
      %v632 = vpop.f32.mrf.mxu0
      %v633 = vpop.f32.mrf.mxu0
      %v634 = vadd.f32 %v227, %v633
      %v635 = vpop.f32.mrf.mxu0
      %636 = vdwg.mxu0
      %v637 = vmax.f32 %v511, 0.0
      %v638 = vmax.f32 %v514, 0.0
      %v639 = vmax.f32 %v519, 0.0
      %v640 = vmax.f32 %v522, 0.0
      %v641 = vmax.f32 %v527, 0.0
      %v642 = vmax.f32 %v530, 0.0
      %v643 = vmax.f32 %v535, 0.0
      %v644 = vmax.f32 %v538, 0.0
      %v645 = vmax.f32 %v543, 0.0
      %v646 = vmax.f32 %v546, 0.0
      %v647 = vmax.f32 %v551, 0.0
      %v648 = vmax.f32 %v554, 0.0
      %v649 = vmax.f32 %v559, 0.0
      %v650 = vmax.f32 %v562, 0.0
      %v651 = vmax.f32 %v567, 0.0
      %v652 = vmax.f32 %v570, 0.0
      %v653 = vmax.f32 %v575, 0.0
      %v654 = vmax.f32 %v578, 0.0
      %v655 = vmax.f32 %v583, 0.0
      %v656 = vmax.f32 %v586, 0.0
      %v657 = vmax.f32 %v591, 0.0
      %v658 = vmax.f32 %v594, 0.0
      %v659 = vmax.f32 %v599, 0.0
      %v660 = vmax.f32 %v602, 0.0
      %v661 = vmax.f32 %v607, 0.0
      %v662 = vmax.f32 %v610, 0.0
      %v663 = vmax.f32 %v615, 0.0
      %v664 = vmax.f32 %v618, 0.0
      %v665 = vmax.f32 %v623, 0.0
      %v666 = vmax.f32 %v626, 0.0
      %v667 = vmax.f32 %v631, 0.0
      %v668 = vmax.f32 %v634, 0.0
      %v669 = vmax.f32 %v637, %v645
      %v670 = vmax.f32 %v638, %v646
      %v671 = vmax.f32 %v639, %v647
      %v672 = vmax.f32 %v640, %v648
      %v673 = vmax.f32 %v641, %v649
      %v674 = vmax.f32 %v642, %v650
      %v675 = vmax.f32 %v643, %v651
      %v676 = vmax.f32 %v644, %v652
      %v677 = vmax.f32 %v653, %v661
      %v678 = vmax.f32 %v654, %v662
      %v679 = vmax.f32 %v655, %v663
      %v680 = vmax.f32 %v656, %v664
      %v681 = vmax.f32 %v657, %v665
      %v682 = vmax.f32 %v658, %v666
      %v683 = vmax.f32 %v659, %v667
      %v684 = vmax.f32 %v660, %v668
      %v685 = vmax.f32 %v669, %v677
      %v686 = vmax.f32 %v670, %v678
      %v687 = vmax.f32 %v671, %v679
      %v688 = vmax.f32 %v672, %v680
      %v689 = vmax.f32 %v673, %v681
      %v690 = vmax.f32 %v674, %v682
      %v691 = vmax.f32 %v675, %v683
      %v692 = vmax.f32 %v676, %v684
      %v693 = vpack.c.bf16 %v686, %v685
      %v694 = vpack.c.bf16 %v688, %v687
      %v695 = vpack.c.bf16 %v690, %v689
      %v696 = vpack.c.bf16 %v692, %v691
      %v701 = vunpack.c.l.b16 %v693
      %v702 = vunpack.c.h.b16 %v693
      %v703 = vunpack.c.l.b16 %v694
      %v704 = vunpack.c.h.b16 %v694
      %v705 = vunpack.c.l.b16 %v695
      %v706 = vunpack.c.h.b16 %v695
      %v707 = vunpack.c.l.b16 %v696
      %v708 = vunpack.c.h.b16 %v696
      %v709 = vpack.c.b16 %v701, %v701
      %v710 = vpack.c.b16 %v702, %v702
      %v711 = vpack.c.b16 %v703, %v703
      %v712 = vpack.c.b16 %v704, %v704
      %v713 = vpack.c.b16 %v705, %v705
      %v714 = vpack.c.b16 %v706, %v706
      %v715 = vpack.c.b16 %v707, %v707
      %v716 = vpack.c.b16 %v708, %v708
      %725 = vst [vmem:[%s170] sm:$0xf] %v709
      %726 = vst [vmem:[%s170 + $0x4] sm:$0xf] %v710
      %727 = vst [vmem:[%s170 + $0x8] sm:$0xf] %v711
      %728 = vst [vmem:[%s170 + $0xc] sm:$0xf] %v712
      %729 = vst [vmem:[%s170 + $0x10] sm:$0xf] %v713
      %730 = vst [vmem:[%s170 + $0x14] sm:$0xf] %v714
      %731 = vst [vmem:[%s170 + $0x18] sm:$0xf] %v715
      %732 = vst [vmem:[%s170 + $0x1c] sm:$0xf] %v716
      %p733 = scmp.lt.s32.totalorder %s14, 1
      %s734 = scalar_select %p733, %s14, 1
      %s735 = smul.addr %s734, 8
      %s736 = smul.addr %s735, 4
      %s737 = scalar_lea.vmem %s3, %s736
      // Predicated region
      $region33: #{cnn_forward.5} parent=31 // pred_check
        %p738 = pneg %p100
      $region34: #{cnn_forward.5} parent=31 // pred_check_branch
        %740 = sbr.rel (%p738) target = $region36
      $region35: #{cnn_forward.5} parent=31 // pred_region
        _
      $region36: #{cnn_forward.5} parent=31 // pred_fallthru
        _
    $region32: #{cnn_forward.5} parent=5 // pred_fallthru
      _
    %p741 = scmp.le.s32.totalorder 2, %s9
    // Predicated region
    $region37: #{cnn_forward.5} parent=5 // pred_check
      %p742 = pneg %p741
    $region38: #{cnn_forward.5} parent=5 // pred_check_branch
      %744 = sbr.rel (%p742) target = $region40
    $region39: #{cnn_forward.5} parent=5 // pred_region
      %s745 = ssub.s32 %s9, 2
      // Predicated region
      $region41: #{cnn_forward.5} parent=39 // pred_check
        %p746 = pneg %p106
      $region42: #{cnn_forward.5} parent=39 // pred_check_branch
        %748 = sbr.rel (%p746) target = $region44
      $region43: #{cnn_forward.5} parent=39 // pred_region
        %p749 = scmp.lt.s32.totalorder %s15, 1
        %s750 = scalar_select %p749, %s15, 1
        %s751 = smul.addr %s750, 8
        %s752 = smul.addr %s751, 4
        %s753 = scalar_lea.vmem %s3, %s752
      $region44: #{cnn_forward.5} parent=39 // pred_fallthru
        _
    $region40: #{cnn_forward.5} parent=5 // pred_fallthru
      _
  $region6: #{cnn_forward.5} parent=0 // loop_footer
    %s13 = sadd.s32 1, %s9
  $region7: #{cnn_forward.5} parent=0 // loop_footer_branch
    %8 = sbr.rel target = $region3
  $region8: #{cnn_forward.5} parent=0 // loop_exit
    _

// kernel: cnn_forward.6
$region0: #{cnn_forward.6}
  #allocation0 [shape = 'u32[]', space=smem, size = 0x4, offset = 0x4, fixed_abs, tag = 'smem constant byte address 0x4 - core index']
  #allocation1 [shape = 'u32[144,128]{1,0:T(1,128)}', space=vmem, size = 0x12000, scoped, tag = 'internal scratch']
  %s0 = inlined_call_operand.vmem [shape: bf16[2,4,16,288], index: 0, kind: input, shape index: {}]
  %s1 = inlined_call_operand.vmem [shape: bf16[288,128], index: 1, kind: input, shape index: {}]
  %s2 = inlined_call_operand.vmem [shape: f32[1,128], index: 2, kind: input, shape index: {}]
  %s3 = inlined_call_operand.vmem [shape: bf16[2,16,128], index: 3, kind: output, shape index: {}]
  %s4 = sld [smem:[#allocation0]]
  $region45: #{cnn_forward.6} parent=0
    _
  %s6 = ssub.s32 1, %s4
  %s7 = scalar_select 0, %s6, %s4
  loop: start=0, step=1, limit=4
  $region2: #{cnn_forward.6} parent=0 // loop_pre_header
    _
  $region3: #{cnn_forward.6} parent=0 // loop_header
    %s9 = sphi 0, %s13
    %p10 = scmp.ge.s32.totalorder %s9, 4
    %s19 = sphi 0, %s21
    %s22 = sphi 0, %s19
    %s23 = sphi 0, %s22
    %s39 = sphi 0, %s23
    %s43 = sphi 0, %s43
    %s45 = sphi 0, %s43
    %s46 = sphi 0, %s45
    %s60 = sphi 0, %s46
    %s64 = sphi 0, %s64
    %s66 = sphi 0, %s64
    %s67 = sphi 0, %s66
    %s81 = sphi 0, %s67
    %s87 = sphi 0, %s89
    %s90 = sphi 0, %s87
    %s91 = sphi 0, %s90
    %s107 = sphi 0, %s91
  $region4: #{cnn_forward.6} parent=0 // loop_header_branch
    %12 = sbr.rel (%p10) target = $region8
  $region5: #{cnn_forward.6} parent=0 // loop_body
    %s14 = ssub.s32 %s9, 1
    %s15 = ssub.s32 %s9, 2
    %s16 = sadd.s32 %s9, 1
    %s17 = ssub.s32 %s9, %s16
    %p18 = scmp.eq.s32.totalorder %s17, 0
    %s20 = sadd.s32 %s19, 1
    %s21 = scalar_select %p18, %s19, %s20
    %p24 = pneg %p18
    %p25 = scmp.eq.s32.totalorder %s9, 1
    %p26 = por %p24, %p25
    %p27 = scmp.ne.s32.totalorder %s19, %s22
    %p28 = scmp.eq.s32.totalorder %s9, 0
    %p29 = por %p27, %p28
    %p30 = scmp.ne.s32.totalorder %s19, %s22
    %p31 = scmp.eq.s32.totalorder %s14, 1
    %p32 = por %p30, %p31
    %p33 = scmp.ne.s32.totalorder %s22, %s23
    %p34 = scmp.eq.s32.totalorder %s14, 0
    %p35 = por %p33, %p34
    %p36 = scmp.ne.s32.totalorder %s22, %s23
    %p37 = scmp.eq.s32.totalorder %s15, 1
    %p38 = por %p36, %p37
    %p40 = scmp.ne.s32.totalorder %s23, %s39
    %p41 = scmp.eq.s32.totalorder %s15, 0
    %p42 = por %p40, %p41
    %s44 = sadd.s32 %s43, 1
    %p47 = scmp.eq.s32.totalorder %s9, 1
    %p48 = scmp.ne.s32.totalorder %s43, %s45
    %p49 = scmp.eq.s32.totalorder %s9, 0
    %p50 = por %p48, %p49
    %p51 = scmp.ne.s32.totalorder %s43, %s45
    %p52 = scmp.eq.s32.totalorder %s14, 1
    %p53 = por %p51, %p52
    %p54 = scmp.ne.s32.totalorder %s45, %s46
    %p55 = scmp.eq.s32.totalorder %s14, 0
    %p56 = por %p54, %p55
    %p57 = scmp.ne.s32.totalorder %s45, %s46
    %p58 = scmp.eq.s32.totalorder %s15, 1
    %p59 = por %p57, %p58
    %p61 = scmp.ne.s32.totalorder %s46, %s60
    %p62 = scmp.eq.s32.totalorder %s15, 0
    %p63 = por %p61, %p62
    %s65 = sadd.s32 %s64, 1
    %p68 = scmp.eq.s32.totalorder %s9, 1
    %p69 = scmp.ne.s32.totalorder %s64, %s66
    %p70 = scmp.eq.s32.totalorder %s9, 0
    %p71 = por %p69, %p70
    %p72 = scmp.ne.s32.totalorder %s64, %s66
    %p73 = scmp.eq.s32.totalorder %s14, 1
    %p74 = por %p72, %p73
    %p75 = scmp.ne.s32.totalorder %s66, %s67
    %p76 = scmp.eq.s32.totalorder %s14, 0
    %p77 = por %p75, %p76
    %p78 = scmp.ne.s32.totalorder %s66, %s67
    %p79 = scmp.eq.s32.totalorder %s15, 1
    %p80 = por %p78, %p79
    %p82 = scmp.ne.s32.totalorder %s67, %s81
    %p83 = scmp.eq.s32.totalorder %s15, 0
    %p84 = por %p82, %p83
    %s85 = ssub.s32 %s9, %s16
    %p86 = scmp.eq.s32.totalorder %s85, 0
    %s88 = sadd.s32 %s87, 1
    %s89 = scalar_select %p86, %s87, %s88
    %p92 = pneg %p86
    %p93 = scmp.eq.s32.totalorder %s9, 1
    %p94 = por %p92, %p93
    %p95 = scmp.ne.s32.totalorder %s87, %s90
    %p96 = scmp.eq.s32.totalorder %s9, 0
    %p97 = por %p95, %p96
    %p98 = scmp.ne.s32.totalorder %s87, %s90
    %p99 = scmp.eq.s32.totalorder %s14, 1
    %p100 = por %p98, %p99
    %p101 = scmp.ne.s32.totalorder %s90, %s91
    %p102 = scmp.eq.s32.totalorder %s14, 0
    %p103 = por %p101, %p102
    %p104 = scmp.ne.s32.totalorder %s90, %s91
    %p105 = scmp.eq.s32.totalorder %s15, 1
    %p106 = por %p104, %p105
    %p108 = scmp.ne.s32.totalorder %s91, %s107
    %p109 = scmp.eq.s32.totalorder %s15, 0
    %p110 = por %p108, %p109
    %p111 = scmp.le.s32.totalorder 1, %s9
    %p112 = scmp.lt.s32.totalorder %s9, 3
    %p113 = pnand %p111, %p112
    %p114 = pneg %p113
    // Predicated region
    $region9: #{cnn_forward.6} parent=5 // pred_check
      _
    $region10: #{cnn_forward.6} parent=5 // pred_check_branch
      %116 = sbr.rel (%p113) target = $region12
    $region11: #{cnn_forward.6} parent=5 // pred_region
      %s117 = ssub.s32 %s9, 1
      // Predicated region
      $region13: #{cnn_forward.6} parent=11 // pred_check
        %p118 = pneg %p56
      $region14: #{cnn_forward.6} parent=11 // pred_check_branch
        %120 = sbr.rel (%p118) target = $region16
      $region15: #{cnn_forward.6} parent=11 // pred_region
        _
      $region16: #{cnn_forward.6} parent=11 // pred_fallthru
        _
      // Predicated region
      $region17: #{cnn_forward.6} parent=11 // pred_check
        %p121 = pneg %p77
      $region18: #{cnn_forward.6} parent=11 // pred_check_branch
        %123 = sbr.rel (%p121) target = $region20
      $region19: #{cnn_forward.6} parent=11 // pred_region
        _
      $region20: #{cnn_forward.6} parent=11 // pred_fallthru
        _
    $region12: #{cnn_forward.6} parent=5 // pred_fallthru
      _
    %p124 = scmp.lt.s32.totalorder %s9, 2
    // Predicated region
    $region21: #{cnn_forward.6} parent=5 // pred_check
      %p125 = pneg %p124
    $region22: #{cnn_forward.6} parent=5 // pred_check_branch
      %127 = sbr.rel (%p125) target = $region24
    $region23: #{cnn_forward.6} parent=5 // pred_region
      // Predicated region
      $region25: #{cnn_forward.6} parent=23 // pred_check
        %p128 = pneg %p29
      $region26: #{cnn_forward.6} parent=23 // pred_check_branch
        %130 = sbr.rel (%p128) target = $region28
      $region27: #{cnn_forward.6} parent=23 // pred_region
        %p131 = scmp.lt.s32.totalorder %s9, 1
        %s132 = scalar_select %p131, %s9, 1
        %s133 = smul.addr %s132, 24
        %s134 = smul.addr %s133, 4
        %s135 = scalar_lea.vmem %s0, %s134
      $region28: #{cnn_forward.6} parent=23 // pred_fallthru
        _
    $region24: #{cnn_forward.6} parent=5 // pred_fallthru
      _
    %p136 = scmp.le.s32.totalorder 1, %s9
    %p137 = scmp.lt.s32.totalorder %s9, 3
    %p138 = pnand %p136, %p137
    %p139 = pneg %p138
    // Predicated region
    $region29: #{cnn_forward.6} parent=5 // pred_check
      _
    $region30: #{cnn_forward.6} parent=5 // pred_check_branch
      %141 = sbr.rel (%p138) target = $region32
    $region31: #{cnn_forward.6} parent=5 // pred_region
      %s142 = ssub.s32 %s9, 1
      %p143 = scmp.lt.s32.totalorder %s14, 1
      %s144 = scalar_select %p143, %s14, 1
      %s145 = smul.addr %s144, 24
      %s146 = smul.addr %s145, 4
      %s147 = scalar_lea.vmem %s0, %s146
      %p148 = pneg %p35
      %p149 = pneg %p32
      %p150 = pneg %p56
      %p151 = pneg %p53
      %p152 = pneg %p77
      %p153 = pneg %p74
      %p154 = pneg %p103
      %p155 = pneg %p100
      %p156 = scmp.lt.s32.totalorder %s14, 1
      %s157 = scalar_select %p156, %s14, 1
      %s158 = smul.addr %s157, 2
      %s159 = smul.addr %s158, 4
      %s160 = scalar_lea.vmem %s3, %s159
      %p161 = scmp.lt.s32.totalorder %s14, 1
      %s162 = scalar_select %p161, %s14, 1
      %s163 = smul.addr %s162, 24
      %s164 = smul.addr %s163, 4
      %s165 = scalar_lea.vmem %s0, %s164
      %p166 = scmp.lt.s32.totalorder %s14, 1
      %s167 = scalar_select %p166, %s14, 1
      %s168 = smul.addr %s167, 2
      %s169 = smul.addr %s168, 4
      %s170 = scalar_lea.vmem %s3, %s169
      %v172 = vld [vmem:[%s165] sm:$0xff]
      %v173 = vld [vmem:[%s165 + $0x8] sm:$0xf]
      %v174 = vld [vmem:[%s165 + $0xc] sm:$0xff]
      %v175 = vld [vmem:[%s165 + $0x14] sm:$0xf]
      %v176 = vld [vmem:[%s165 + $0x18] sm:$0xff]
      %v177 = vld [vmem:[%s165 + $0x20] sm:$0xf]
      %v178 = vld [vmem:[%s165 + $0x24] sm:$0xff]
      %v179 = vld [vmem:[%s165 + $0x2c] sm:$0xf]
      %v180 = vld [vmem:[%s165 + $0x30] sm:$0xff]
      %v181 = vld [vmem:[%s165 + $0x38] sm:$0xf]
      %v182 = vld [vmem:[%s165 + $0x3c] sm:$0xff]
      %v183 = vld [vmem:[%s165 + $0x44] sm:$0xf]
      %v184 = vld [vmem:[%s165 + $0x48] sm:$0xff]
      %v185 = vld [vmem:[%s165 + $0x50] sm:$0xf]
      %v186 = vld [vmem:[%s165 + $0x54] sm:$0xff]
      %v187 = vld [vmem:[%s165 + $0x5c] sm:$0xf]
      %v188 = vld [vmem:[%s1] sm:$0xf]
      %v189 = vld [vmem:[%s1 + $0x4] sm:$0xf]
      %v190 = vld [vmem:[%s1 + $0x8] sm:$0xf]
      %v191 = vld [vmem:[%s1 + $0xc] sm:$0xf]
      %v192 = vld [vmem:[%s1 + $0x10] sm:$0xf]
      %v193 = vld [vmem:[%s1 + $0x14] sm:$0xf]
      %v194 = vld [vmem:[%s1 + $0x18] sm:$0xf]
      %v195 = vld [vmem:[%s1 + $0x1c] sm:$0xf]
      %v196 = vld [vmem:[%s1 + $0x20] sm:$0xf]
      %v197 = vld [vmem:[%s1 + $0x24] sm:$0xf]
      %v198 = vld [vmem:[%s1 + $0x28] sm:$0xf]
      %v199 = vld [vmem:[%s1 + $0x2c] sm:$0xf]
      %v200 = vld [vmem:[%s1 + $0x30] sm:$0xf]
      %v201 = vld [vmem:[%s1 + $0x34] sm:$0xf]
      %v202 = vld [vmem:[%s1 + $0x38] sm:$0xf]
      %v203 = vld [vmem:[%s1 + $0x3c] sm:$0xf]
      %v204 = vld [vmem:[%s1 + $0x40] sm:$0xf]
      %v205 = vld [vmem:[%s1 + $0x44] sm:$0xf]
      %v206 = vld [vmem:[%s1 + $0x48] sm:$0xf]
      %v207 = vld [vmem:[%s1 + $0x4c] sm:$0xf]
      %v208 = vld [vmem:[%s1 + $0x50] sm:$0xf]
      %v209 = vld [vmem:[%s1 + $0x54] sm:$0xf]
      %v210 = vld [vmem:[%s1 + $0x58] sm:$0xf]
      %v211 = vld [vmem:[%s1 + $0x5c] sm:$0xf]
      %v212 = vld [vmem:[%s1 + $0x60] sm:$0xf]
      %v213 = vld [vmem:[%s1 + $0x64] sm:$0xf]
      %v214 = vld [vmem:[%s1 + $0x68] sm:$0xf]
      %v215 = vld [vmem:[%s1 + $0x6c] sm:$0xf]
      %v216 = vld [vmem:[%s1 + $0x70] sm:$0xf]
      %v217 = vld [vmem:[%s1 + $0x74] sm:$0xf]
      %v218 = vld [vmem:[%s1 + $0x78] sm:$0xf]
      %v219 = vld [vmem:[%s1 + $0x7c] sm:$0xf]
      %v220 = vld [vmem:[%s1 + $0x80] sm:$0xf]
      %v221 = vld [vmem:[%s1 + $0x84] sm:$0xf]
      %v222 = vld [vmem:[%s1 + $0x88] sm:$0xf]
      %v223 = vld [vmem:[%s1 + $0x8c] sm:$0xf]
      %v224 = vld [vmem:[%s2] sm:$0x1]
      %v226 = vlaneseq
      %v227 = vshrl.u32 %v226, 7
      %v228 = vsub.s32 0, %v227
      %v229 = vrot.slane %v224, %v228
      %v247 = vunpack.c.l.b16 %v172
      %v248 = vunpack.c.h.b16 %v172
      %v249 = vunpack.c.l.b16 %v173
      %v250 = vunpack.c.l.b16 %v174
      %v251 = vunpack.c.h.b16 %v174
      %v252 = vunpack.c.l.b16 %v175
      %v253 = vunpack.c.l.b16 %v176
      %v254 = vunpack.c.h.b16 %v176
      %v255 = vunpack.c.l.b16 %v177
      %v256 = vunpack.c.l.b16 %v178
      %v257 = vunpack.c.h.b16 %v178
      %v258 = vunpack.c.l.b16 %v179
      %v259 = vunpack.c.l.b16 %v180
      %v260 = vunpack.c.h.b16 %v180
      %v261 = vunpack.c.l.b16 %v181
      %v262 = vunpack.c.l.b16 %v182
      %v263 = vunpack.c.h.b16 %v182
      %v264 = vunpack.c.l.b16 %v183
      %v265 = vunpack.c.l.b16 %v184
      %v266 = vunpack.c.h.b16 %v184
      %v267 = vunpack.c.l.b16 %v185
      %v268 = vunpack.c.l.b16 %v186
      %v269 = vunpack.c.h.b16 %v186
      %v270 = vunpack.c.l.b16 %v187
      %v271 = vpack.c.b16 %v250, %v247
      %v272 = vpack.c.b16 %v251, %v248
      %v273 = vpack.c.b16 %v252, %v249
      %v274 = vpack.c.b16 %v256, %v253
      %v275 = vpack.c.b16 %v257, %v254
      %v276 = vpack.c.b16 %v258, %v255
      %v277 = vpack.c.b16 %v262, %v259
      %v278 = vpack.c.b16 %v263, %v260
      %v279 = vpack.c.b16 %v264, %v261
      %v280 = vpack.c.b16 %v268, %v265
      %v281 = vpack.c.b16 %v269, %v266
      %v282 = vpack.c.b16 %v270, %v267
      %v327 = vunpack.c.l.b16 %v188
      %v328 = vunpack.c.l.b16 %v189
      %v329 = vunpack.c.l.b16 %v190
      %v330 = vunpack.c.l.b16 %v191
      %v331 = vunpack.c.l.b16 %v192
      %v332 = vunpack.c.l.b16 %v193
      %v333 = vunpack.c.l.b16 %v194
      %v334 = vunpack.c.l.b16 %v195
      %v335 = vunpack.c.l.b16 %v196
      %v336 = vunpack.c.l.b16 %v197
      %v337 = vunpack.c.l.b16 %v198
      %v338 = vunpack.c.l.b16 %v199
      %v339 = vunpack.c.l.b16 %v200
      %v340 = vunpack.c.l.b16 %v201
      %v341 = vunpack.c.l.b16 %v202
      %v342 = vunpack.c.l.b16 %v203
      %v343 = vunpack.c.l.b16 %v204
      %v344 = vunpack.c.l.b16 %v205
      %v345 = vunpack.c.l.b16 %v206
      %v346 = vunpack.c.l.b16 %v207
      %v347 = vunpack.c.l.b16 %v208
      %v348 = vunpack.c.l.b16 %v209
      %v349 = vunpack.c.l.b16 %v210
      %v350 = vunpack.c.l.b16 %v211
      %v351 = vunpack.c.l.b16 %v212
      %v352 = vunpack.c.l.b16 %v213
      %v353 = vunpack.c.l.b16 %v214
      %v354 = vunpack.c.l.b16 %v215
      %v355 = vunpack.c.l.b16 %v216
      %v356 = vunpack.c.l.b16 %v217
      %v357 = vunpack.c.l.b16 %v218
      %v358 = vunpack.c.l.b16 %v219
      %v359 = vunpack.c.l.b16 %v220
      %v360 = vunpack.c.l.b16 %v221
      %v361 = vunpack.c.l.b16 %v222
      %v362 = vunpack.c.l.b16 %v223
      %v363 = vpack.c.b16 %v328, %v327
      %v364 = vpack.c.b16 %v330, %v329
      %v365 = vpack.c.b16 %v332, %v331
      %v366 = vpack.c.b16 %v334, %v333
      %v367 = vpack.c.b16 %v336, %v335
      %v368 = vpack.c.b16 %v338, %v337
      %v369 = vpack.c.b16 %v340, %v339
      %v370 = vpack.c.b16 %v342, %v341
      %v371 = vpack.c.b16 %v344, %v343
      %v372 = vpack.c.b16 %v346, %v345
      %v373 = vpack.c.b16 %v348, %v347
      %v374 = vpack.c.b16 %v350, %v349
      %v375 = vpack.c.b16 %v352, %v351
      %v376 = vpack.c.b16 %v354, %v353
      %v377 = vpack.c.b16 %v356, %v355
      %v378 = vpack.c.b16 %v358, %v357
      %v379 = vpack.c.b16 %v360, %v359
      %v380 = vpack.c.b16 %v362, %v361
      %vm399 = vcmask 261120
      %v401 = vsel %vm399, %v273, 0
      %v404 = vsel %vm399, %v276, 0
      %v407 = vsel %vm399, %v279, 0
      %v410 = vsel %vm399, %v282, 0
      %412 = vmatprep.subr.bf16.mxu0 0
      %413 = vmatpush1.bf16.msra.mxu0 %v370
      %414 = vmatprep.subr.bf16.mxu0 0
      %415 = vmatpush1.bf16.msra.mxu0 %v369
      %416 = vmatprep.subr.bf16.mxu0 0
      %417 = vmatpush1.bf16.msra.mxu0 %v368
      %418 = vmatprep.subr.bf16.mxu0 0
      %419 = vmatpush1.bf16.msra.mxu0 %v367
      %420 = vmatprep.subr.bf16.mxu0 0
      %421 = vmatpush1.bf16.msra.mxu0 %v366
      %422 = vmatprep.subr.bf16.mxu0 0
      %423 = vmatpush1.bf16.msra.mxu0 %v365
      %424 = vmatprep.subr.bf16.mxu0 0
      %425 = vmatpush1.bf16.msra.mxu0 %v364
      %426 = vmatprep.subr.bf16.mxu0 0
      %427 = vmatpush1.bf16.msra.mxu0 %v363
      %428 = vmatprep.subr.bf16.mxu0 0
      %429 = vmatpush2.bf16.msra.mxu0 %v378
      %430 = vmatprep.subr.bf16.mxu0 0
      %431 = vmatpush2.bf16.msra.mxu0 %v377
      %432 = vmatprep.subr.bf16.mxu0 0
      %433 = vmatpush2.bf16.msra.mxu0 %v376
      %434 = vmatprep.subr.bf16.mxu0 0
      %435 = vmatpush2.bf16.msra.mxu0 %v375
      %436 = vmatprep.subr.bf16.mxu0 0
      %437 = vmatpush2.bf16.msra.mxu0 %v374
      %438 = vmatprep.subr.bf16.mxu0 0
      %439 = vmatpush2.bf16.msra.mxu0 %v373
      %440 = vmatprep.subr.bf16.mxu0 0
      %441 = vmatpush2.bf16.msra.mxu0 %v372
      %442 = vmatprep.subr.bf16.mxu0 0
      %443 = vmatpush2.bf16.msra.mxu0 %v371
      %444 = vmatprep.mubr.bf16.mxu0 %v272
      %445 = vmatmul.mubr.bf16.gmra.mxu0 %v271
      %v446 = vpop.f32.mrf.mxu0
      %v447 = vadd.f32 %v229, %v446
      %v448 = vpop.f32.mrf.mxu0
      %v449 = vpop.f32.mrf.mxu0
      %v450 = vadd.f32 %v229, %v449
      %v451 = vpop.f32.mrf.mxu0
      %452 = vmatprep.mubr.bf16.mxu0 %v275
      %453 = vmatmul.mubr.bf16.gmra.mxu0 %v274
      %v454 = vpop.f32.mrf.mxu0
      %v455 = vadd.f32 %v229, %v454
      %v456 = vpop.f32.mrf.mxu0
      %v457 = vpop.f32.mrf.mxu0
      %v458 = vadd.f32 %v229, %v457
      %v459 = vpop.f32.mrf.mxu0
      %460 = vmatprep.mubr.bf16.mxu0 %v278
      %461 = vmatmul.mubr.bf16.gmra.mxu0 %v277
      %v462 = vpop.f32.mrf.mxu0
      %v463 = vadd.f32 %v229, %v462
      %v464 = vpop.f32.mrf.mxu0
      %v465 = vpop.f32.mrf.mxu0
      %v466 = vadd.f32 %v229, %v465
      %v467 = vpop.f32.mrf.mxu0
      %468 = vmatprep.mubr.bf16.mxu0 %v281
      %469 = vmatmul.mubr.bf16.gmra.mxu0 %v280
      %v470 = vpop.f32.mrf.mxu0
      %v471 = vadd.f32 %v229, %v470
      %v472 = vpop.f32.mrf.mxu0
      %v473 = vpop.f32.mrf.mxu0
      %v474 = vadd.f32 %v229, %v473
      %v475 = vpop.f32.mrf.mxu0
      %476 = vdwg.mxu0
      %477 = vmatprep.subr.bf16.mxu0 0
      %478 = vmatpush1.bf16.msra.mxu0 0
      %479 = vmatprep.subr.bf16.mxu0 0
      %480 = vmatpush1.bf16.msra.mxu0 0
      %481 = vmatprep.subr.bf16.mxu0 0
      %482 = vmatpush1.bf16.msra.mxu0 0
      %483 = vmatprep.subr.bf16.mxu0 0
      %484 = vmatpush1.bf16.msra.mxu0 0
      %485 = vmatprep.subr.bf16.mxu0 0
      %486 = vmatpush1.bf16.msra.mxu0 0
      %487 = vmatprep.subr.bf16.mxu0 0
      %488 = vmatpush1.bf16.msra.mxu0 0
      %489 = vmatprep.subr.bf16.mxu0 0
      %490 = vmatpush1.bf16.msra.mxu0 %v380
      %491 = vmatprep.subr.bf16.mxu0 0
      %492 = vmatpush1.bf16.msra.mxu0 %v379
      %493 = vmatprep.subr.bf16.mxu0 0
      %494 = vmatpush2.bf16.msra.mxu0 0
      %495 = vmatprep.subr.bf16.mxu0 0
      %496 = vmatpush2.bf16.msra.mxu0 0
      %497 = vmatprep.subr.bf16.mxu0 0
      %498 = vmatpush2.bf16.msra.mxu0 0
      %499 = vmatprep.subr.bf16.mxu0 0
      %500 = vmatpush2.bf16.msra.mxu0 0
      %501 = vmatprep.subr.bf16.mxu0 0
      %502 = vmatpush2.bf16.msra.mxu0 0
      %503 = vmatprep.subr.bf16.mxu0 0
      %504 = vmatpush2.bf16.msra.mxu0 0
      %505 = vmatprep.subr.bf16.mxu0 0
      %506 = vmatpush2.bf16.msra.mxu0 0
      %507 = vmatprep.subr.bf16.mxu0 0
      %508 = vmatpush2.bf16.msra.mxu0 0
      %509 = vmatprep.mubr.bf16.mxu0 0
      %510 = vmatmul.mubr.bf16.gmra.mxu0 %v401
      %v511 = vpop.f32.mrf.mxu0
      %v512 = vadd.f32 %v447, %v511
      %v513 = vpop.f32.mrf.mxu0
      %v514 = vpop.f32.mrf.mxu0
      %v515 = vadd.f32 %v450, %v514
      %v516 = vpop.f32.mrf.mxu0
      %517 = vmatprep.mubr.bf16.mxu0 0
      %518 = vmatmul.mubr.bf16.gmra.mxu0 %v404
      %v519 = vpop.f32.mrf.mxu0
      %v520 = vadd.f32 %v455, %v519
      %v521 = vpop.f32.mrf.mxu0
      %v522 = vpop.f32.mrf.mxu0
      %v523 = vadd.f32 %v458, %v522
      %v524 = vpop.f32.mrf.mxu0
      %525 = vmatprep.mubr.bf16.mxu0 0
      %526 = vmatmul.mubr.bf16.gmra.mxu0 %v407
      %v527 = vpop.f32.mrf.mxu0
      %v528 = vadd.f32 %v463, %v527
      %v529 = vpop.f32.mrf.mxu0
      %v530 = vpop.f32.mrf.mxu0
      %v531 = vadd.f32 %v466, %v530
      %v532 = vpop.f32.mrf.mxu0
      %533 = vmatprep.mubr.bf16.mxu0 0
      %534 = vmatmul.mubr.bf16.gmra.mxu0 %v410
      %v535 = vpop.f32.mrf.mxu0
      %v536 = vadd.f32 %v471, %v535
      %v537 = vpop.f32.mrf.mxu0
      %v538 = vpop.f32.mrf.mxu0
      %v539 = vadd.f32 %v474, %v538
      %v540 = vpop.f32.mrf.mxu0
      %541 = vdwg.mxu0
      %v542 = vmax.f32 %v512, 0.0
      %v543 = vmax.f32 %v515, 0.0
      %v544 = vmax.f32 %v520, 0.0
      %v545 = vmax.f32 %v523, 0.0
      %v546 = vmax.f32 %v528, 0.0
      %v547 = vmax.f32 %v531, 0.0
      %v548 = vmax.f32 %v536, 0.0
      %v549 = vmax.f32 %v539, 0.0
      %v550 = vmax.f32 %v542, %v544
      %v551 = vmax.f32 %v543, %v545
      %v552 = vmax.f32 %v546, %v548
      %v553 = vmax.f32 %v547, %v549
      %v554 = vmax.f32 %v550, %v552
      %v555 = vmax.f32 %v551, %v553
      %v556 = vpack.c.bf16 %v555, %v554
      %v558 = vunpack.c.l.b16 %v556
      %v559 = vunpack.c.h.b16 %v556
      %v560 = vpack.c.b16 %v558, %v558
      %v561 = vpack.c.b16 %v559, %v559
      %564 = vst [vmem:[%s170] sm:$0xf] %v560
      %565 = vst [vmem:[%s170 + $0x4] sm:$0xf] %v561
      %p566 = scmp.lt.s32.totalorder %s14, 1
      %s567 = scalar_select %p566, %s14, 1
      %s568 = smul.addr %s567, 2
      %s569 = smul.addr %s568, 4
      %s570 = scalar_lea.vmem %s3, %s569
      // Predicated region
      $region33: #{cnn_forward.6} parent=31 // pred_check
        %p571 = pneg %p100
      $region34: #{cnn_forward.6} parent=31 // pred_check_branch
        %573 = sbr.rel (%p571) target = $region36
      $region35: #{cnn_forward.6} parent=31 // pred_region
        _
      $region36: #{cnn_forward.6} parent=31 // pred_fallthru
        _
    $region32: #{cnn_forward.6} parent=5 // pred_fallthru
      _
    %p574 = scmp.le.s32.totalorder 2, %s9
    // Predicated region
    $region37: #{cnn_forward.6} parent=5 // pred_check
      %p575 = pneg %p574
    $region38: #{cnn_forward.6} parent=5 // pred_check_branch
      %577 = sbr.rel (%p575) target = $region40
    $region39: #{cnn_forward.6} parent=5 // pred_region
      %s578 = ssub.s32 %s9, 2
      // Predicated region
      $region41: #{cnn_forward.6} parent=39 // pred_check
        %p579 = pneg %p106
      $region42: #{cnn_forward.6} parent=39 // pred_check_branch
        %581 = sbr.rel (%p579) target = $region44
      $region43: #{cnn_forward.6} parent=39 // pred_region
        %p582 = scmp.lt.s32.totalorder %s15, 1
        %s583 = scalar_select %p582, %s15, 1
        %s584 = smul.addr %s583, 2
        %s585 = smul.addr %s584, 4
        %s586 = scalar_lea.vmem %s3, %s585
      $region44: #{cnn_forward.6} parent=39 // pred_fallthru
        _
    $region40: #{cnn_forward.6} parent=5 // pred_fallthru
      _
  $region6: #{cnn_forward.6} parent=0 // loop_footer
    %s13 = sadd.s32 1, %s9
  $region7: #{cnn_forward.6} parent=0 // loop_footer_branch
    %8 = sbr.rel target = $region3
  $region8: #{cnn_forward.6} parent=0 // loop_exit
    _

// kernel: cnn_forward.7
$region0: #{cnn_forward.7}
  #allocation0 [shape = 'u32[]', space=smem, size = 0x4, offset = 0x4, fixed_abs, tag = 'smem constant byte address 0x4 - core index']
  #allocation1 [shape = 'u32[144,128]{1,0:T(1,128)}', space=vmem, size = 0x12000, scoped, tag = 'internal scratch']
  %s0 = inlined_call_operand.vmem [shape: bf16[2,2048], index: 0, kind: input, shape index: {}]
  %s1 = inlined_call_operand.vmem [shape: bf16[2048,128], index: 1, kind: input, shape index: {}]
  %s2 = inlined_call_operand.vmem [shape: f32[1,128], index: 2, kind: input, shape index: {}]
  %s3 = inlined_call_operand.vmem [shape: bf16[128,128], index: 3, kind: input, shape index: {}]
  %s4 = inlined_call_operand.vmem [shape: f32[1,128], index: 4, kind: input, shape index: {}]
  %s5 = inlined_call_operand.hbm [shape: f32[2,128], index: 5, kind: output, shape index: {}]
  %s6 = sld [smem:[#allocation0]]
  $region30: #{cnn_forward.7} parent=0
    _
  %s8 = ssub.s32 1, %s6
  %s9 = scalar_select 0, %s8, %s6
  $region1: #{cnn_forward.7} parent=0
    #allocation2 [shape = 'u8[1024]{0}', space=vmem, size = 0x400, scoped, tag = 'output window, operand 0, single buffered']
    #allocation3 [shape = 's32[1]{0}', space=sflag, size = 0x4, scoped, tag = 'scoped memory for cnn_forward.7']
    %10 = vsyncpa [#allocation3], 0
    // Predicated region
    $region2: #{cnn_forward.7} parent=1 // pred_check
      _
    $region3: #{cnn_forward.7} parent=1 // pred_check_branch
      %12 = sbr.rel (0) target = $region5
    $region4: #{cnn_forward.7} parent=1 // pred_region
      _
    $region5: #{cnn_forward.7} parent=1 // pred_fallthru
      _
    // Predicated region
    $region6: #{cnn_forward.7} parent=1 // pred_check
      _
    $region7: #{cnn_forward.7} parent=1 // pred_check_branch
      %14 = sbr.rel (0) target = $region9
    $region8: #{cnn_forward.7} parent=1 // pred_region
      _
    $region9: #{cnn_forward.7} parent=1 // pred_fallthru
      _
    // Predicated region
    $region10: #{cnn_forward.7} parent=1 // pred_check
      _
    $region11: #{cnn_forward.7} parent=1 // pred_check_branch
      %16 = sbr.rel (0) target = $region13
    $region12: #{cnn_forward.7} parent=1 // pred_region
      _
    $region13: #{cnn_forward.7} parent=1 // pred_fallthru
      _
    // Predicated region
    $region14: #{cnn_forward.7} parent=1 // pred_check
      _
    $region15: #{cnn_forward.7} parent=1 // pred_check_branch
      %18 = sbr.rel (0) target = $region17
    $region16: #{cnn_forward.7} parent=1 // pred_region
      _
    $region17: #{cnn_forward.7} parent=1 // pred_fallthru
      _
    // Predicated region
    $region18: #{cnn_forward.7} parent=1 // pred_check
      _
    $region19: #{cnn_forward.7} parent=1 // pred_check_branch
      %20 = sbr.rel (0) target = $region21
    $region20: #{cnn_forward.7} parent=1 // pred_region
      _
    $region21: #{cnn_forward.7} parent=1 // pred_fallthru
      _
    %v22 = vld [vmem:[%s0] sm:$0xff]
    %v23 = vld [vmem:[%s0 + $0x8] sm:$0xff]
    %v24 = vld [vmem:[%s1] sm:$0xf]
    %v25 = vld [vmem:[%s1 + $0x4] sm:$0xf]
    %v26 = vld [vmem:[%s1 + $0x8] sm:$0xf]
    %v27 = vld [vmem:[%s1 + $0xc] sm:$0xf]
    %v28 = vld [vmem:[%s1 + $0x10] sm:$0xf]
    %v29 = vld [vmem:[%s1 + $0x14] sm:$0xf]
    %v30 = vld [vmem:[%s1 + $0x18] sm:$0xf]
    %v31 = vld [vmem:[%s1 + $0x1c] sm:$0xf]
    %v32 = vld [vmem:[%s1 + $0x20] sm:$0xf]
    %v33 = vld [vmem:[%s1 + $0x24] sm:$0xf]
    %v34 = vld [vmem:[%s1 + $0x28] sm:$0xf]
    %v35 = vld [vmem:[%s1 + $0x2c] sm:$0xf]
    %v36 = vld [vmem:[%s1 + $0x30] sm:$0xf]
    %v37 = vld [vmem:[%s1 + $0x34] sm:$0xf]
    %v38 = vld [vmem:[%s1 + $0x38] sm:$0xf]
    %v39 = vld [vmem:[%s1 + $0x3c] sm:$0xf]
    %v40 = vld [vmem:[%s1 + $0x40] sm:$0xf]
    %v41 = vld [vmem:[%s1 + $0x44] sm:$0xf]
    %v42 = vld [vmem:[%s1 + $0x48] sm:$0xf]
    %v43 = vld [vmem:[%s1 + $0x4c] sm:$0xf]
    %v44 = vld [vmem:[%s1 + $0x50] sm:$0xf]
    %v45 = vld [vmem:[%s1 + $0x54] sm:$0xf]
    %v46 = vld [vmem:[%s1 + $0x58] sm:$0xf]
    %v47 = vld [vmem:[%s1 + $0x5c] sm:$0xf]
    %v48 = vld [vmem:[%s1 + $0x60] sm:$0xf]
    %v49 = vld [vmem:[%s1 + $0x64] sm:$0xf]
    %v50 = vld [vmem:[%s1 + $0x68] sm:$0xf]
    %v51 = vld [vmem:[%s1 + $0x6c] sm:$0xf]
    %v52 = vld [vmem:[%s1 + $0x70] sm:$0xf]
    %v53 = vld [vmem:[%s1 + $0x74] sm:$0xf]
    %v54 = vld [vmem:[%s1 + $0x78] sm:$0xf]
    %v55 = vld [vmem:[%s1 + $0x7c] sm:$0xf]
    %v56 = vld [vmem:[%s1 + $0x80] sm:$0xf]
    %v57 = vld [vmem:[%s1 + $0x84] sm:$0xf]
    %v58 = vld [vmem:[%s1 + $0x88] sm:$0xf]
    %v59 = vld [vmem:[%s1 + $0x8c] sm:$0xf]
    %v60 = vld [vmem:[%s1 + $0x90] sm:$0xf]
    %v61 = vld [vmem:[%s1 + $0x94] sm:$0xf]
    %v62 = vld [vmem:[%s1 + $0x98] sm:$0xf]
    %v63 = vld [vmem:[%s1 + $0x9c] sm:$0xf]
    %v64 = vld [vmem:[%s1 + $0xa0] sm:$0xf]
    %v65 = vld [vmem:[%s1 + $0xa4] sm:$0xf]
    %v66 = vld [vmem:[%s1 + $0xa8] sm:$0xf]
    %v67 = vld [vmem:[%s1 + $0xac] sm:$0xf]
    %v68 = vld [vmem:[%s1 + $0xb0] sm:$0xf]
    %v69 = vld [vmem:[%s1 + $0xb4] sm:$0xf]
    %v70 = vld [vmem:[%s1 + $0xb8] sm:$0xf]
    %v71 = vld [vmem:[%s1 + $0xbc] sm:$0xf]
    %v72 = vld [vmem:[%s1 + $0xc0] sm:$0xf]
    %v73 = vld [vmem:[%s1 + $0xc4] sm:$0xf]
    %v74 = vld [vmem:[%s1 + $0xc8] sm:$0xf]
    %v75 = vld [vmem:[%s1 + $0xcc] sm:$0xf]
    %v76 = vld [vmem:[%s1 + $0xd0] sm:$0xf]
    %v77 = vld [vmem:[%s1 + $0xd4] sm:$0xf]
    %v78 = vld [vmem:[%s1 + $0xd8] sm:$0xf]
    %v79 = vld [vmem:[%s1 + $0xdc] sm:$0xf]
    %v80 = vld [vmem:[%s1 + $0xe0] sm:$0xf]
    %v81 = vld [vmem:[%s1 + $0xe4] sm:$0xf]
    %v82 = vld [vmem:[%s1 + $0xe8] sm:$0xf]
    %v83 = vld [vmem:[%s1 + $0xec] sm:$0xf]
    %v84 = vld [vmem:[%s1 + $0xf0] sm:$0xf]
    %v85 = vld [vmem:[%s1 + $0xf4] sm:$0xf]
    %v86 = vld [vmem:[%s1 + $0xf8] sm:$0xf]
    %v87 = vld [vmem:[%s1 + $0xfc] sm:$0xf]
    %v88 = vld [vmem:[%s1 + $0x100] sm:$0xf]
    %v89 = vld [vmem:[%s1 + $0x104] sm:$0xf]
    %v90 = vld [vmem:[%s1 + $0x108] sm:$0xf]
    %v91 = vld [vmem:[%s1 + $0x10c] sm:$0xf]
    %v92 = vld [vmem:[%s1 + $0x110] sm:$0xf]
    %v93 = vld [vmem:[%s1 + $0x114] sm:$0xf]
    %v94 = vld [vmem:[%s1 + $0x118] sm:$0xf]
    %v95 = vld [vmem:[%s1 + $0x11c] sm:$0xf]
    %v96 = vld [vmem:[%s1 + $0x120] sm:$0xf]
    %v97 = vld [vmem:[%s1 + $0x124] sm:$0xf]
    %v98 = vld [vmem:[%s1 + $0x128] sm:$0xf]
    %v99 = vld [vmem:[%s1 + $0x12c] sm:$0xf]
    %v100 = vld [vmem:[%s1 + $0x130] sm:$0xf]
    %v101 = vld [vmem:[%s1 + $0x134] sm:$0xf]
    %v102 = vld [vmem:[%s1 + $0x138] sm:$0xf]
    %v103 = vld [vmem:[%s1 + $0x13c] sm:$0xf]
    %v104 = vld [vmem:[%s1 + $0x140] sm:$0xf]
    %v105 = vld [vmem:[%s1 + $0x144] sm:$0xf]
    %v106 = vld [vmem:[%s1 + $0x148] sm:$0xf]
    %v107 = vld [vmem:[%s1 + $0x14c] sm:$0xf]
    %v108 = vld [vmem:[%s1 + $0x150] sm:$0xf]
    %v109 = vld [vmem:[%s1 + $0x154] sm:$0xf]
    %v110 = vld [vmem:[%s1 + $0x158] sm:$0xf]
    %v111 = vld [vmem:[%s1 + $0x15c] sm:$0xf]
    %v112 = vld [vmem:[%s1 + $0x160] sm:$0xf]
    %v113 = vld [vmem:[%s1 + $0x164] sm:$0xf]
    %v114 = vld [vmem:[%s1 + $0x168] sm:$0xf]
    %v115 = vld [vmem:[%s1 + $0x16c] sm:$0xf]
    %v116 = vld [vmem:[%s1 + $0x170] sm:$0xf]
    %v117 = vld [vmem:[%s1 + $0x174] sm:$0xf]
    %v118 = vld [vmem:[%s1 + $0x178] sm:$0xf]
    %v119 = vld [vmem:[%s1 + $0x17c] sm:$0xf]
    %v120 = vld [vmem:[%s1 + $0x180] sm:$0xf]
    %v121 = vld [vmem:[%s1 + $0x184] sm:$0xf]
    %v122 = vld [vmem:[%s1 + $0x188] sm:$0xf]
    %v123 = vld [vmem:[%s1 + $0x18c] sm:$0xf]
    %v124 = vld [vmem:[%s1 + $0x190] sm:$0xf]
    %v125 = vld [vmem:[%s1 + $0x194] sm:$0xf]
    %v126 = vld [vmem:[%s1 + $0x198] sm:$0xf]
    %v127 = vld [vmem:[%s1 + $0x19c] sm:$0xf]
    %v128 = vld [vmem:[%s1 + $0x1a0] sm:$0xf]
    %v129 = vld [vmem:[%s1 + $0x1a4] sm:$0xf]
    %v130 = vld [vmem:[%s1 + $0x1a8] sm:$0xf]
    %v131 = vld [vmem:[%s1 + $0x1ac] sm:$0xf]
    %v132 = vld [vmem:[%s1 + $0x1b0] sm:$0xf]
    %v133 = vld [vmem:[%s1 + $0x1b4] sm:$0xf]
    %v134 = vld [vmem:[%s1 + $0x1b8] sm:$0xf]
    %v135 = vld [vmem:[%s1 + $0x1bc] sm:$0xf]
    %v136 = vld [vmem:[%s1 + $0x1c0] sm:$0xf]
    %v137 = vld [vmem:[%s1 + $0x1c4] sm:$0xf]
    %v138 = vld [vmem:[%s1 + $0x1c8] sm:$0xf]
    %v139 = vld [vmem:[%s1 + $0x1cc] sm:$0xf]
    %v140 = vld [vmem:[%s1 + $0x1d0] sm:$0xf]
    %v141 = vld [vmem:[%s1 + $0x1d4] sm:$0xf]
    %v142 = vld [vmem:[%s1 + $0x1d8] sm:$0xf]
    %v143 = vld [vmem:[%s1 + $0x1dc] sm:$0xf]
    %v144 = vld [vmem:[%s1 + $0x1e0] sm:$0xf]
    %v145 = vld [vmem:[%s1 + $0x1e4] sm:$0xf]
    %v146 = vld [vmem:[%s1 + $0x1e8] sm:$0xf]
    %v147 = vld [vmem:[%s1 + $0x1ec] sm:$0xf]
    %v148 = vld [vmem:[%s1 + $0x1f0] sm:$0xf]
    %v149 = vld [vmem:[%s1 + $0x1f4] sm:$0xf]
    %v150 = vld [vmem:[%s1 + $0x1f8] sm:$0xf]
    %v151 = vld [vmem:[%s1 + $0x1fc] sm:$0xf]
    %v152 = vld [vmem:[%s1 + $0x200] sm:$0xf]
    %v153 = vld [vmem:[%s1 + $0x204] sm:$0xf]
    %v154 = vld [vmem:[%s1 + $0x208] sm:$0xf]
    %v155 = vld [vmem:[%s1 + $0x20c] sm:$0xf]
    %v156 = vld [vmem:[%s1 + $0x210] sm:$0xf]
    %v157 = vld [vmem:[%s1 + $0x214] sm:$0xf]
    %v158 = vld [vmem:[%s1 + $0x218] sm:$0xf]
    %v159 = vld [vmem:[%s1 + $0x21c] sm:$0xf]
    %v160 = vld [vmem:[%s1 + $0x220] sm:$0xf]
    %v161 = vld [vmem:[%s1 + $0x224] sm:$0xf]
    %v162 = vld [vmem:[%s1 + $0x228] sm:$0xf]
    %v163 = vld [vmem:[%s1 + $0x22c] sm:$0xf]
    %v164 = vld [vmem:[%s1 + $0x230] sm:$0xf]
    %v165 = vld [vmem:[%s1 + $0x234] sm:$0xf]
    %v166 = vld [vmem:[%s1 + $0x238] sm:$0xf]
    %v167 = vld [vmem:[%s1 + $0x23c] sm:$0xf]
    %v168 = vld [vmem:[%s1 + $0x240] sm:$0xf]
    %v169 = vld [vmem:[%s1 + $0x244] sm:$0xf]
    %v170 = vld [vmem:[%s1 + $0x248] sm:$0xf]
    %v171 = vld [vmem:[%s1 + $0x24c] sm:$0xf]
    %v172 = vld [vmem:[%s1 + $0x250] sm:$0xf]
    %v173 = vld [vmem:[%s1 + $0x254] sm:$0xf]
    %v174 = vld [vmem:[%s1 + $0x258] sm:$0xf]
    %v175 = vld [vmem:[%s1 + $0x25c] sm:$0xf]
    %v176 = vld [vmem:[%s1 + $0x260] sm:$0xf]
    %v177 = vld [vmem:[%s1 + $0x264] sm:$0xf]
    %v178 = vld [vmem:[%s1 + $0x268] sm:$0xf]
    %v179 = vld [vmem:[%s1 + $0x26c] sm:$0xf]
    %v180 = vld [vmem:[%s1 + $0x270] sm:$0xf]
    %v181 = vld [vmem:[%s1 + $0x274] sm:$0xf]
    %v182 = vld [vmem:[%s1 + $0x278] sm:$0xf]
    %v183 = vld [vmem:[%s1 + $0x27c] sm:$0xf]
    %v184 = vld [vmem:[%s1 + $0x280] sm:$0xf]
    %v185 = vld [vmem:[%s1 + $0x284] sm:$0xf]
    %v186 = vld [vmem:[%s1 + $0x288] sm:$0xf]
    %v187 = vld [vmem:[%s1 + $0x28c] sm:$0xf]
    %v188 = vld [vmem:[%s1 + $0x290] sm:$0xf]
    %v189 = vld [vmem:[%s1 + $0x294] sm:$0xf]
    %v190 = vld [vmem:[%s1 + $0x298] sm:$0xf]
    %v191 = vld [vmem:[%s1 + $0x29c] sm:$0xf]
    %v192 = vld [vmem:[%s1 + $0x2a0] sm:$0xf]
    %v193 = vld [vmem:[%s1 + $0x2a4] sm:$0xf]
    %v194 = vld [vmem:[%s1 + $0x2a8] sm:$0xf]
    %v195 = vld [vmem:[%s1 + $0x2ac] sm:$0xf]
    %v196 = vld [vmem:[%s1 + $0x2b0] sm:$0xf]
    %v197 = vld [vmem:[%s1 + $0x2b4] sm:$0xf]
    %v198 = vld [vmem:[%s1 + $0x2b8] sm:$0xf]
    %v199 = vld [vmem:[%s1 + $0x2bc] sm:$0xf]
    %v200 = vld [vmem:[%s1 + $0x2c0] sm:$0xf]
    %v201 = vld [vmem:[%s1 + $0x2c4] sm:$0xf]
    %v202 = vld [vmem:[%s1 + $0x2c8] sm:$0xf]
    %v203 = vld [vmem:[%s1 + $0x2cc] sm:$0xf]
    %v204 = vld [vmem:[%s1 + $0x2d0] sm:$0xf]
    %v205 = vld [vmem:[%s1 + $0x2d4] sm:$0xf]
    %v206 = vld [vmem:[%s1 + $0x2d8] sm:$0xf]
    %v207 = vld [vmem:[%s1 + $0x2dc] sm:$0xf]
    %v208 = vld [vmem:[%s1 + $0x2e0] sm:$0xf]
    %v209 = vld [vmem:[%s1 + $0x2e4] sm:$0xf]
    %v210 = vld [vmem:[%s1 + $0x2e8] sm:$0xf]
    %v211 = vld [vmem:[%s1 + $0x2ec] sm:$0xf]
    %v212 = vld [vmem:[%s1 + $0x2f0] sm:$0xf]
    %v213 = vld [vmem:[%s1 + $0x2f4] sm:$0xf]
    %v214 = vld [vmem:[%s1 + $0x2f8] sm:$0xf]
    %v215 = vld [vmem:[%s1 + $0x2fc] sm:$0xf]
    %v216 = vld [vmem:[%s1 + $0x300] sm:$0xf]
    %v217 = vld [vmem:[%s1 + $0x304] sm:$0xf]
    %v218 = vld [vmem:[%s1 + $0x308] sm:$0xf]
    %v219 = vld [vmem:[%s1 + $0x30c] sm:$0xf]
    %v220 = vld [vmem:[%s1 + $0x310] sm:$0xf]
    %v221 = vld [vmem:[%s1 + $0x314] sm:$0xf]
    %v222 = vld [vmem:[%s1 + $0x318] sm:$0xf]
    %v223 = vld [vmem:[%s1 + $0x31c] sm:$0xf]
    %v224 = vld [vmem:[%s1 + $0x320] sm:$0xf]
    %v225 = vld [vmem:[%s1 + $0x324] sm:$0xf]
    %v226 = vld [vmem:[%s1 + $0x328] sm:$0xf]
    %v227 = vld [vmem:[%s1 + $0x32c] sm:$0xf]
    %v228 = vld [vmem:[%s1 + $0x330] sm:$0xf]
    %v229 = vld [vmem:[%s1 + $0x334] sm:$0xf]
    %v230 = vld [vmem:[%s1 + $0x338] sm:$0xf]
    %v231 = vld [vmem:[%s1 + $0x33c] sm:$0xf]
    %v232 = vld [vmem:[%s1 + $0x340] sm:$0xf]
    %v233 = vld [vmem:[%s1 + $0x344] sm:$0xf]
    %v234 = vld [vmem:[%s1 + $0x348] sm:$0xf]
    %v235 = vld [vmem:[%s1 + $0x34c] sm:$0xf]
    %v236 = vld [vmem:[%s1 + $0x350] sm:$0xf]
    %v237 = vld [vmem:[%s1 + $0x354] sm:$0xf]
    %v238 = vld [vmem:[%s1 + $0x358] sm:$0xf]
    %v239 = vld [vmem:[%s1 + $0x35c] sm:$0xf]
    %v240 = vld [vmem:[%s1 + $0x360] sm:$0xf]
    %v241 = vld [vmem:[%s1 + $0x364] sm:$0xf]
    %v242 = vld [vmem:[%s1 + $0x368] sm:$0xf]
    %v243 = vld [vmem:[%s1 + $0x36c] sm:$0xf]
    %v244 = vld [vmem:[%s1 + $0x370] sm:$0xf]
    %v245 = vld [vmem:[%s1 + $0x374] sm:$0xf]
    %v246 = vld [vmem:[%s1 + $0x378] sm:$0xf]
    %v247 = vld [vmem:[%s1 + $0x37c] sm:$0xf]
    %v248 = vld [vmem:[%s1 + $0x380] sm:$0xf]
    %v249 = vld [vmem:[%s1 + $0x384] sm:$0xf]
    %v250 = vld [vmem:[%s1 + $0x388] sm:$0xf]
    %v251 = vld [vmem:[%s1 + $0x38c] sm:$0xf]
    %v252 = vld [vmem:[%s1 + $0x390] sm:$0xf]
    %v253 = vld [vmem:[%s1 + $0x394] sm:$0xf]
    %v254 = vld [vmem:[%s1 + $0x398] sm:$0xf]
    %v255 = vld [vmem:[%s1 + $0x39c] sm:$0xf]
    %v256 = vld [vmem:[%s1 + $0x3a0] sm:$0xf]
    %v257 = vld [vmem:[%s1 + $0x3a4] sm:$0xf]
    %v258 = vld [vmem:[%s1 + $0x3a8] sm:$0xf]
    %v259 = vld [vmem:[%s1 + $0x3ac] sm:$0xf]
    %v260 = vld [vmem:[%s1 + $0x3b0] sm:$0xf]
    %v261 = vld [vmem:[%s1 + $0x3b4] sm:$0xf]
    %v262 = vld [vmem:[%s1 + $0x3b8] sm:$0xf]
    %v263 = vld [vmem:[%s1 + $0x3bc] sm:$0xf]
    %v264 = vld [vmem:[%s1 + $0x3c0] sm:$0xf]
    %v265 = vld [vmem:[%s1 + $0x3c4] sm:$0xf]
    %v266 = vld [vmem:[%s1 + $0x3c8] sm:$0xf]
    %v267 = vld [vmem:[%s1 + $0x3cc] sm:$0xf]
    %v268 = vld [vmem:[%s1 + $0x3d0] sm:$0xf]
    %v269 = vld [vmem:[%s1 + $0x3d4] sm:$0xf]
    %v270 = vld [vmem:[%s1 + $0x3d8] sm:$0xf]
    %v271 = vld [vmem:[%s1 + $0x3dc] sm:$0xf]
    %v272 = vld [vmem:[%s1 + $0x3e0] sm:$0xf]
    %v273 = vld [vmem:[%s1 + $0x3e4] sm:$0xf]
    %v274 = vld [vmem:[%s1 + $0x3e8] sm:$0xf]
    %v275 = vld [vmem:[%s1 + $0x3ec] sm:$0xf]
    %v276 = vld [vmem:[%s1 + $0x3f0] sm:$0xf]
    %v277 = vld [vmem:[%s1 + $0x3f4] sm:$0xf]
    %v278 = vld [vmem:[%s1 + $0x3f8] sm:$0xf]
    %v279 = vld [vmem:[%s1 + $0x3fc] sm:$0xf]
    %v280 = vld [vmem:[%s2] sm:$0x1]
    %v282 = vlaneseq
    %v283 = vshrl.u32 %v282, 7
    %v284 = vsub.s32 0, %v283
    %v285 = vrot.slane %v280, %v284
    %v289 = vcombine.high %v22, %v22
    %v291 = vunpack.c.l.s4 1966171168
    %v292 = vunpack.c.0.s8 %v291
    %v293 = vlaneseq
    %v294 = vshrl.u32 %v293, 7
    %v295 = vsub.s32 %v292, %v294
    %v296 = vrot.slane %v22, %v295
    %v298 = vunpack.c.l.s4 1966171168
    %v299 = vunpack.c.0.s8 %v298
    %v300 = vlaneseq
    %v301 = vshrl.u32 %v300, 7
    %v302 = vsub.s32 %v299, %v301
    %v303 = vrot.slane %v289, %v302
    %v304 = vcombine.high %v296, %v296
    %v305 = vcombine.high %v303, %v303
    %v307 = vunpack.c.l.s4 1966171168
    %v308 = vunpack.c.0.s8 %v307
    %v309 = vlaneseq
    %v310 = vshrl.u32 %v309, 7
    %v311 = vsub.s32 %v308, %v310
    %v312 = vrot.slane %v296, %v311
    %v314 = vunpack.c.l.s4 1966171168
    %v315 = vunpack.c.0.s8 %v314
    %v316 = vlaneseq
    %v317 = vshrl.u32 %v316, 7
    %v318 = vsub.s32 %v315, %v317
    %v319 = vrot.slane %v303, %v318
    %v321 = vunpack.c.l.s4 1966171168
    %v322 = vunpack.c.0.s8 %v321
    %v323 = vlaneseq
    %v324 = vshrl.u32 %v323, 7
    %v325 = vsub.s32 %v322, %v324
    %v326 = vrot.slane %v304, %v325
    %v328 = vunpack.c.l.s4 1966171168
    %v329 = vunpack.c.0.s8 %v328
    %v330 = vlaneseq
    %v331 = vshrl.u32 %v330, 7
    %v332 = vsub.s32 %v329, %v331
    %v333 = vrot.slane %v305, %v332
    %v334 = vcombine.high %v312, %v312
    %v335 = vcombine.high %v319, %v319
    %v336 = vcombine.high %v326, %v326
    %v337 = vcombine.high %v333, %v333
    %v338 = vcombine.high %v23, %v23
    %v340 = vunpack.c.l.s4 1966171168
    %v341 = vunpack.c.0.s8 %v340
    %v342 = vlaneseq
    %v343 = vshrl.u32 %v342, 7
    %v344 = vsub.s32 %v341, %v343
    %v345 = vrot.slane %v23, %v344
    %v347 = vunpack.c.l.s4 1966171168
    %v348 = vunpack.c.0.s8 %v347
    %v349 = vlaneseq
    %v350 = vshrl.u32 %v349, 7
    %v351 = vsub.s32 %v348, %v350
    %v352 = vrot.slane %v338, %v351
    %v353 = vcombine.high %v345, %v345
    %v354 = vcombine.high %v352, %v352
    %v356 = vunpack.c.l.s4 1966171168
    %v357 = vunpack.c.0.s8 %v356
    %v358 = vlaneseq
    %v359 = vshrl.u32 %v358, 7
    %v360 = vsub.s32 %v357, %v359
    %v361 = vrot.slane %v345, %v360
    %v363 = vunpack.c.l.s4 1966171168
    %v364 = vunpack.c.0.s8 %v363
    %v365 = vlaneseq
    %v366 = vshrl.u32 %v365, 7
    %v367 = vsub.s32 %v364, %v366
    %v368 = vrot.slane %v352, %v367
    %v370 = vunpack.c.l.s4 1966171168
    %v371 = vunpack.c.0.s8 %v370
    %v372 = vlaneseq
    %v373 = vshrl.u32 %v372, 7
    %v374 = vsub.s32 %v371, %v373
    %v375 = vrot.slane %v353, %v374
    %v377 = vunpack.c.l.s4 1966171168
    %v378 = vunpack.c.0.s8 %v377
    %v379 = vlaneseq
    %v380 = vshrl.u32 %v379, 7
    %v381 = vsub.s32 %v378, %v380
    %v382 = vrot.slane %v354, %v381
    %v383 = vcombine.high %v361, %v361
    %v384 = vcombine.high %v368, %v368
    %v385 = vcombine.high %v375, %v375
    %v386 = vcombine.high %v382, %v382
    %v659 = vunpack.c.l.b16 %v24
    %v660 = vunpack.c.l.b16 %v25
    %v661 = vunpack.c.l.b16 %v26
    %v662 = vunpack.c.l.b16 %v27
    %v663 = vunpack.c.l.b16 %v28
    %v664 = vunpack.c.l.b16 %v29
    %v665 = vunpack.c.l.b16 %v30
    %v666 = vunpack.c.l.b16 %v31
    %v667 = vunpack.c.l.b16 %v32
    %v668 = vunpack.c.l.b16 %v33
    %v669 = vunpack.c.l.b16 %v34
    %v670 = vunpack.c.l.b16 %v35
    %v671 = vunpack.c.l.b16 %v36
    %v672 = vunpack.c.l.b16 %v37
    %v673 = vunpack.c.l.b16 %v38
    %v674 = vunpack.c.l.b16 %v39
    %v675 = vunpack.c.l.b16 %v40
    %v676 = vunpack.c.l.b16 %v41
    %v677 = vunpack.c.l.b16 %v42
    %v678 = vunpack.c.l.b16 %v43
    %v679 = vunpack.c.l.b16 %v44
    %v680 = vunpack.c.l.b16 %v45
    %v681 = vunpack.c.l.b16 %v46
    %v682 = vunpack.c.l.b16 %v47
    %v683 = vunpack.c.l.b16 %v48
    %v684 = vunpack.c.l.b16 %v49
    %v685 = vunpack.c.l.b16 %v50
    %v686 = vunpack.c.l.b16 %v51
    %v687 = vunpack.c.l.b16 %v52
    %v688 = vunpack.c.l.b16 %v53
    %v689 = vunpack.c.l.b16 %v54
    %v690 = vunpack.c.l.b16 %v55
    %v691 = vunpack.c.l.b16 %v56
    %v692 = vunpack.c.l.b16 %v57
    %v693 = vunpack.c.l.b16 %v58
    %v694 = vunpack.c.l.b16 %v59
    %v695 = vunpack.c.l.b16 %v60
    %v696 = vunpack.c.l.b16 %v61
    %v697 = vunpack.c.l.b16 %v62
    %v698 = vunpack.c.l.b16 %v63
    %v699 = vunpack.c.l.b16 %v64
    %v700 = vunpack.c.l.b16 %v65
    %v701 = vunpack.c.l.b16 %v66
    %v702 = vunpack.c.l.b16 %v67
    %v703 = vunpack.c.l.b16 %v68
    %v704 = vunpack.c.l.b16 %v69
    %v705 = vunpack.c.l.b16 %v70
    %v706 = vunpack.c.l.b16 %v71
    %v707 = vunpack.c.l.b16 %v72
    %v708 = vunpack.c.l.b16 %v73
    %v709 = vunpack.c.l.b16 %v74
    %v710 = vunpack.c.l.b16 %v75
    %v711 = vunpack.c.l.b16 %v76
    %v712 = vunpack.c.l.b16 %v77
    %v713 = vunpack.c.l.b16 %v78
    %v714 = vunpack.c.l.b16 %v79
    %v715 = vunpack.c.l.b16 %v80
    %v716 = vunpack.c.l.b16 %v81
    %v717 = vunpack.c.l.b16 %v82
    %v718 = vunpack.c.l.b16 %v83
    %v719 = vunpack.c.l.b16 %v84
    %v720 = vunpack.c.l.b16 %v85
    %v721 = vunpack.c.l.b16 %v86
    %v722 = vunpack.c.l.b16 %v87
    %v723 = vunpack.c.l.b16 %v88
    %v724 = vunpack.c.l.b16 %v89
    %v725 = vunpack.c.l.b16 %v90
    %v726 = vunpack.c.l.b16 %v91
    %v727 = vunpack.c.l.b16 %v92
    %v728 = vunpack.c.l.b16 %v93
    %v729 = vunpack.c.l.b16 %v94
    %v730 = vunpack.c.l.b16 %v95
    %v731 = vunpack.c.l.b16 %v96
    %v732 = vunpack.c.l.b16 %v97
    %v733 = vunpack.c.l.b16 %v98
    %v734 = vunpack.c.l.b16 %v99
    %v735 = vunpack.c.l.b16 %v100
    %v736 = vunpack.c.l.b16 %v101
    %v737 = vunpack.c.l.b16 %v102
    %v738 = vunpack.c.l.b16 %v103
    %v739 = vunpack.c.l.b16 %v104
    %v740 = vunpack.c.l.b16 %v105
    %v741 = vunpack.c.l.b16 %v106
    %v742 = vunpack.c.l.b16 %v107
    %v743 = vunpack.c.l.b16 %v108
    %v744 = vunpack.c.l.b16 %v109
    %v745 = vunpack.c.l.b16 %v110
    %v746 = vunpack.c.l.b16 %v111
    %v747 = vunpack.c.l.b16 %v112
    %v748 = vunpack.c.l.b16 %v113
    %v749 = vunpack.c.l.b16 %v114
    %v750 = vunpack.c.l.b16 %v115
    %v751 = vunpack.c.l.b16 %v116
    %v752 = vunpack.c.l.b16 %v117
    %v753 = vunpack.c.l.b16 %v118
    %v754 = vunpack.c.l.b16 %v119
    %v755 = vunpack.c.l.b16 %v120
    %v756 = vunpack.c.l.b16 %v121
    %v757 = vunpack.c.l.b16 %v122
    %v758 = vunpack.c.l.b16 %v123
    %v759 = vunpack.c.l.b16 %v124
    %v760 = vunpack.c.l.b16 %v125
    %v761 = vunpack.c.l.b16 %v126
    %v762 = vunpack.c.l.b16 %v127
    %v763 = vunpack.c.l.b16 %v128
    %v764 = vunpack.c.l.b16 %v129
    %v765 = vunpack.c.l.b16 %v130
    %v766 = vunpack.c.l.b16 %v131
    %v767 = vunpack.c.l.b16 %v132
    %v768 = vunpack.c.l.b16 %v133
    %v769 = vunpack.c.l.b16 %v134
    %v770 = vunpack.c.l.b16 %v135
    %v771 = vunpack.c.l.b16 %v136
    %v772 = vunpack.c.l.b16 %v137
    %v773 = vunpack.c.l.b16 %v138
    %v774 = vunpack.c.l.b16 %v139
    %v775 = vunpack.c.l.b16 %v140
    %v776 = vunpack.c.l.b16 %v141
    %v777 = vunpack.c.l.b16 %v142
    %v778 = vunpack.c.l.b16 %v143
    %v779 = vunpack.c.l.b16 %v144
    %v780 = vunpack.c.l.b16 %v145
    %v781 = vunpack.c.l.b16 %v146
    %v782 = vunpack.c.l.b16 %v147
    %v783 = vunpack.c.l.b16 %v148
    %v784 = vunpack.c.l.b16 %v149
    %v785 = vunpack.c.l.b16 %v150
    %v786 = vunpack.c.l.b16 %v151
    %v787 = vunpack.c.l.b16 %v152
    %v788 = vunpack.c.l.b16 %v153
    %v789 = vunpack.c.l.b16 %v154
    %v790 = vunpack.c.l.b16 %v155
    %v791 = vunpack.c.l.b16 %v156
    %v792 = vunpack.c.l.b16 %v157
    %v793 = vunpack.c.l.b16 %v158
    %v794 = vunpack.c.l.b16 %v159
    %v795 = vunpack.c.l.b16 %v160
    %v796 = vunpack.c.l.b16 %v161
    %v797 = vunpack.c.l.b16 %v162
    %v798 = vunpack.c.l.b16 %v163
    %v799 = vunpack.c.l.b16 %v164
    %v800 = vunpack.c.l.b16 %v165
    %v801 = vunpack.c.l.b16 %v166
    %v802 = vunpack.c.l.b16 %v167
    %v803 = vunpack.c.l.b16 %v168
    %v804 = vunpack.c.l.b16 %v169
    %v805 = vunpack.c.l.b16 %v170
    %v806 = vunpack.c.l.b16 %v171
    %v807 = vunpack.c.l.b16 %v172
    %v808 = vunpack.c.l.b16 %v173
    %v809 = vunpack.c.l.b16 %v174
    %v810 = vunpack.c.l.b16 %v175
    %v811 = vunpack.c.l.b16 %v176
    %v812 = vunpack.c.l.b16 %v177
    %v813 = vunpack.c.l.b16 %v178
    %v814 = vunpack.c.l.b16 %v179
    %v815 = vunpack.c.l.b16 %v180
    %v816 = vunpack.c.l.b16 %v181
    %v817 = vunpack.c.l.b16 %v182
    %v818 = vunpack.c.l.b16 %v183
    %v819 = vunpack.c.l.b16 %v184
    %v820 = vunpack.c.l.b16 %v185
    %v821 = vunpack.c.l.b16 %v186
    %v822 = vunpack.c.l.b16 %v187
    %v823 = vunpack.c.l.b16 %v188
    %v824 = vunpack.c.l.b16 %v189
    %v825 = vunpack.c.l.b16 %v190
    %v826 = vunpack.c.l.b16 %v191
    %v827 = vunpack.c.l.b16 %v192
    %v828 = vunpack.c.l.b16 %v193
    %v829 = vunpack.c.l.b16 %v194
    %v830 = vunpack.c.l.b16 %v195
    %v831 = vunpack.c.l.b16 %v196
    %v832 = vunpack.c.l.b16 %v197
    %v833 = vunpack.c.l.b16 %v198
    %v834 = vunpack.c.l.b16 %v199
    %v835 = vunpack.c.l.b16 %v200
    %v836 = vunpack.c.l.b16 %v201
    %v837 = vunpack.c.l.b16 %v202
    %v838 = vunpack.c.l.b16 %v203
    %v839 = vunpack.c.l.b16 %v204
    %v840 = vunpack.c.l.b16 %v205
    %v841 = vunpack.c.l.b16 %v206
    %v842 = vunpack.c.l.b16 %v207
    %v843 = vunpack.c.l.b16 %v208
    %v844 = vunpack.c.l.b16 %v209
    %v845 = vunpack.c.l.b16 %v210
    %v846 = vunpack.c.l.b16 %v211
    %v847 = vunpack.c.l.b16 %v212
    %v848 = vunpack.c.l.b16 %v213
    %v849 = vunpack.c.l.b16 %v214
    %v850 = vunpack.c.l.b16 %v215
    %v851 = vunpack.c.l.b16 %v216
    %v852 = vunpack.c.l.b16 %v217
    %v853 = vunpack.c.l.b16 %v218
    %v854 = vunpack.c.l.b16 %v219
    %v855 = vunpack.c.l.b16 %v220
    %v856 = vunpack.c.l.b16 %v221
    %v857 = vunpack.c.l.b16 %v222
    %v858 = vunpack.c.l.b16 %v223
    %v859 = vunpack.c.l.b16 %v224
    %v860 = vunpack.c.l.b16 %v225
    %v861 = vunpack.c.l.b16 %v226
    %v862 = vunpack.c.l.b16 %v227
    %v863 = vunpack.c.l.b16 %v228
    %v864 = vunpack.c.l.b16 %v229
    %v865 = vunpack.c.l.b16 %v230
    %v866 = vunpack.c.l.b16 %v231
    %v867 = vunpack.c.l.b16 %v232
    %v868 = vunpack.c.l.b16 %v233
    %v869 = vunpack.c.l.b16 %v234
    %v870 = vunpack.c.l.b16 %v235
    %v871 = vunpack.c.l.b16 %v236
    %v872 = vunpack.c.l.b16 %v237
    %v873 = vunpack.c.l.b16 %v238
    %v874 = vunpack.c.l.b16 %v239
    %v875 = vunpack.c.l.b16 %v240
    %v876 = vunpack.c.l.b16 %v241
    %v877 = vunpack.c.l.b16 %v242
    %v878 = vunpack.c.l.b16 %v243
    %v879 = vunpack.c.l.b16 %v244
    %v880 = vunpack.c.l.b16 %v245
    %v881 = vunpack.c.l.b16 %v246
    %v882 = vunpack.c.l.b16 %v247
    %v883 = vunpack.c.l.b16 %v248
    %v884 = vunpack.c.l.b16 %v249
    %v885 = vunpack.c.l.b16 %v250
    %v886 = vunpack.c.l.b16 %v251
    %v887 = vunpack.c.l.b16 %v252
    %v888 = vunpack.c.l.b16 %v253
    %v889 = vunpack.c.l.b16 %v254
    %v890 = vunpack.c.l.b16 %v255
    %v891 = vunpack.c.l.b16 %v256
    %v892 = vunpack.c.l.b16 %v257
    %v893 = vunpack.c.l.b16 %v258
    %v894 = vunpack.c.l.b16 %v259
    %v895 = vunpack.c.l.b16 %v260
    %v896 = vunpack.c.l.b16 %v261
    %v897 = vunpack.c.l.b16 %v262
    %v898 = vunpack.c.l.b16 %v263
    %v899 = vunpack.c.l.b16 %v264
    %v900 = vunpack.c.l.b16 %v265
    %v901 = vunpack.c.l.b16 %v266
    %v902 = vunpack.c.l.b16 %v267
    %v903 = vunpack.c.l.b16 %v268
    %v904 = vunpack.c.l.b16 %v269
    %v905 = vunpack.c.l.b16 %v270
    %v906 = vunpack.c.l.b16 %v271
    %v907 = vunpack.c.l.b16 %v272
    %v908 = vunpack.c.l.b16 %v273
    %v909 = vunpack.c.l.b16 %v274
    %v910 = vunpack.c.l.b16 %v275
    %v911 = vunpack.c.l.b16 %v276
    %v912 = vunpack.c.l.b16 %v277
    %v913 = vunpack.c.l.b16 %v278
    %v914 = vunpack.c.l.b16 %v279
    %v915 = vpack.c.b16 %v660, %v659
    %v916 = vpack.c.b16 %v662, %v661
    %v917 = vpack.c.b16 %v664, %v663
    %v918 = vpack.c.b16 %v666, %v665
    %v919 = vpack.c.b16 %v668, %v667
    %v920 = vpack.c.b16 %v670, %v669
    %v921 = vpack.c.b16 %v672, %v671
    %v922 = vpack.c.b16 %v674, %v673
    %v923 = vpack.c.b16 %v676, %v675
    %v924 = vpack.c.b16 %v678, %v677
    %v925 = vpack.c.b16 %v680, %v679
    %v926 = vpack.c.b16 %v682, %v681
    %v927 = vpack.c.b16 %v684, %v683
    %v928 = vpack.c.b16 %v686, %v685
    %v929 = vpack.c.b16 %v688, %v687
    %v930 = vpack.c.b16 %v690, %v689
    %v931 = vpack.c.b16 %v692, %v691
    %v932 = vpack.c.b16 %v694, %v693
    %v933 = vpack.c.b16 %v696, %v695
    %v934 = vpack.c.b16 %v698, %v697
    %v935 = vpack.c.b16 %v700, %v699
    %v936 = vpack.c.b16 %v702, %v701
    %v937 = vpack.c.b16 %v704, %v703
    %v938 = vpack.c.b16 %v706, %v705
    %v939 = vpack.c.b16 %v708, %v707
    %v940 = vpack.c.b16 %v710, %v709
    %v941 = vpack.c.b16 %v712, %v711
    %v942 = vpack.c.b16 %v714, %v713
    %v943 = vpack.c.b16 %v716, %v715
    %v944 = vpack.c.b16 %v718, %v717
    %v945 = vpack.c.b16 %v720, %v719
    %v946 = vpack.c.b16 %v722, %v721
    %v947 = vpack.c.b16 %v724, %v723
    %v948 = vpack.c.b16 %v726, %v725
    %v949 = vpack.c.b16 %v728, %v727
    %v950 = vpack.c.b16 %v730, %v729
    %v951 = vpack.c.b16 %v732, %v731
    %v952 = vpack.c.b16 %v734, %v733
    %v953 = vpack.c.b16 %v736, %v735
    %v954 = vpack.c.b16 %v738, %v737
    %v955 = vpack.c.b16 %v740, %v739
    %v956 = vpack.c.b16 %v742, %v741
    %v957 = vpack.c.b16 %v744, %v743
    %v958 = vpack.c.b16 %v746, %v745
    %v959 = vpack.c.b16 %v748, %v747
    %v960 = vpack.c.b16 %v750, %v749
    %v961 = vpack.c.b16 %v752, %v751
    %v962 = vpack.c.b16 %v754, %v753
    %v963 = vpack.c.b16 %v756, %v755
    %v964 = vpack.c.b16 %v758, %v757
    %v965 = vpack.c.b16 %v760, %v759
    %v966 = vpack.c.b16 %v762, %v761
    %v967 = vpack.c.b16 %v764, %v763
    %v968 = vpack.c.b16 %v766, %v765
    %v969 = vpack.c.b16 %v768, %v767
    %v970 = vpack.c.b16 %v770, %v769
    %v971 = vpack.c.b16 %v772, %v771
    %v972 = vpack.c.b16 %v774, %v773
    %v973 = vpack.c.b16 %v776, %v775
    %v974 = vpack.c.b16 %v778, %v777
    %v975 = vpack.c.b16 %v780, %v779
    %v976 = vpack.c.b16 %v782, %v781
    %v977 = vpack.c.b16 %v784, %v783
    %v978 = vpack.c.b16 %v786, %v785
    %v979 = vpack.c.b16 %v788, %v787
    %v980 = vpack.c.b16 %v790, %v789
    %v981 = vpack.c.b16 %v792, %v791
    %v982 = vpack.c.b16 %v794, %v793
    %v983 = vpack.c.b16 %v796, %v795
    %v984 = vpack.c.b16 %v798, %v797
    %v985 = vpack.c.b16 %v800, %v799
    %v986 = vpack.c.b16 %v802, %v801
    %v987 = vpack.c.b16 %v804, %v803
    %v988 = vpack.c.b16 %v806, %v805
    %v989 = vpack.c.b16 %v808, %v807
    %v990 = vpack.c.b16 %v810, %v809
    %v991 = vpack.c.b16 %v812, %v811
    %v992 = vpack.c.b16 %v814, %v813
    %v993 = vpack.c.b16 %v816, %v815
    %v994 = vpack.c.b16 %v818, %v817
    %v995 = vpack.c.b16 %v820, %v819
    %v996 = vpack.c.b16 %v822, %v821
    %v997 = vpack.c.b16 %v824, %v823
    %v998 = vpack.c.b16 %v826, %v825
    %v999 = vpack.c.b16 %v828, %v827
    %v1000 = vpack.c.b16 %v830, %v829
    %v1001 = vpack.c.b16 %v832, %v831
    %v1002 = vpack.c.b16 %v834, %v833
    %v1003 = vpack.c.b16 %v836, %v835
    %v1004 = vpack.c.b16 %v838, %v837
    %v1005 = vpack.c.b16 %v840, %v839
    %v1006 = vpack.c.b16 %v842, %v841
    %v1007 = vpack.c.b16 %v844, %v843
    %v1008 = vpack.c.b16 %v846, %v845
    %v1009 = vpack.c.b16 %v848, %v847
    %v1010 = vpack.c.b16 %v850, %v849
    %v1011 = vpack.c.b16 %v852, %v851
    %v1012 = vpack.c.b16 %v854, %v853
    %v1013 = vpack.c.b16 %v856, %v855
    %v1014 = vpack.c.b16 %v858, %v857
    %v1015 = vpack.c.b16 %v860, %v859
    %v1016 = vpack.c.b16 %v862, %v861
    %v1017 = vpack.c.b16 %v864, %v863
    %v1018 = vpack.c.b16 %v866, %v865
    %v1019 = vpack.c.b16 %v868, %v867
    %v1020 = vpack.c.b16 %v870, %v869
    %v1021 = vpack.c.b16 %v872, %v871
    %v1022 = vpack.c.b16 %v874, %v873
    %v1023 = vpack.c.b16 %v876, %v875
    %v1024 = vpack.c.b16 %v878, %v877
    %v1025 = vpack.c.b16 %v880, %v879
    %v1026 = vpack.c.b16 %v882, %v881
    %v1027 = vpack.c.b16 %v884, %v883
    %v1028 = vpack.c.b16 %v886, %v885
    %v1029 = vpack.c.b16 %v888, %v887
    %v1030 = vpack.c.b16 %v890, %v889
    %v1031 = vpack.c.b16 %v892, %v891
    %v1032 = vpack.c.b16 %v894, %v893
    %v1033 = vpack.c.b16 %v896, %v895
    %v1034 = vpack.c.b16 %v898, %v897
    %v1035 = vpack.c.b16 %v900, %v899
    %v1036 = vpack.c.b16 %v902, %v901
    %v1037 = vpack.c.b16 %v904, %v903
    %v1038 = vpack.c.b16 %v906, %v905
    %v1039 = vpack.c.b16 %v908, %v907
    %v1040 = vpack.c.b16 %v910, %v909
    %v1041 = vpack.c.b16 %v912, %v911
    %v1042 = vpack.c.b16 %v914, %v913
    %1171 = vmatprep.subr.bf16.mxu0 0
    %1172 = vmatpush1.bf16.msra.mxu0 %v922
    %1173 = vmatprep.subr.bf16.mxu0 0
    %1174 = vmatpush1.bf16.msra.mxu0 %v921
    %1175 = vmatprep.subr.bf16.mxu0 0
    %1176 = vmatpush1.bf16.msra.mxu0 %v920
    %1177 = vmatprep.subr.bf16.mxu0 0
    %1178 = vmatpush1.bf16.msra.mxu0 %v919
    %1179 = vmatprep.subr.bf16.mxu0 0
    %1180 = vmatpush1.bf16.msra.mxu0 %v918
    %1181 = vmatprep.subr.bf16.mxu0 0
    %1182 = vmatpush1.bf16.msra.mxu0 %v917
    %1183 = vmatprep.subr.bf16.mxu0 0
    %1184 = vmatpush1.bf16.msra.mxu0 %v916
    %1185 = vmatprep.subr.bf16.mxu0 0
    %1186 = vmatpush1.bf16.msra.mxu0 %v915
    %1187 = vmatprep.subr.bf16.mxu0 0
    %1188 = vmatpush2.bf16.msra.mxu0 %v930
    %1189 = vmatprep.subr.bf16.mxu0 0
    %1190 = vmatpush2.bf16.msra.mxu0 %v929
    %1191 = vmatprep.subr.bf16.mxu0 0
    %1192 = vmatpush2.bf16.msra.mxu0 %v928
    %1193 = vmatprep.subr.bf16.mxu0 0
    %1194 = vmatpush2.bf16.msra.mxu0 %v927
    %1195 = vmatprep.subr.bf16.mxu0 0
    %1196 = vmatpush2.bf16.msra.mxu0 %v926
    %1197 = vmatprep.subr.bf16.mxu0 0
    %1198 = vmatpush2.bf16.msra.mxu0 %v925
    %1199 = vmatprep.subr.bf16.mxu0 0
    %1200 = vmatpush2.bf16.msra.mxu0 %v924
    %1201 = vmatprep.subr.bf16.mxu0 0
    %1202 = vmatpush2.bf16.msra.mxu0 %v923
    %1203 = vmatprep.mubr.bf16.mxu0 %v326
    %1204 = vmatmul.mubr.bf16.gmra.mxu0 %v312
    %v1205 = vpop.f32.mrf.mxu0
    %v1206 = vadd.f32 %v285, %v1205
    %v1207 = vpop.f32.mrf.mxu0
    %v1208 = vpop.f32.mrf.mxu0
    %v1209 = vpop.f32.mrf.mxu0
    %1210 = vdwg.mxu0
    %1211 = vmatprep.subr.bf16.mxu0 0
    %1212 = vmatpush1.bf16.msra.mxu0 %v938
    %1213 = vmatprep.subr.bf16.mxu0 0
    %1214 = vmatpush1.bf16.msra.mxu0 %v937
    %1215 = vmatprep.subr.bf16.mxu0 0
    %1216 = vmatpush1.bf16.msra.mxu0 %v936
    %1217 = vmatprep.subr.bf16.mxu0 0
    %1218 = vmatpush1.bf16.msra.mxu0 %v935
    %1219 = vmatprep.subr.bf16.mxu0 0
    %1220 = vmatpush1.bf16.msra.mxu0 %v934
    %1221 = vmatprep.subr.bf16.mxu0 0
    %1222 = vmatpush1.bf16.msra.mxu0 %v933
    %1223 = vmatprep.subr.bf16.mxu0 0
    %1224 = vmatpush1.bf16.msra.mxu0 %v932
    %1225 = vmatprep.subr.bf16.mxu0 0
    %1226 = vmatpush1.bf16.msra.mxu0 %v931
    %1227 = vmatprep.subr.bf16.mxu0 0
    %1228 = vmatpush2.bf16.msra.mxu0 %v946
    %1229 = vmatprep.subr.bf16.mxu0 0
    %1230 = vmatpush2.bf16.msra.mxu0 %v945
    %1231 = vmatprep.subr.bf16.mxu0 0
    %1232 = vmatpush2.bf16.msra.mxu0 %v944
    %1233 = vmatprep.subr.bf16.mxu0 0
    %1234 = vmatpush2.bf16.msra.mxu0 %v943
    %1235 = vmatprep.subr.bf16.mxu0 0
    %1236 = vmatpush2.bf16.msra.mxu0 %v942
    %1237 = vmatprep.subr.bf16.mxu0 0
    %1238 = vmatpush2.bf16.msra.mxu0 %v941
    %1239 = vmatprep.subr.bf16.mxu0 0
    %1240 = vmatpush2.bf16.msra.mxu0 %v940
    %1241 = vmatprep.subr.bf16.mxu0 0
    %1242 = vmatpush2.bf16.msra.mxu0 %v939
    %1243 = vmatprep.mubr.bf16.mxu0 %v336
    %1244 = vmatmul.mubr.bf16.gmra.mxu0 %v334
    %v1245 = vpop.f32.mrf.mxu0
    %v1246 = vadd.f32 %v1206, %v1245
    %v1247 = vpop.f32.mrf.mxu0
    %v1248 = vpop.f32.mrf.mxu0
    %v1249 = vpop.f32.mrf.mxu0
    %1250 = vdwg.mxu0
    %1251 = vmatprep.subr.bf16.mxu0 0
    %1252 = vmatpush1.bf16.msra.mxu0 %v954
    %1253 = vmatprep.subr.bf16.mxu0 0
    %1254 = vmatpush1.bf16.msra.mxu0 %v953
    %1255 = vmatprep.subr.bf16.mxu0 0
    %1256 = vmatpush1.bf16.msra.mxu0 %v952
    %1257 = vmatprep.subr.bf16.mxu0 0
    %1258 = vmatpush1.bf16.msra.mxu0 %v951
    %1259 = vmatprep.subr.bf16.mxu0 0
    %1260 = vmatpush1.bf16.msra.mxu0 %v950
    %1261 = vmatprep.subr.bf16.mxu0 0
    %1262 = vmatpush1.bf16.msra.mxu0 %v949
    %1263 = vmatprep.subr.bf16.mxu0 0
    %1264 = vmatpush1.bf16.msra.mxu0 %v948
    %1265 = vmatprep.subr.bf16.mxu0 0
    %1266 = vmatpush1.bf16.msra.mxu0 %v947
    %1267 = vmatprep.subr.bf16.mxu0 0
    %1268 = vmatpush2.bf16.msra.mxu0 %v962
    %1269 = vmatprep.subr.bf16.mxu0 0
    %1270 = vmatpush2.bf16.msra.mxu0 %v961
    %1271 = vmatprep.subr.bf16.mxu0 0
    %1272 = vmatpush2.bf16.msra.mxu0 %v960
    %1273 = vmatprep.subr.bf16.mxu0 0
    %1274 = vmatpush2.bf16.msra.mxu0 %v959
    %1275 = vmatprep.subr.bf16.mxu0 0
    %1276 = vmatpush2.bf16.msra.mxu0 %v958
    %1277 = vmatprep.subr.bf16.mxu0 0
    %1278 = vmatpush2.bf16.msra.mxu0 %v957
    %1279 = vmatprep.subr.bf16.mxu0 0
    %1280 = vmatpush2.bf16.msra.mxu0 %v956
    %1281 = vmatprep.subr.bf16.mxu0 0
    %1282 = vmatpush2.bf16.msra.mxu0 %v955
    %1283 = vmatprep.mubr.bf16.mxu0 %v333
    %1284 = vmatmul.mubr.bf16.gmra.mxu0 %v319
    %v1285 = vpop.f32.mrf.mxu0
    %v1286 = vadd.f32 %v1246, %v1285
    %v1287 = vpop.f32.mrf.mxu0
    %v1288 = vpop.f32.mrf.mxu0
    %v1289 = vpop.f32.mrf.mxu0
    %1290 = vdwg.mxu0
    %1291 = vmatprep.subr.bf16.mxu0 0
    %1292 = vmatpush1.bf16.msra.mxu0 %v970
    %1293 = vmatprep.subr.bf16.mxu0 0
    %1294 = vmatpush1.bf16.msra.mxu0 %v969
    %1295 = vmatprep.subr.bf16.mxu0 0
    %1296 = vmatpush1.bf16.msra.mxu0 %v968
    %1297 = vmatprep.subr.bf16.mxu0 0
    %1298 = vmatpush1.bf16.msra.mxu0 %v967
    %1299 = vmatprep.subr.bf16.mxu0 0
    %1300 = vmatpush1.bf16.msra.mxu0 %v966
    %1301 = vmatprep.subr.bf16.mxu0 0
    %1302 = vmatpush1.bf16.msra.mxu0 %v965
    %1303 = vmatprep.subr.bf16.mxu0 0
    %1304 = vmatpush1.bf16.msra.mxu0 %v964
    %1305 = vmatprep.subr.bf16.mxu0 0
    %1306 = vmatpush1.bf16.msra.mxu0 %v963
    %1307 = vmatprep.subr.bf16.mxu0 0
    %1308 = vmatpush2.bf16.msra.mxu0 %v978
    %1309 = vmatprep.subr.bf16.mxu0 0
    %1310 = vmatpush2.bf16.msra.mxu0 %v977
    %1311 = vmatprep.subr.bf16.mxu0 0
    %1312 = vmatpush2.bf16.msra.mxu0 %v976
    %1313 = vmatprep.subr.bf16.mxu0 0
    %1314 = vmatpush2.bf16.msra.mxu0 %v975
    %1315 = vmatprep.subr.bf16.mxu0 0
    %1316 = vmatpush2.bf16.msra.mxu0 %v974
    %1317 = vmatprep.subr.bf16.mxu0 0
    %1318 = vmatpush2.bf16.msra.mxu0 %v973
    %1319 = vmatprep.subr.bf16.mxu0 0
    %1320 = vmatpush2.bf16.msra.mxu0 %v972
    %1321 = vmatprep.subr.bf16.mxu0 0
    %1322 = vmatpush2.bf16.msra.mxu0 %v971
    %1323 = vmatprep.mubr.bf16.mxu0 %v337
    %1324 = vmatmul.mubr.bf16.gmra.mxu0 %v335
    %v1325 = vpop.f32.mrf.mxu0
    %v1326 = vadd.f32 %v1286, %v1325
    %v1327 = vpop.f32.mrf.mxu0
    %v1328 = vpop.f32.mrf.mxu0
    %v1329 = vpop.f32.mrf.mxu0
    %1330 = vdwg.mxu0
    %1331 = vmatprep.subr.bf16.mxu0 0
    %1332 = vmatpush1.bf16.msra.mxu0 %v986
    %1333 = vmatprep.subr.bf16.mxu0 0
    %1334 = vmatpush1.bf16.msra.mxu0 %v985
    %1335 = vmatprep.subr.bf16.mxu0 0
    %1336 = vmatpush1.bf16.msra.mxu0 %v984
    %1337 = vmatprep.subr.bf16.mxu0 0
    %1338 = vmatpush1.bf16.msra.mxu0 %v983
    %1339 = vmatprep.subr.bf16.mxu0 0
    %1340 = vmatpush1.bf16.msra.mxu0 %v982
    %1341 = vmatprep.subr.bf16.mxu0 0
    %1342 = vmatpush1.bf16.msra.mxu0 %v981
    %1343 = vmatprep.subr.bf16.mxu0 0
    %1344 = vmatpush1.bf16.msra.mxu0 %v980
    %1345 = vmatprep.subr.bf16.mxu0 0
    %1346 = vmatpush1.bf16.msra.mxu0 %v979
    %1347 = vmatprep.subr.bf16.mxu0 0
    %1348 = vmatpush2.bf16.msra.mxu0 %v994
    %1349 = vmatprep.subr.bf16.mxu0 0
    %1350 = vmatpush2.bf16.msra.mxu0 %v993
    %1351 = vmatprep.subr.bf16.mxu0 0
    %1352 = vmatpush2.bf16.msra.mxu0 %v992
    %1353 = vmatprep.subr.bf16.mxu0 0
    %1354 = vmatpush2.bf16.msra.mxu0 %v991
    %1355 = vmatprep.subr.bf16.mxu0 0
    %1356 = vmatpush2.bf16.msra.mxu0 %v990
    %1357 = vmatprep.subr.bf16.mxu0 0
    %1358 = vmatpush2.bf16.msra.mxu0 %v989
    %1359 = vmatprep.subr.bf16.mxu0 0
    %1360 = vmatpush2.bf16.msra.mxu0 %v988
    %1361 = vmatprep.subr.bf16.mxu0 0
    %1362 = vmatpush2.bf16.msra.mxu0 %v987
    %1363 = vmatprep.mubr.bf16.mxu0 %v375
    %1364 = vmatmul.mubr.bf16.gmra.mxu0 %v361
    %v1365 = vpop.f32.mrf.mxu0
    %v1366 = vadd.f32 %v1326, %v1365
    %v1367 = vpop.f32.mrf.mxu0
    %v1368 = vpop.f32.mrf.mxu0
    %v1369 = vpop.f32.mrf.mxu0
    %1370 = vdwg.mxu0
    %1371 = vmatprep.subr.bf16.mxu0 0
    %1372 = vmatpush1.bf16.msra.mxu0 %v1002
    %1373 = vmatprep.subr.bf16.mxu0 0
    %1374 = vmatpush1.bf16.msra.mxu0 %v1001
    %1375 = vmatprep.subr.bf16.mxu0 0
    %1376 = vmatpush1.bf16.msra.mxu0 %v1000
    %1377 = vmatprep.subr.bf16.mxu0 0
    %1378 = vmatpush1.bf16.msra.mxu0 %v999
    %1379 = vmatprep.subr.bf16.mxu0 0
    %1380 = vmatpush1.bf16.msra.mxu0 %v998
    %1381 = vmatprep.subr.bf16.mxu0 0
    %1382 = vmatpush1.bf16.msra.mxu0 %v997
    %1383 = vmatprep.subr.bf16.mxu0 0
    %1384 = vmatpush1.bf16.msra.mxu0 %v996
    %1385 = vmatprep.subr.bf16.mxu0 0
    %1386 = vmatpush1.bf16.msra.mxu0 %v995
    %1387 = vmatprep.subr.bf16.mxu0 0
    %1388 = vmatpush2.bf16.msra.mxu0 %v1010
    %1389 = vmatprep.subr.bf16.mxu0 0
    %1390 = vmatpush2.bf16.msra.mxu0 %v1009
    %1391 = vmatprep.subr.bf16.mxu0 0
    %1392 = vmatpush2.bf16.msra.mxu0 %v1008
    %1393 = vmatprep.subr.bf16.mxu0 0
    %1394 = vmatpush2.bf16.msra.mxu0 %v1007
    %1395 = vmatprep.subr.bf16.mxu0 0
    %1396 = vmatpush2.bf16.msra.mxu0 %v1006
    %1397 = vmatprep.subr.bf16.mxu0 0
    %1398 = vmatpush2.bf16.msra.mxu0 %v1005
    %1399 = vmatprep.subr.bf16.mxu0 0
    %1400 = vmatpush2.bf16.msra.mxu0 %v1004
    %1401 = vmatprep.subr.bf16.mxu0 0
    %1402 = vmatpush2.bf16.msra.mxu0 %v1003
    %1403 = vmatprep.mubr.bf16.mxu0 %v385
    %1404 = vmatmul.mubr.bf16.gmra.mxu0 %v383
    %v1405 = vpop.f32.mrf.mxu0
    %v1406 = vadd.f32 %v1366, %v1405
    %v1407 = vpop.f32.mrf.mxu0
    %v1408 = vpop.f32.mrf.mxu0
    %v1409 = vpop.f32.mrf.mxu0
    %1410 = vdwg.mxu0
    %1411 = vmatprep.subr.bf16.mxu0 0
    %1412 = vmatpush1.bf16.msra.mxu0 %v1018
    %1413 = vmatprep.subr.bf16.mxu0 0
    %1414 = vmatpush1.bf16.msra.mxu0 %v1017
    %1415 = vmatprep.subr.bf16.mxu0 0
    %1416 = vmatpush1.bf16.msra.mxu0 %v1016
    %1417 = vmatprep.subr.bf16.mxu0 0
    %1418 = vmatpush1.bf16.msra.mxu0 %v1015
    %1419 = vmatprep.subr.bf16.mxu0 0
    %1420 = vmatpush1.bf16.msra.mxu0 %v1014
    %1421 = vmatprep.subr.bf16.mxu0 0
    %1422 = vmatpush1.bf16.msra.mxu0 %v1013
    %1423 = vmatprep.subr.bf16.mxu0 0
    %1424 = vmatpush1.bf16.msra.mxu0 %v1012
    %1425 = vmatprep.subr.bf16.mxu0 0
    %1426 = vmatpush1.bf16.msra.mxu0 %v1011
    %1427 = vmatprep.subr.bf16.mxu0 0
    %1428 = vmatpush2.bf16.msra.mxu0 %v1026
    %1429 = vmatprep.subr.bf16.mxu0 0
    %1430 = vmatpush2.bf16.msra.mxu0 %v1025
    %1431 = vmatprep.subr.bf16.mxu0 0
    %1432 = vmatpush2.bf16.msra.mxu0 %v1024
    %1433 = vmatprep.subr.bf16.mxu0 0
    %1434 = vmatpush2.bf16.msra.mxu0 %v1023
    %1435 = vmatprep.subr.bf16.mxu0 0
    %1436 = vmatpush2.bf16.msra.mxu0 %v1022
    %1437 = vmatprep.subr.bf16.mxu0 0
    %1438 = vmatpush2.bf16.msra.mxu0 %v1021
    %1439 = vmatprep.subr.bf16.mxu0 0
    %1440 = vmatpush2.bf16.msra.mxu0 %v1020
    %1441 = vmatprep.subr.bf16.mxu0 0
    %1442 = vmatpush2.bf16.msra.mxu0 %v1019
    %1443 = vmatprep.mubr.bf16.mxu0 %v382
    %1444 = vmatmul.mubr.bf16.gmra.mxu0 %v368
    %v1445 = vpop.f32.mrf.mxu0
    %v1446 = vadd.f32 %v1406, %v1445
    %v1447 = vpop.f32.mrf.mxu0
    %v1448 = vpop.f32.mrf.mxu0
    %v1449 = vpop.f32.mrf.mxu0
    %1450 = vdwg.mxu0
    %1451 = vmatprep.subr.bf16.mxu0 0
    %1452 = vmatpush1.bf16.msra.mxu0 %v1034
    %1453 = vmatprep.subr.bf16.mxu0 0
    %1454 = vmatpush1.bf16.msra.mxu0 %v1033
    %1455 = vmatprep.subr.bf16.mxu0 0
    %1456 = vmatpush1.bf16.msra.mxu0 %v1032
    %1457 = vmatprep.subr.bf16.mxu0 0
    %1458 = vmatpush1.bf16.msra.mxu0 %v1031
    %1459 = vmatprep.subr.bf16.mxu0 0
    %1460 = vmatpush1.bf16.msra.mxu0 %v1030
    %1461 = vmatprep.subr.bf16.mxu0 0
    %1462 = vmatpush1.bf16.msra.mxu0 %v1029
    %1463 = vmatprep.subr.bf16.mxu0 0
    %1464 = vmatpush1.bf16.msra.mxu0 %v1028
    %1465 = vmatprep.subr.bf16.mxu0 0
    %1466 = vmatpush1.bf16.msra.mxu0 %v1027
    %1467 = vmatprep.subr.bf16.mxu0 0
    %1468 = vmatpush2.bf16.msra.mxu0 %v1042
    %1469 = vmatprep.subr.bf16.mxu0 0
    %1470 = vmatpush2.bf16.msra.mxu0 %v1041
    %1471 = vmatprep.subr.bf16.mxu0 0
    %1472 = vmatpush2.bf16.msra.mxu0 %v1040
    %1473 = vmatprep.subr.bf16.mxu0 0
    %1474 = vmatpush2.bf16.msra.mxu0 %v1039
    %1475 = vmatprep.subr.bf16.mxu0 0
    %1476 = vmatpush2.bf16.msra.mxu0 %v1038
    %1477 = vmatprep.subr.bf16.mxu0 0
    %1478 = vmatpush2.bf16.msra.mxu0 %v1037
    %1479 = vmatprep.subr.bf16.mxu0 0
    %1480 = vmatpush2.bf16.msra.mxu0 %v1036
    %1481 = vmatprep.subr.bf16.mxu0 0
    %1482 = vmatpush2.bf16.msra.mxu0 %v1035
    %1483 = vmatprep.mubr.bf16.mxu0 %v386
    %1484 = vmatmul.mubr.bf16.gmra.mxu0 %v384
    %v1485 = vpop.f32.mrf.mxu0
    %v1486 = vadd.f32 %v1446, %v1485
    %v1487 = vpop.f32.mrf.mxu0
    %v1488 = vpop.f32.mrf.mxu0
    %v1489 = vpop.f32.mrf.mxu0
    %1490 = vdwg.mxu0
    %v1491 = vmax.f32 %v1486, 0.0
    %v1492 = vpack.c.bf16 %v1491, %v1491
    %v1493 = vld [vmem:[%s3] sm:$0xf]
    %v1494 = vld [vmem:[%s3 + $0x4] sm:$0xf]
    %v1495 = vld [vmem:[%s3 + $0x8] sm:$0xf]
    %v1496 = vld [vmem:[%s3 + $0xc] sm:$0xf]
    %v1497 = vld [vmem:[%s3 + $0x10] sm:$0xf]
    %v1498 = vld [vmem:[%s3 + $0x14] sm:$0xf]
    %v1499 = vld [vmem:[%s3 + $0x18] sm:$0xf]
    %v1500 = vld [vmem:[%s3 + $0x1c] sm:$0xf]
    %v1501 = vld [vmem:[%s3 + $0x20] sm:$0xf]
    %v1502 = vld [vmem:[%s3 + $0x24] sm:$0xf]
    %v1503 = vld [vmem:[%s3 + $0x28] sm:$0xf]
    %v1504 = vld [vmem:[%s3 + $0x2c] sm:$0xf]
    %v1505 = vld [vmem:[%s3 + $0x30] sm:$0xf]
    %v1506 = vld [vmem:[%s3 + $0x34] sm:$0xf]
    %v1507 = vld [vmem:[%s3 + $0x38] sm:$0xf]
    %v1508 = vld [vmem:[%s3 + $0x3c] sm:$0xf]
    %v1509 = vld [vmem:[%s4] sm:$0x1]
    %v1511 = vlaneseq
    %v1512 = vshrl.u32 %v1511, 7
    %v1513 = vsub.s32 0, %v1512
    %v1514 = vrot.slane %v1509, %v1513
    %v1532 = vunpack.c.l.b16 %v1493
    %v1533 = vunpack.c.l.b16 %v1494
    %v1534 = vunpack.c.l.b16 %v1495
    %v1535 = vunpack.c.l.b16 %v1496
    %v1536 = vunpack.c.l.b16 %v1497
    %v1537 = vunpack.c.l.b16 %v1498
    %v1538 = vunpack.c.l.b16 %v1499
    %v1539 = vunpack.c.l.b16 %v1500
    %v1540 = vunpack.c.l.b16 %v1501
    %v1541 = vunpack.c.l.b16 %v1502
    %v1542 = vunpack.c.l.b16 %v1503
    %v1543 = vunpack.c.l.b16 %v1504
    %v1544 = vunpack.c.l.b16 %v1505
    %v1545 = vunpack.c.l.b16 %v1506
    %v1546 = vunpack.c.l.b16 %v1507
    %v1547 = vunpack.c.l.b16 %v1508
    %v1548 = vpack.c.b16 %v1533, %v1532
    %v1549 = vpack.c.b16 %v1535, %v1534
    %v1550 = vpack.c.b16 %v1537, %v1536
    %v1551 = vpack.c.b16 %v1539, %v1538
    %v1552 = vpack.c.b16 %v1541, %v1540
    %v1553 = vpack.c.b16 %v1543, %v1542
    %v1554 = vpack.c.b16 %v1545, %v1544
    %v1555 = vpack.c.b16 %v1547, %v1546
    %1564 = vmatprep.subr.bf16.mxu0 0
    %1565 = vmatpush1.bf16.msra.mxu0 %v1555
    %1566 = vmatprep.subr.bf16.mxu0 0
    %1567 = vmatpush1.bf16.msra.mxu0 %v1554
    %1568 = vmatprep.subr.bf16.mxu0 0
    %1569 = vmatpush1.bf16.msra.mxu0 %v1553
    %1570 = vmatprep.subr.bf16.mxu0 0
    %1571 = vmatpush1.bf16.msra.mxu0 %v1552
    %1572 = vmatprep.subr.bf16.mxu0 0
    %1573 = vmatpush1.bf16.msra.mxu0 %v1551
    %1574 = vmatprep.subr.bf16.mxu0 0
    %1575 = vmatpush1.bf16.msra.mxu0 %v1550
    %1576 = vmatprep.subr.bf16.mxu0 0
    %1577 = vmatpush1.bf16.msra.mxu0 %v1549
    %1578 = vmatprep.subr.bf16.mxu0 0
    %1579 = vmatpush1.bf16.msra.mxu0 %v1548
    %1580 = vmatprep.subr.bf16.mxu0 0
    %1581 = vmatpush2.bf16.msra.mxu0 0
    %1582 = vmatprep.subr.bf16.mxu0 0
    %1583 = vmatpush2.bf16.msra.mxu0 0
    %1584 = vmatprep.subr.bf16.mxu0 0
    %1585 = vmatpush2.bf16.msra.mxu0 0
    %1586 = vmatprep.subr.bf16.mxu0 0
    %1587 = vmatpush2.bf16.msra.mxu0 0
    %1588 = vmatprep.subr.bf16.mxu0 0
    %1589 = vmatpush2.bf16.msra.mxu0 0
    %1590 = vmatprep.subr.bf16.mxu0 0
    %1591 = vmatpush2.bf16.msra.mxu0 0
    %1592 = vmatprep.subr.bf16.mxu0 0
    %1593 = vmatpush2.bf16.msra.mxu0 0
    %1594 = vmatprep.subr.bf16.mxu0 0
    %1595 = vmatpush2.bf16.msra.mxu0 0
    %1596 = vmatprep.mubr.bf16.mxu0 0
    %1597 = vmatmul.mubr.bf16.gmra.mxu0 %v1492
    %v1598 = vpop.f32.mrf.mxu0
    %v1599 = vadd.f32 %v1514, %v1598
    %v1600 = vpop.f32.mrf.mxu0
    %v1601 = vpop.f32.mrf.mxu0
    %v1602 = vpop.f32.mrf.mxu0
    %1603 = vdwg.mxu0
    %1604 = vst [vmem:[#allocation2] sm:$0x3] %v1599
    // Predicated region
    $region22: #{cnn_forward.7} parent=1 // pred_check
      _
    $region23: #{cnn_forward.7} parent=1 // pred_check_branch
      %1606 = sbr.rel (0) target = $region25
    $region24: #{cnn_forward.7} parent=1 // pred_region
      %s1608 = ssub.s32 32, 32
      %1609 = vsyncadd [#allocation3], %s1608
      %s1611 = sshll.u32 [#allocation2], 4
      %s1612 = int_to_ptr.vmem [resolvable:$true] %s1611
      %1614 = dma.vmem_to_hbm [thread:$0]  %s1612, 32, %s5, [#allocation3]
    $region25: #{cnn_forward.7} parent=1 // pred_fallthru
      _
    // Predicated region
    $region26: #{cnn_forward.7} parent=1 // pred_check
      _
    $region27: #{cnn_forward.7} parent=1 // pred_check_branch
      %1616 = sbr.rel (0) target = $region29
    $region28: #{cnn_forward.7} parent=1 // pred_region
      %1617 = dma.done [#allocation3], 32
    $region29: #{cnn_forward.7} parent=1 // pred_fallthru
      _
    %1618 = vsyncpa [#allocation3], 1

</llo_original>
